<compile_context>
chip_gen: v7x
topology: tpu7x:2x2x1
jax: 0.10.0
libtpu: 0.0.40
codegen_flags: <defaults>
</compile_context>

<pallas_src>
import functools
import math

import jax
import jax.numpy as jnp
from jax.experimental import pallas as pl
from jax.experimental.pallas import tpu as pltpu

LN_EPS = 1e-12
_SQRT_2_OVER_PI = math.sqrt(2.0 / math.pi)


# ----------------------------- in-kernel math -------------------------------

def _softmax_last(x):
    m = jnp.max(x, axis=-1, keepdims=True)
    e = jnp.exp(x - m)
    s = jnp.sum(e, axis=-1, keepdims=True)
    # approx reciprocal runs on the EUP (otherwise-idle VLIW slot)
    return e * pl.reciprocal(s, approx=True)


def _gelu(x):
    # tanh-approx GELU (tanh lowers to the EUP); |err| vs exact erf-GELU < 4e-4.
    return 0.5 * x * (1.0 + jnp.tanh(_SQRT_2_OVER_PI * (x + 0.044715 * (x * x * x))))


def _layernorm(y, gamma, beta):
    mu = jnp.mean(y, axis=-1, keepdims=True)
    yc = y - mu
    var = jnp.mean(yc * yc, axis=-1, keepdims=True)
    inv = jax.lax.rsqrt(var + LN_EPS)
    return yc * inv * gamma + beta


# ------------------------------ fused kernel ---------------------------------

def _connection_layer_kernel(num_heads, head_size, compute_dtype,
                             x1_ref, m1_ref, x2_ref, m2_ref,
                             wqkv1_ref, bqkv1_ref, wqkv2_ref, bqkv2_ref,
                             d1w_ref, d1b_ref, ln1g_ref, ln1b_ref,
                             d2w_ref, d2b_ref, ln2g_ref, ln2b_ref,
                             viw_ref, vib_ref, vow_ref, vob_ref, vlg_ref, vlb_ref,
                             tiw_ref, tib_ref, tow_ref, tob_ref, tlg_ref, tlb_ref,
                             o1_ref, o2_ref):
    """One batch element: full BertConnectionLayer forward, all in VMEM."""
    dt = compute_dtype

    def mm(a, b):
        return jnp.dot(a.astype(dt), b.astype(dt),
                       preferred_element_type=jnp.float32)

    x1 = x1_ref[0]                      # (Sv, Hv) visual stream
    x2 = x2_ref[0]                      # (St, Ht) text stream
    Sv, Hv = x1.shape
    St, Ht = x2.shape
    Hb = num_heads * head_size

    # ---- BertBiAttention: fused QKV projections (one matmul per stream) ----
    qkv1 = mm(x1, wqkv1_ref[...]) + bqkv1_ref[...]      # (Sv, 3*Hb)
    qkv2 = mm(x2, wqkv2_ref[...]) + bqkv2_ref[...]      # (St, 3*Hb)

    # additive key masks, broadcast once (hoisted out of the head loop)
    m1b = jnp.broadcast_to(m1_ref[0], (St, Sv))
    m2b = jnp.broadcast_to(m2_ref[0], (Sv, St))

    d1w = d1w_ref[...]                  # (Hb, Hv)
    d2w = d2w_ref[...]                  # (Hb, Ht)

    scale = 1.0 / math.sqrt(head_size)

    # Fuse BertBiOutput's dense into the head loop: accumulate ctx @ W_dense
    # directly in the target-stream hidden dim — the (S, Hb) context is never
    # concatenated or materialized.
    ctxd1 = jnp.zeros((St, Ht), jnp.float32)    # = context_layer1 @ dense2_w
    ctxd2 = jnp.zeros((Sv, Hv), jnp.float32)    # = context_layer2 @ dense1_w
    for h in range(num_heads):                  # static unroll over heads
        qs = slice(h * head_size, (h + 1) * head_size)
        ks = slice(Hb + h * head_size, Hb + (h + 1) * head_size)
        vs = slice(2 * Hb + h * head_size, 2 * Hb + (h + 1) * head_size)
        ws = slice(h * head_size, (h + 1) * head_size)   # sublane-aligned rows

        q1h, k1h, v1h = qkv1[:, qs], qkv1[:, ks], qkv1[:, vs]
        q2h, k2h, v2h = qkv2[:, qs], qkv2[:, ks], qkv2[:, vs]

        # text queries over visual keys/values -> context for text stream
        p1 = _softmax_last(mm(q2h, k1h.T) * scale + m1b)        # (St, Sv)
        ctxd1 = ctxd1 + mm(mm(p1, v1h), d2w[ws, :])             # (St, Ht)

        # visual queries over text keys/values -> context for visual stream
        p2 = _softmax_last(mm(q1h, k2h.T) * scale + m2b)        # (Sv, St)
        ctxd2 = ctxd2 + mm(mm(p2, v2h), d1w[ws, :])             # (Sv, Hv)

    # ---- BertBiOutput: (+ bias) + residual -> LayerNorm ----
    att1 = _layernorm(ctxd2 + d1b_ref[...] + x1, ln1g_ref[...], ln1b_ref[...])
    att2 = _layernorm(ctxd1 + d2b_ref[...] + x2, ln2g_ref[...], ln2b_ref[...])

    # ---- v_intermediate / v_output ----
    i1 = _gelu(mm(att1, viw_ref[...]) + vib_ref[...])
    o1 = _layernorm(mm(i1, vow_ref[...]) + vob_ref[...] + att1,
                    vlg_ref[...], vlb_ref[...])
    # ---- t_intermediate / t_output ----
    i2 = _gelu(mm(att2, tiw_ref[...]) + tib_ref[...])
    o2 = _layernorm(mm(i2, tow_ref[...]) + tob_ref[...] + att2,
                    tlg_ref[...], tlb_ref[...])

    o1_ref[0] = o1.astype(o1_ref.dtype)
    o2_ref[0] = o2.astype(o2_ref.dtype)


# ------------------------------ wrapper --------------------------------------

def _full_spec(shape):
    nd = len(shape)
    return pl.BlockSpec(shape, lambda b, _nd=nd: (0,) * _nd)


@functools.partial(jax.jit, static_argnames=("num_heads", "compute_dtype"))
def bert_connection_layer(x1, mask1, x2, mask2, p, *, num_heads,
                          compute_dtype=jnp.float32):
    """Matches BertConnectionLayer.forward (dropout=identity, visualization=False)."""
    B, Sv, Hv = x1.shape
    _, St, Ht = x2.shape
    Hb = p["wq1"].shape[1]
    head_size = Hb // num_heads

    # Pack Q/K/V weights so each stream's projection is one (S,H)@(H,3*Hb) matmul.
    wqkv1 = jnp.concatenate([p["wq1"], p["wk1"], p["wv1"]], axis=1)
    bqkv1 = jnp.concatenate([p["bq1"], p["bk1"], p["bv1"]], axis=1)
    wqkv2 = jnp.concatenate([p["wq2"], p["wk2"], p["wv2"]], axis=1)
    bqkv2 = jnp.concatenate([p["bq2"], p["bk2"], p["bv2"]], axis=1)

    weights = [
        wqkv1, bqkv1, wqkv2, bqkv2,
        p["dense1_w"], p["dense1_b"], p["ln1_g"], p["ln1_b"],
        p["dense2_w"], p["dense2_b"], p["ln2_g"], p["ln2_b"],
        p["v_inter_w"], p["v_inter_b"], p["v_out_w"], p["v_out_b"],
        p["v_ln_g"], p["v_ln_b"],
        p["t_inter_w"], p["t_inter_b"], p["t_out_w"], p["t_out_b"],
        p["t_ln_g"], p["t_ln_b"],
    ]

    kernel = functools.partial(_connection_layer_kernel,
                               num_heads, head_size, compute_dtype)
    out1, out2 = pl.pallas_call(
        kernel,
        grid=(B,),
        in_specs=[
            pl.BlockSpec((1, Sv, Hv), lambda b: (b, 0, 0)),   # input_tensor1
            pl.BlockSpec((1, 1, Sv), lambda b: (b, 0, 0)),    # attention_mask1
            pl.BlockSpec((1, St, Ht), lambda b: (b, 0, 0)),   # input_tensor2
            pl.BlockSpec((1, 1, St), lambda b: (b, 0, 0)),    # attention_mask2
        ] + [_full_spec(w.shape) for w in weights],
        out_specs=[
            pl.BlockSpec((1, Sv, Hv), lambda b: (b, 0, 0)),
            pl.BlockSpec((1, St, Ht), lambda b: (b, 0, 0)),
        ],
        out_shape=[
            jax.ShapeDtypeStruct((B, Sv, Hv), jnp.float32),
            jax.ShapeDtypeStruct((B, St, Ht), jnp.float32),
        ],
        compiler_params=pltpu.CompilerParams(
            dimension_semantics=("parallel",)),
    )(x1, mask1, x2, mask2, *weights)

    co_attention_probs = None   # visualization=False in config
    return out1, out2, co_attention_probs


# --------------------------- pure-JAX reference -------------------------------

def _ref_gelu(x):
    return x * 0.5 * (1.0 + jax.scipy.special.erf(x / math.sqrt(2.0)))


def _ref_layernorm(y, g, b):
    mu = jnp.mean(y, axis=-1, keepdims=True)
    var = jnp.mean((y - mu) ** 2, axis=-1, keepdims=True)
    return (y - mu) * jax.lax.rsqrt(var + LN_EPS) * g + b


def reference_forward(x1, m1, x2, m2, p, num_heads):
    B, Sv, Hv = x1.shape
    _, St, Ht = x2.shape
    Hb = p["wq1"].shape[1]
    dh = Hb // num_heads

    def split(x):
        b, s, _ = x.shape
        return x.reshape(b, s, num_heads, dh).transpose(0, 2, 1, 3)

    q1 = split(x1 @ p["wq1"] + p["bq1"])
    k1 = split(x1 @ p["wk1"] + p["bk1"])
    v1 = split(x1 @ p["wv1"] + p["bv1"])
    q2 = split(x2 @ p["wq2"] + p["bq2"])
    k2 = split(x2 @ p["wk2"] + p["bk2"])
    v2 = split(x2 @ p["wv2"] + p["bv2"])

    s1 = jnp.einsum("bhqd,bhkd->bhqk", q2, k1) / math.sqrt(dh) + m1[:, None, :, :]
    p1 = jax.nn.softmax(s1, axis=-1)
    ctx1 = jnp.einsum("bhqk,bhkd->bhqd", p1, v1).transpose(0, 2, 1, 3).reshape(B, St, Hb)

    s2 = jnp.einsum("bhqd,bhkd->bhqk", q1, k2) / math.sqrt(dh) + m2[:, None, :, :]
    p2 = jax.nn.softmax(s2, axis=-1)
    ctx2 = jnp.einsum("bhqk,bhkd->bhqd", p2, v2).transpose(0, 2, 1, 3).reshape(B, Sv, Hb)

    att1 = _ref_layernorm(ctx2 @ p["dense1_w"] + p["dense1_b"] + x1, p["ln1_g"], p["ln1_b"])
    att2 = _ref_layernorm(ctx1 @ p["dense2_w"] + p["dense2_b"] + x2, p["ln2_g"], p["ln2_b"])

    i1 = _ref_gelu(att1 @ p["v_inter_w"] + p["v_inter_b"])
    o1 = _ref_layernorm(i1 @ p["v_out_w"] + p["v_out_b"] + att1, p["v_ln_g"], p["v_ln_b"])
    i2 = _ref_gelu(att2 @ p["t_inter_w"] + p["t_inter_b"])
    o2 = _ref_layernorm(i2 @ p["t_out_w"] + p["t_out_b"] + att2, p["t_ln_g"], p["t_ln_b"])
    return o1, o2


# ------------------------------- init -----------------------------------------

def init_params(key, Hv, Ht, Hb, Iv, It):
    ks = iter(jax.random.split(key, 40))

    def w(din, dout):
        return 0.02 * jax.random.normal(next(ks), (din, dout), jnp.float32)

    def b(dout):
        return 0.01 * jax.random.normal(next(ks), (1, dout), jnp.float32)

    def ln(d):
        g = 1.0 + 0.05 * jax.random.normal(next(ks), (1, d), jnp.float32)
        bb = 0.01 * jax.random.normal(next(ks), (1, d), jnp.float32)
        return g, bb

    p = {}
    # BertBiAttention
    p["wq1"], p["bq1"] = w(Hv, Hb), b(Hb)
    p["wk1"], p["bk1"] = w(Hv, Hb), b(Hb)
    p["wv1"], p["bv1"] = w(Hv, Hb), b(Hb)
    p["wq2"], p["bq2"] = w(Ht, Hb), b(Hb)
    p["wk2"], p["bk2"] = w(Ht, Hb), b(Hb)
    p["wv2"], p["bv2"] = w(Ht, Hb), b(Hb)
    # BertBiOutput
    p["dense1_w"], p["dense1_b"] = w(Hb, Hv), b(Hv)
    p["ln1_g"], p["ln1_b"] = ln(Hv)
    p["dense2_w"], p["dense2_b"] = w(Hb, Ht), b(Ht)
    p["ln2_g"], p["ln2_b"] = ln(Ht)
    # v_intermediate / v_output
    p["v_inter_w"], p["v_inter_b"] = w(Hv, Iv), b(Iv)
    p["v_out_w"], p["v_out_b"] = w(Iv, Hv), b(Hv)
    p["v_ln_g"], p["v_ln_b"] = ln(Hv)
    # t_intermediate / t_output
    p["t_inter_w"], p["t_inter_b"] = w(Ht, It), b(It)
    p["t_out_w"], p["t_out_b"] = w(It, Ht), b(Ht)
    p["t_ln_g"], p["t_ln_b"] = ln(Ht)
    return p


# ------------------------------- main -----------------------------------------

if __name__ == "__main__":
    # config: v_hidden=32, t_hidden=48, bi_hidden=32, bi_heads=4 (head=8),
    #         v_intermediate=64, t_intermediate=96, batch=2, Sv=8, St=16.
    B, Sv, St = 2, 8, 16
    Hv, Ht, Hb = 32, 48, 32
    Iv, It = 64, 96
    num_heads = 4

    key = jax.random.PRNGKey(0)
    k_p, k_x1, k_x2 = jax.random.split(key, 3)
    params = init_params(k_p, Hv, Ht, Hb, Iv, It)

    input_tensor1 = jax.random.normal(k_x1, (B, Sv, Hv), jnp.float32)
    input_tensor2 = jax.random.normal(k_x2, (B, St, Ht), jnp.float32)

    # extended additive attention masks: 0 for visible, -10000 for masked keys
    attention_mask1 = jnp.zeros((B, 1, Sv), jnp.float32)  # all visual regions visible
    tok_valid = jnp.arange(St)[None, :] < jnp.array([[St], [St - 4]])  # pad last 4 of batch 1
    attention_mask2 = jnp.where(tok_valid, 0.0, -10000.0)[:, None, :].astype(jnp.float32)

    ref1, ref2 = reference_forward(
        input_tensor1, attention_mask1, input_tensor2, attention_mask2,
        params, num_heads)

    # f32 MXU path (matches module semantics; default / v5e)
    out1, out2, co_probs = bert_connection_layer(
        input_tensor1, attention_mask1, input_tensor2, attention_mask2,
        params, num_heads=num_heads, compute_dtype=jnp.float32)
    out1, out2 = jax.block_until_ready((out1, out2))
    assert out1.shape == (B, Sv, Hv) and out2.shape == (B, St, Ht)
    assert co_probs is None
    assert jnp.allclose(out1, ref1, atol=2e-3, rtol=2e-3)
    assert jnp.allclose(out2, ref2, atol=2e-3, rtol=2e-3)

    # bf16 matmul operands / f32 accumulation (v6e / v7x MXU peak path);
    # revalidated against the f32 reference at a looser tolerance.
    b1, b2, _ = bert_connection_layer(
        input_tensor1, attention_mask1, input_tensor2, attention_mask2,
        params, num_heads=num_heads, compute_dtype=jnp.bfloat16)
    b1, b2 = jax.block_until_ready((b1, b2))
    assert jnp.allclose(b1, ref1, atol=2e-2, rtol=2e-2)
    assert jnp.allclose(b2, ref2, atol=2e-2, rtol=2e-2)

    print("KERNEL_OK")
</pallas_src>

<mosaic_0001>
module attributes {stable_mosaic.version = 11 : i64} {
  func.func @_connection_layer_kernel(%arg0: i32, %arg1: memref<1x8x32xf32, #tpu.memory_space<vmem>>, %arg2: memref<1x1x8xf32, #tpu.memory_space<vmem>>, %arg3: memref<1x16x48xf32, #tpu.memory_space<vmem>>, %arg4: memref<1x1x16xf32, #tpu.memory_space<vmem>>, %arg5: memref<32x96xf32, #tpu.memory_space<vmem>>, %arg6: memref<1x96xf32, #tpu.memory_space<vmem>>, %arg7: memref<48x96xf32, #tpu.memory_space<vmem>>, %arg8: memref<1x96xf32, #tpu.memory_space<vmem>>, %arg9: memref<32x32xf32, #tpu.memory_space<vmem>>, %arg10: memref<1x32xf32, #tpu.memory_space<vmem>>, %arg11: memref<1x32xf32, #tpu.memory_space<vmem>>, %arg12: memref<1x32xf32, #tpu.memory_space<vmem>>, %arg13: memref<32x48xf32, #tpu.memory_space<vmem>>, %arg14: memref<1x48xf32, #tpu.memory_space<vmem>>, %arg15: memref<1x48xf32, #tpu.memory_space<vmem>>, %arg16: memref<1x48xf32, #tpu.memory_space<vmem>>, %arg17: memref<32x64xf32, #tpu.memory_space<vmem>>, %arg18: memref<1x64xf32, #tpu.memory_space<vmem>>, %arg19: memref<64x32xf32, #tpu.memory_space<vmem>>, %arg20: memref<1x32xf32, #tpu.memory_space<vmem>>, %arg21: memref<1x32xf32, #tpu.memory_space<vmem>>, %arg22: memref<1x32xf32, #tpu.memory_space<vmem>>, %arg23: memref<48x96xf32, #tpu.memory_space<vmem>>, %arg24: memref<1x96xf32, #tpu.memory_space<vmem>>, %arg25: memref<96x48xf32, #tpu.memory_space<vmem>>, %arg26: memref<1x48xf32, #tpu.memory_space<vmem>>, %arg27: memref<1x48xf32, #tpu.memory_space<vmem>>, %arg28: memref<1x48xf32, #tpu.memory_space<vmem>>, %arg29: memref<1x8x32xf32, #tpu.memory_space<vmem>>, %arg30: memref<1x16x48xf32, #tpu.memory_space<vmem>>) attributes {dimension_semantics = [#tpu.dimension_semantics<parallel>], iteration_bounds = array<i64: 2>, scalar_prefetch = 0 : i64, scratch_operands = 0 : i64, tpu.core_type = #tpu.core_type<tc>, window_params = [{transform_indices = @transform_0, window_bounds = array<i64: 1, 8, 32>}, {transform_indices = @transform_1, window_bounds = array<i64: 1, 1, 8>}, {transform_indices = @transform_2, window_bounds = array<i64: 1, 16, 48>}, {transform_indices = @transform_3, window_bounds = array<i64: 1, 1, 16>}, {pipeline_mode = #tpu.pipeline_mode<synchronous>, transform_indices = @transform_4, window_bounds = array<i64: 32, 96>}, {pipeline_mode = #tpu.pipeline_mode<synchronous>, transform_indices = @transform_5, window_bounds = array<i64: 1, 96>}, {pipeline_mode = #tpu.pipeline_mode<synchronous>, transform_indices = @transform_6, window_bounds = array<i64: 48, 96>}, {pipeline_mode = #tpu.pipeline_mode<synchronous>, transform_indices = @transform_7, window_bounds = array<i64: 1, 96>}, {pipeline_mode = #tpu.pipeline_mode<synchronous>, transform_indices = @transform_8, window_bounds = array<i64: 32, 32>}, {pipeline_mode = #tpu.pipeline_mode<synchronous>, transform_indices = @transform_9, window_bounds = array<i64: 1, 32>}, {pipeline_mode = #tpu.pipeline_mode<synchronous>, transform_indices = @transform_10, window_bounds = array<i64: 1, 32>}, {pipeline_mode = #tpu.pipeline_mode<synchronous>, transform_indices = @transform_11, window_bounds = array<i64: 1, 32>}, {pipeline_mode = #tpu.pipeline_mode<synchronous>, transform_indices = @transform_12, window_bounds = array<i64: 32, 48>}, {pipeline_mode = #tpu.pipeline_mode<synchronous>, transform_indices = @transform_13, window_bounds = array<i64: 1, 48>}, {pipeline_mode = #tpu.pipeline_mode<synchronous>, transform_indices = @transform_14, window_bounds = array<i64: 1, 48>}, {pipeline_mode = #tpu.pipeline_mode<synchronous>, transform_indices = @transform_15, window_bounds = array<i64: 1, 48>}, {pipeline_mode = #tpu.pipeline_mode<synchronous>, transform_indices = @transform_16, window_bounds = array<i64: 32, 64>}, {pipeline_mode = #tpu.pipeline_mode<synchronous>, transform_indices = @transform_17, window_bounds = array<i64: 1, 64>}, {pipeline_mode = #tpu.pipeline_mode<synchronous>, transform_indices = @transform_18, window_bounds = array<i64: 64, 32>}, {pipeline_mode = #tpu.pipeline_mode<synchronous>, transform_indices = @transform_19, window_bounds = array<i64: 1, 32>}, {pipeline_mode = #tpu.pipeline_mode<synchronous>, transform_indices = @transform_20, window_bounds = array<i64: 1, 32>}, {pipeline_mode = #tpu.pipeline_mode<synchronous>, transform_indices = @transform_21, window_bounds = array<i64: 1, 32>}, {pipeline_mode = #tpu.pipeline_mode<synchronous>, transform_indices = @transform_22, window_bounds = array<i64: 48, 96>}, {pipeline_mode = #tpu.pipeline_mode<synchronous>, transform_indices = @transform_23, window_bounds = array<i64: 1, 96>}, {pipeline_mode = #tpu.pipeline_mode<synchronous>, transform_indices = @transform_24, window_bounds = array<i64: 96, 48>}, {pipeline_mode = #tpu.pipeline_mode<synchronous>, transform_indices = @transform_25, window_bounds = array<i64: 1, 48>}, {pipeline_mode = #tpu.pipeline_mode<synchronous>, transform_indices = @transform_26, window_bounds = array<i64: 1, 48>}, {pipeline_mode = #tpu.pipeline_mode<synchronous>, transform_indices = @transform_27, window_bounds = array<i64: 1, 48>}, {transform_indices = @transform_28, window_bounds = array<i64: 1, 8, 32>}, {transform_indices = @transform_29, window_bounds = array<i64: 1, 16, 48>}]} {
    %c0 = arith.constant 0 : index
    %c0_0 = arith.constant 0 : index
    %c0_1 = arith.constant 0 : index
    %0 = vector.load %arg1[%c0, %c0_0, %c0_1] : memref<1x8x32xf32, #tpu.memory_space<vmem>>, vector<1x8x32xf32>
    %1 = vector.shape_cast %0 : vector<1x8x32xf32> to vector<8x32xf32>
    %c0_2 = arith.constant 0 : index
    %c0_3 = arith.constant 0 : index
    %c0_4 = arith.constant 0 : index
    %2 = vector.load %arg3[%c0_2, %c0_3, %c0_4] : memref<1x16x48xf32, #tpu.memory_space<vmem>>, vector<1x16x48xf32>
    %3 = vector.shape_cast %2 : vector<1x16x48xf32> to vector<16x48xf32>
    %c0_5 = arith.constant 0 : index
    %c0_6 = arith.constant 0 : index
    %4 = vector.load %arg5[%c0_5, %c0_6] : memref<32x96xf32, #tpu.memory_space<vmem>>, vector<32x96xf32>
    %cst = arith.constant dense<0.000000e+00> : vector<8x96xf32>
    %5 = tpu.matmul %1, %4, %cst {dimension_numbers = #tpu.dot_dimension_numbers<[1], [0], [0], [1], [0, 0, 1, 1], [], []>} : vector<8x32xf32>, vector<32x96xf32>, vector<8x96xf32> -> vector<8x96xf32>
    %c0_7 = arith.constant 0 : index
    %c0_8 = arith.constant 0 : index
    %6 = vector.load %arg6[%c0_7, %c0_8] : memref<1x96xf32, #tpu.memory_space<vmem>>, vector<1x96xf32>
    %7 = vector.broadcast %6 : vector<1x96xf32> to vector<8x96xf32>
    %8 = arith.addf %5, %7 : vector<8x96xf32>
    %c0_9 = arith.constant 0 : index
    %c0_10 = arith.constant 0 : index
    %9 = vector.load %arg7[%c0_9, %c0_10] : memref<48x96xf32, #tpu.memory_space<vmem>>, vector<48x96xf32>
    %cst_11 = arith.constant dense<0.000000e+00> : vector<16x96xf32>
    %10 = tpu.matmul %3, %9, %cst_11 {dimension_numbers = #tpu.dot_dimension_numbers<[1], [0], [0], [1], [0, 0, 1, 1], [], []>} : vector<16x48xf32>, vector<48x96xf32>, vector<16x96xf32> -> vector<16x96xf32>
    %c0_12 = arith.constant 0 : index
    %c0_13 = arith.constant 0 : index
    %11 = vector.load %arg8[%c0_12, %c0_13] : memref<1x96xf32, #tpu.memory_space<vmem>>, vector<1x96xf32>
    %12 = vector.broadcast %11 : vector<1x96xf32> to vector<16x96xf32>
    %13 = arith.addf %10, %12 : vector<16x96xf32>
    %c0_14 = arith.constant 0 : index
    %c0_15 = arith.constant 0 : index
    %c0_16 = arith.constant 0 : index
    %14 = vector.load %arg2[%c0_14, %c0_15, %c0_16] : memref<1x1x8xf32, #tpu.memory_space<vmem>>, vector<1x1x8xf32>
    %15 = vector.shape_cast %14 : vector<1x1x8xf32> to vector<1x8xf32>
    %16 = vector.shape_cast %15 : vector<1x8xf32> to vector<1x8xf32>
    %17 = vector.broadcast %16 : vector<1x8xf32> to vector<16x8xf32>
    %c0_17 = arith.constant 0 : index
    %c0_18 = arith.constant 0 : index
    %c0_19 = arith.constant 0 : index
    %18 = vector.load %arg4[%c0_17, %c0_18, %c0_19] : memref<1x1x16xf32, #tpu.memory_space<vmem>>, vector<1x1x16xf32>
    %19 = vector.shape_cast %18 : vector<1x1x16xf32> to vector<1x16xf32>
    %20 = vector.shape_cast %19 : vector<1x16xf32> to vector<1x16xf32>
    %21 = vector.broadcast %20 : vector<1x16xf32> to vector<8x16xf32>
    %c0_20 = arith.constant 0 : index
    %c0_21 = arith.constant 0 : index
    %22 = vector.load %arg9[%c0_20, %c0_21] : memref<32x32xf32, #tpu.memory_space<vmem>>, vector<32x32xf32>
    %c0_22 = arith.constant 0 : index
    %c0_23 = arith.constant 0 : index
    %23 = vector.load %arg13[%c0_22, %c0_23] : memref<32x48xf32, #tpu.memory_space<vmem>>, vector<32x48xf32>
    %cst_24 = arith.constant 0.000000e+00 : f32
    %24 = vector.broadcast %cst_24 : f32 to vector<16x48xf32>
    %cst_25 = arith.constant 0.000000e+00 : f32
    %25 = vector.broadcast %cst_25 : f32 to vector<8x32xf32>
    %26 = vector.extract_strided_slice %8 {offsets = [0, 0], sizes = [8, 8], strides = [1, 1]} : vector<8x96xf32> to vector<8x8xf32>
    %27 = vector.extract_strided_slice %8 {offsets = [0, 32], sizes = [8, 8], strides = [1, 1]} : vector<8x96xf32> to vector<8x8xf32>
    %28 = vector.extract_strided_slice %8 {offsets = [0, 64], sizes = [8, 8], strides = [1, 1]} : vector<8x96xf32> to vector<8x8xf32>
    %29 = vector.extract_strided_slice %13 {offsets = [0, 0], sizes = [16, 8], strides = [1, 1]} : vector<16x96xf32> to vector<16x8xf32>
    %30 = vector.extract_strided_slice %13 {offsets = [0, 32], sizes = [16, 8], strides = [1, 1]} : vector<16x96xf32> to vector<16x8xf32>
    %31 = vector.extract_strided_slice %13 {offsets = [0, 64], sizes = [16, 8], strides = [1, 1]} : vector<16x96xf32> to vector<16x8xf32>
    %32 = tpu.transpose %27, [1, 0] : vector<8x8xf32> -> vector<8x8xf32>
    %cst_26 = arith.constant dense<0.000000e+00> : vector<16x8xf32>
    %33 = tpu.matmul %29, %32, %cst_26 {dimension_numbers = #tpu.dot_dimension_numbers<[1], [0], [0], [1], [0, 0, 1, 1], [], []>} : vector<16x8xf32>, vector<8x8xf32>, vector<16x8xf32> -> vector<16x8xf32>
    %cst_27 = arith.constant 0.353553385 : f32
    %34 = vector.broadcast %cst_27 : f32 to vector<16x8xf32>
    %35 = arith.mulf %33, %34 : vector<16x8xf32>
    %36 = arith.addf %35, %17 : vector<16x8xf32>
    %cst_28 = arith.constant dense<0xFF800000> : vector<16xf32>
    %37 = vector.multi_reduction <maximumf>, %36, %cst_28 [1] : vector<16x8xf32> to vector<16xf32>
    %38 = vector.shape_cast %37 : vector<16xf32> to vector<16x1xf32>
    %39 = vector.broadcast %38 : vector<16x1xf32> to vector<16x8xf32>
    %40 = arith.subf %36, %39 : vector<16x8xf32>
    %41 = math.exp %40 : vector<16x8xf32>
    %cst_29 = arith.constant dense<0.000000e+00> : vector<16xf32>
    %42 = vector.multi_reduction <add>, %41, %cst_29 [1] : vector<16x8xf32> to vector<16xf32>
    %43 = vector.shape_cast %42 : vector<16xf32> to vector<16x1xf32>
    %44 = tpu.reciprocal %43 {approx = true} : vector<16x1xf32> -> vector<16x1xf32>
    %45 = vector.broadcast %44 : vector<16x1xf32> to vector<16x8xf32>
    %46 = arith.mulf %41, %45 : vector<16x8xf32>
    %cst_30 = arith.constant dense<0.000000e+00> : vector<16x8xf32>
    %47 = tpu.matmul %46, %28, %cst_30 {dimension_numbers = #tpu.dot_dimension_numbers<[1], [0], [0], [1], [0, 0, 1, 1], [], []>} : vector<16x8xf32>, vector<8x8xf32>, vector<16x8xf32> -> vector<16x8xf32>
    %48 = vector.extract_strided_slice %23 {offsets = [0, 0], sizes = [8, 48], strides = [1, 1]} : vector<32x48xf32> to vector<8x48xf32>
    %cst_31 = arith.constant dense<0.000000e+00> : vector<16x48xf32>
    %49 = tpu.matmul %47, %48, %cst_31 {dimension_numbers = #tpu.dot_dimension_numbers<[1], [0], [0], [1], [0, 0, 1, 1], [], []>} : vector<16x8xf32>, vector<8x48xf32>, vector<16x48xf32> -> vector<16x48xf32>
    %50 = arith.addf %24, %49 : vector<16x48xf32>
    %51 = tpu.transpose %30, [1, 0] : vector<16x8xf32> -> vector<8x16xf32>
    %cst_32 = arith.constant dense<0.000000e+00> : vector<8x16xf32>
    %52 = tpu.matmul %26, %51, %cst_32 {dimension_numbers = #tpu.dot_dimension_numbers<[1], [0], [0], [1], [0, 0, 1, 1], [], []>} : vector<8x8xf32>, vector<8x16xf32>, vector<8x16xf32> -> vector<8x16xf32>
    %cst_33 = arith.constant 0.353553385 : f32
    %53 = vector.broadcast %cst_33 : f32 to vector<8x16xf32>
    %54 = arith.mulf %52, %53 : vector<8x16xf32>
    %55 = arith.addf %54, %21 : vector<8x16xf32>
    %cst_34 = arith.constant dense<0xFF800000> : vector<8xf32>
    %56 = vector.multi_reduction <maximumf>, %55, %cst_34 [1] : vector<8x16xf32> to vector<8xf32>
    %57 = vector.shape_cast %56 : vector<8xf32> to vector<8x1xf32>
    %58 = vector.broadcast %57 : vector<8x1xf32> to vector<8x16xf32>
    %59 = arith.subf %55, %58 : vector<8x16xf32>
    %60 = math.exp %59 : vector<8x16xf32>
    %cst_35 = arith.constant dense<0.000000e+00> : vector<8xf32>
    %61 = vector.multi_reduction <add>, %60, %cst_35 [1] : vector<8x16xf32> to vector<8xf32>
    %62 = vector.shape_cast %61 : vector<8xf32> to vector<8x1xf32>
    %63 = tpu.reciprocal %62 {approx = true} : vector<8x1xf32> -> vector<8x1xf32>
    %64 = vector.broadcast %63 : vector<8x1xf32> to vector<8x16xf32>
    %65 = arith.mulf %60, %64 : vector<8x16xf32>
    %cst_36 = arith.constant dense<0.000000e+00> : vector<8x8xf32>
    %66 = tpu.matmul %65, %31, %cst_36 {dimension_numbers = #tpu.dot_dimension_numbers<[1], [0], [0], [1], [0, 0, 1, 1], [], []>} : vector<8x16xf32>, vector<16x8xf32>, vector<8x8xf32> -> vector<8x8xf32>
    %67 = vector.extract_strided_slice %22 {offsets = [0, 0], sizes = [8, 32], strides = [1, 1]} : vector<32x32xf32> to vector<8x32xf32>
    %cst_37 = arith.constant dense<0.000000e+00> : vector<8x32xf32>
    %68 = tpu.matmul %66, %67, %cst_37 {dimension_numbers = #tpu.dot_dimension_numbers<[1], [0], [0], [1], [0, 0, 1, 1], [], []>} : vector<8x8xf32>, vector<8x32xf32>, vector<8x32xf32> -> vector<8x32xf32>
    %69 = arith.addf %25, %68 : vector<8x32xf32>
    %70 = vector.extract_strided_slice %8 {offsets = [0, 8], sizes = [8, 8], strides = [1, 1]} : vector<8x96xf32> to vector<8x8xf32>
    %71 = vector.extract_strided_slice %8 {offsets = [0, 40], sizes = [8, 8], strides = [1, 1]} : vector<8x96xf32> to vector<8x8xf32>
    %72 = vector.extract_strided_slice %8 {offsets = [0, 72], sizes = [8, 8], strides = [1, 1]} : vector<8x96xf32> to vector<8x8xf32>
    %73 = vector.extract_strided_slice %13 {offsets = [0, 8], sizes = [16, 8], strides = [1, 1]} : vector<16x96xf32> to vector<16x8xf32>
    %74 = vector.extract_strided_slice %13 {offsets = [0, 40], sizes = [16, 8], strides = [1, 1]} : vector<16x96xf32> to vector<16x8xf32>
    %75 = vector.extract_strided_slice %13 {offsets = [0, 72], sizes = [16, 8], strides = [1, 1]} : vector<16x96xf32> to vector<16x8xf32>
    %76 = tpu.transpose %71, [1, 0] : vector<8x8xf32> -> vector<8x8xf32>
    %cst_38 = arith.constant dense<0.000000e+00> : vector<16x8xf32>
    %77 = tpu.matmul %73, %76, %cst_38 {dimension_numbers = #tpu.dot_dimension_numbers<[1], [0], [0], [1], [0, 0, 1, 1], [], []>} : vector<16x8xf32>, vector<8x8xf32>, vector<16x8xf32> -> vector<16x8xf32>
    %cst_39 = arith.constant 0.353553385 : f32
    %78 = vector.broadcast %cst_39 : f32 to vector<16x8xf32>
    %79 = arith.mulf %77, %78 : vector<16x8xf32>
    %80 = arith.addf %79, %17 : vector<16x8xf32>
    %cst_40 = arith.constant dense<0xFF800000> : vector<16xf32>
    %81 = vector.multi_reduction <maximumf>, %80, %cst_40 [1] : vector<16x8xf32> to vector<16xf32>
    %82 = vector.shape_cast %81 : vector<16xf32> to vector<16x1xf32>
    %83 = vector.broadcast %82 : vector<16x1xf32> to vector<16x8xf32>
    %84 = arith.subf %80, %83 : vector<16x8xf32>
    %85 = math.exp %84 : vector<16x8xf32>
    %cst_41 = arith.constant dense<0.000000e+00> : vector<16xf32>
    %86 = vector.multi_reduction <add>, %85, %cst_41 [1] : vector<16x8xf32> to vector<16xf32>
    %87 = vector.shape_cast %86 : vector<16xf32> to vector<16x1xf32>
    %88 = tpu.reciprocal %87 {approx = true} : vector<16x1xf32> -> vector<16x1xf32>
    %89 = vector.broadcast %88 : vector<16x1xf32> to vector<16x8xf32>
    %90 = arith.mulf %85, %89 : vector<16x8xf32>
    %cst_42 = arith.constant dense<0.000000e+00> : vector<16x8xf32>
    %91 = tpu.matmul %90, %72, %cst_42 {dimension_numbers = #tpu.dot_dimension_numbers<[1], [0], [0], [1], [0, 0, 1, 1], [], []>} : vector<16x8xf32>, vector<8x8xf32>, vector<16x8xf32> -> vector<16x8xf32>
    %92 = vector.extract_strided_slice %23 {offsets = [8, 0], sizes = [8, 48], strides = [1, 1]} : vector<32x48xf32> to vector<8x48xf32>
    %cst_43 = arith.constant dense<0.000000e+00> : vector<16x48xf32>
    %93 = tpu.matmul %91, %92, %cst_43 {dimension_numbers = #tpu.dot_dimension_numbers<[1], [0], [0], [1], [0, 0, 1, 1], [], []>} : vector<16x8xf32>, vector<8x48xf32>, vector<16x48xf32> -> vector<16x48xf32>
    %94 = arith.addf %50, %93 : vector<16x48xf32>
    %95 = tpu.transpose %74, [1, 0] : vector<16x8xf32> -> vector<8x16xf32>
    %cst_44 = arith.constant dense<0.000000e+00> : vector<8x16xf32>
    %96 = tpu.matmul %70, %95, %cst_44 {dimension_numbers = #tpu.dot_dimension_numbers<[1], [0], [0], [1], [0, 0, 1, 1], [], []>} : vector<8x8xf32>, vector<8x16xf32>, vector<8x16xf32> -> vector<8x16xf32>
    %cst_45 = arith.constant 0.353553385 : f32
    %97 = vector.broadcast %cst_45 : f32 to vector<8x16xf32>
    %98 = arith.mulf %96, %97 : vector<8x16xf32>
    %99 = arith.addf %98, %21 : vector<8x16xf32>
    %cst_46 = arith.constant dense<0xFF800000> : vector<8xf32>
    %100 = vector.multi_reduction <maximumf>, %99, %cst_46 [1] : vector<8x16xf32> to vector<8xf32>
    %101 = vector.shape_cast %100 : vector<8xf32> to vector<8x1xf32>
    %102 = vector.broadcast %101 : vector<8x1xf32> to vector<8x16xf32>
    %103 = arith.subf %99, %102 : vector<8x16xf32>
    %104 = math.exp %103 : vector<8x16xf32>
    %cst_47 = arith.constant dense<0.000000e+00> : vector<8xf32>
    %105 = vector.multi_reduction <add>, %104, %cst_47 [1] : vector<8x16xf32> to vector<8xf32>
    %106 = vector.shape_cast %105 : vector<8xf32> to vector<8x1xf32>
    %107 = tpu.reciprocal %106 {approx = true} : vector<8x1xf32> -> vector<8x1xf32>
    %108 = vector.broadcast %107 : vector<8x1xf32> to vector<8x16xf32>
    %109 = arith.mulf %104, %108 : vector<8x16xf32>
    %cst_48 = arith.constant dense<0.000000e+00> : vector<8x8xf32>
    %110 = tpu.matmul %109, %75, %cst_48 {dimension_numbers = #tpu.dot_dimension_numbers<[1], [0], [0], [1], [0, 0, 1, 1], [], []>} : vector<8x16xf32>, vector<16x8xf32>, vector<8x8xf32> -> vector<8x8xf32>
    %111 = vector.extract_strided_slice %22 {offsets = [8, 0], sizes = [8, 32], strides = [1, 1]} : vector<32x32xf32> to vector<8x32xf32>
    %cst_49 = arith.constant dense<0.000000e+00> : vector<8x32xf32>
    %112 = tpu.matmul %110, %111, %cst_49 {dimension_numbers = #tpu.dot_dimension_numbers<[1], [0], [0], [1], [0, 0, 1, 1], [], []>} : vector<8x8xf32>, vector<8x32xf32>, vector<8x32xf32> -> vector<8x32xf32>
    %113 = arith.addf %69, %112 : vector<8x32xf32>
    %114 = vector.extract_strided_slice %8 {offsets = [0, 16], sizes = [8, 8], strides = [1, 1]} : vector<8x96xf32> to vector<8x8xf32>
    %115 = vector.extract_strided_slice %8 {offsets = [0, 48], sizes = [8, 8], strides = [1, 1]} : vector<8x96xf32> to vector<8x8xf32>
    %116 = vector.extract_strided_slice %8 {offsets = [0, 80], sizes = [8, 8], strides = [1, 1]} : vector<8x96xf32> to vector<8x8xf32>
    %117 = vector.extract_strided_slice %13 {offsets = [0, 16], sizes = [16, 8], strides = [1, 1]} : vector<16x96xf32> to vector<16x8xf32>
    %118 = vector.extract_strided_slice %13 {offsets = [0, 48], sizes = [16, 8], strides = [1, 1]} : vector<16x96xf32> to vector<16x8xf32>
    %119 = vector.extract_strided_slice %13 {offsets = [0, 80], sizes = [16, 8], strides = [1, 1]} : vector<16x96xf32> to vector<16x8xf32>
    %120 = tpu.transpose %115, [1, 0] : vector<8x8xf32> -> vector<8x8xf32>
    %cst_50 = arith.constant dense<0.000000e+00> : vector<16x8xf32>
    %121 = tpu.matmul %117, %120, %cst_50 {dimension_numbers = #tpu.dot_dimension_numbers<[1], [0], [0], [1], [0, 0, 1, 1], [], []>} : vector<16x8xf32>, vector<8x8xf32>, vector<16x8xf32> -> vector<16x8xf32>
    %cst_51 = arith.constant 0.353553385 : f32
    %122 = vector.broadcast %cst_51 : f32 to vector<16x8xf32>
    %123 = arith.mulf %121, %122 : vector<16x8xf32>
    %124 = arith.addf %123, %17 : vector<16x8xf32>
    %cst_52 = arith.constant dense<0xFF800000> : vector<16xf32>
    %125 = vector.multi_reduction <maximumf>, %124, %cst_52 [1] : vector<16x8xf32> to vector<16xf32>
    %126 = vector.shape_cast %125 : vector<16xf32> to vector<16x1xf32>
    %127 = vector.broadcast %126 : vector<16x1xf32> to vector<16x8xf32>
    %128 = arith.subf %124, %127 : vector<16x8xf32>
    %129 = math.exp %128 : vector<16x8xf32>
    %cst_53 = arith.constant dense<0.000000e+00> : vector<16xf32>
    %130 = vector.multi_reduction <add>, %129, %cst_53 [1] : vector<16x8xf32> to vector<16xf32>
    %131 = vector.shape_cast %130 : vector<16xf32> to vector<16x1xf32>
    %132 = tpu.reciprocal %131 {approx = true} : vector<16x1xf32> -> vector<16x1xf32>
    %133 = vector.broadcast %132 : vector<16x1xf32> to vector<16x8xf32>
    %134 = arith.mulf %129, %133 : vector<16x8xf32>
    %cst_54 = arith.constant dense<0.000000e+00> : vector<16x8xf32>
    %135 = tpu.matmul %134, %116, %cst_54 {dimension_numbers = #tpu.dot_dimension_numbers<[1], [0], [0], [1], [0, 0, 1, 1], [], []>} : vector<16x8xf32>, vector<8x8xf32>, vector<16x8xf32> -> vector<16x8xf32>
    %136 = vector.extract_strided_slice %23 {offsets = [16, 0], sizes = [8, 48], strides = [1, 1]} : vector<32x48xf32> to vector<8x48xf32>
    %cst_55 = arith.constant dense<0.000000e+00> : vector<16x48xf32>
    %137 = tpu.matmul %135, %136, %cst_55 {dimension_numbers = #tpu.dot_dimension_numbers<[1], [0], [0], [1], [0, 0, 1, 1], [], []>} : vector<16x8xf32>, vector<8x48xf32>, vector<16x48xf32> -> vector<16x48xf32>
    %138 = arith.addf %94, %137 : vector<16x48xf32>
    %139 = tpu.transpose %118, [1, 0] : vector<16x8xf32> -> vector<8x16xf32>
    %cst_56 = arith.constant dense<0.000000e+00> : vector<8x16xf32>
    %140 = tpu.matmul %114, %139, %cst_56 {dimension_numbers = #tpu.dot_dimension_numbers<[1], [0], [0], [1], [0, 0, 1, 1], [], []>} : vector<8x8xf32>, vector<8x16xf32>, vector<8x16xf32> -> vector<8x16xf32>
    %cst_57 = arith.constant 0.353553385 : f32
    %141 = vector.broadcast %cst_57 : f32 to vector<8x16xf32>
    %142 = arith.mulf %140, %141 : vector<8x16xf32>
    %143 = arith.addf %142, %21 : vector<8x16xf32>
    %cst_58 = arith.constant dense<0xFF800000> : vector<8xf32>
    %144 = vector.multi_reduction <maximumf>, %143, %cst_58 [1] : vector<8x16xf32> to vector<8xf32>
    %145 = vector.shape_cast %144 : vector<8xf32> to vector<8x1xf32>
    %146 = vector.broadcast %145 : vector<8x1xf32> to vector<8x16xf32>
    %147 = arith.subf %143, %146 : vector<8x16xf32>
    %148 = math.exp %147 : vector<8x16xf32>
    %cst_59 = arith.constant dense<0.000000e+00> : vector<8xf32>
    %149 = vector.multi_reduction <add>, %148, %cst_59 [1] : vector<8x16xf32> to vector<8xf32>
    %150 = vector.shape_cast %149 : vector<8xf32> to vector<8x1xf32>
    %151 = tpu.reciprocal %150 {approx = true} : vector<8x1xf32> -> vector<8x1xf32>
    %152 = vector.broadcast %151 : vector<8x1xf32> to vector<8x16xf32>
    %153 = arith.mulf %148, %152 : vector<8x16xf32>
    %cst_60 = arith.constant dense<0.000000e+00> : vector<8x8xf32>
    %154 = tpu.matmul %153, %119, %cst_60 {dimension_numbers = #tpu.dot_dimension_numbers<[1], [0], [0], [1], [0, 0, 1, 1], [], []>} : vector<8x16xf32>, vector<16x8xf32>, vector<8x8xf32> -> vector<8x8xf32>
    %155 = vector.extract_strided_slice %22 {offsets = [16, 0], sizes = [8, 32], strides = [1, 1]} : vector<32x32xf32> to vector<8x32xf32>
    %cst_61 = arith.constant dense<0.000000e+00> : vector<8x32xf32>
    %156 = tpu.matmul %154, %155, %cst_61 {dimension_numbers = #tpu.dot_dimension_numbers<[1], [0], [0], [1], [0, 0, 1, 1], [], []>} : vector<8x8xf32>, vector<8x32xf32>, vector<8x32xf32> -> vector<8x32xf32>
    %157 = arith.addf %113, %156 : vector<8x32xf32>
    %158 = vector.extract_strided_slice %8 {offsets = [0, 24], sizes = [8, 8], strides = [1, 1]} : vector<8x96xf32> to vector<8x8xf32>
    %159 = vector.extract_strided_slice %8 {offsets = [0, 56], sizes = [8, 8], strides = [1, 1]} : vector<8x96xf32> to vector<8x8xf32>
    %160 = vector.extract_strided_slice %8 {offsets = [0, 88], sizes = [8, 8], strides = [1, 1]} : vector<8x96xf32> to vector<8x8xf32>
    %161 = vector.extract_strided_slice %13 {offsets = [0, 24], sizes = [16, 8], strides = [1, 1]} : vector<16x96xf32> to vector<16x8xf32>
    %162 = vector.extract_strided_slice %13 {offsets = [0, 56], sizes = [16, 8], strides = [1, 1]} : vector<16x96xf32> to vector<16x8xf32>
    %163 = vector.extract_strided_slice %13 {offsets = [0, 88], sizes = [16, 8], strides = [1, 1]} : vector<16x96xf32> to vector<16x8xf32>
    %164 = tpu.transpose %159, [1, 0] : vector<8x8xf32> -> vector<8x8xf32>
    %cst_62 = arith.constant dense<0.000000e+00> : vector<16x8xf32>
    %165 = tpu.matmul %161, %164, %cst_62 {dimension_numbers = #tpu.dot_dimension_numbers<[1], [0], [0], [1], [0, 0, 1, 1], [], []>} : vector<16x8xf32>, vector<8x8xf32>, vector<16x8xf32> -> vector<16x8xf32>
    %cst_63 = arith.constant 0.353553385 : f32
    %166 = vector.broadcast %cst_63 : f32 to vector<16x8xf32>
    %167 = arith.mulf %165, %166 : vector<16x8xf32>
    %168 = arith.addf %167, %17 : vector<16x8xf32>
    %cst_64 = arith.constant dense<0xFF800000> : vector<16xf32>
    %169 = vector.multi_reduction <maximumf>, %168, %cst_64 [1] : vector<16x8xf32> to vector<16xf32>
    %170 = vector.shape_cast %169 : vector<16xf32> to vector<16x1xf32>
    %171 = vector.broadcast %170 : vector<16x1xf32> to vector<16x8xf32>
    %172 = arith.subf %168, %171 : vector<16x8xf32>
    %173 = math.exp %172 : vector<16x8xf32>
    %cst_65 = arith.constant dense<0.000000e+00> : vector<16xf32>
    %174 = vector.multi_reduction <add>, %173, %cst_65 [1] : vector<16x8xf32> to vector<16xf32>
    %175 = vector.shape_cast %174 : vector<16xf32> to vector<16x1xf32>
    %176 = tpu.reciprocal %175 {approx = true} : vector<16x1xf32> -> vector<16x1xf32>
    %177 = vector.broadcast %176 : vector<16x1xf32> to vector<16x8xf32>
    %178 = arith.mulf %173, %177 : vector<16x8xf32>
    %cst_66 = arith.constant dense<0.000000e+00> : vector<16x8xf32>
    %179 = tpu.matmul %178, %160, %cst_66 {dimension_numbers = #tpu.dot_dimension_numbers<[1], [0], [0], [1], [0, 0, 1, 1], [], []>} : vector<16x8xf32>, vector<8x8xf32>, vector<16x8xf32> -> vector<16x8xf32>
    %180 = vector.extract_strided_slice %23 {offsets = [24, 0], sizes = [8, 48], strides = [1, 1]} : vector<32x48xf32> to vector<8x48xf32>
    %cst_67 = arith.constant dense<0.000000e+00> : vector<16x48xf32>
    %181 = tpu.matmul %179, %180, %cst_67 {dimension_numbers = #tpu.dot_dimension_numbers<[1], [0], [0], [1], [0, 0, 1, 1], [], []>} : vector<16x8xf32>, vector<8x48xf32>, vector<16x48xf32> -> vector<16x48xf32>
    %182 = arith.addf %138, %181 : vector<16x48xf32>
    %183 = tpu.transpose %162, [1, 0] : vector<16x8xf32> -> vector<8x16xf32>
    %cst_68 = arith.constant dense<0.000000e+00> : vector<8x16xf32>
    %184 = tpu.matmul %158, %183, %cst_68 {dimension_numbers = #tpu.dot_dimension_numbers<[1], [0], [0], [1], [0, 0, 1, 1], [], []>} : vector<8x8xf32>, vector<8x16xf32>, vector<8x16xf32> -> vector<8x16xf32>
    %cst_69 = arith.constant 0.353553385 : f32
    %185 = vector.broadcast %cst_69 : f32 to vector<8x16xf32>
    %186 = arith.mulf %184, %185 : vector<8x16xf32>
    %187 = arith.addf %186, %21 : vector<8x16xf32>
    %cst_70 = arith.constant dense<0xFF800000> : vector<8xf32>
    %188 = vector.multi_reduction <maximumf>, %187, %cst_70 [1] : vector<8x16xf32> to vector<8xf32>
    %189 = vector.shape_cast %188 : vector<8xf32> to vector<8x1xf32>
    %190 = vector.broadcast %189 : vector<8x1xf32> to vector<8x16xf32>
    %191 = arith.subf %187, %190 : vector<8x16xf32>
    %192 = math.exp %191 : vector<8x16xf32>
    %cst_71 = arith.constant dense<0.000000e+00> : vector<8xf32>
    %193 = vector.multi_reduction <add>, %192, %cst_71 [1] : vector<8x16xf32> to vector<8xf32>
    %194 = vector.shape_cast %193 : vector<8xf32> to vector<8x1xf32>
    %195 = tpu.reciprocal %194 {approx = true} : vector<8x1xf32> -> vector<8x1xf32>
    %196 = vector.broadcast %195 : vector<8x1xf32> to vector<8x16xf32>
    %197 = arith.mulf %192, %196 : vector<8x16xf32>
    %cst_72 = arith.constant dense<0.000000e+00> : vector<8x8xf32>
    %198 = tpu.matmul %197, %163, %cst_72 {dimension_numbers = #tpu.dot_dimension_numbers<[1], [0], [0], [1], [0, 0, 1, 1], [], []>} : vector<8x16xf32>, vector<16x8xf32>, vector<8x8xf32> -> vector<8x8xf32>
    %199 = vector.extract_strided_slice %22 {offsets = [24, 0], sizes = [8, 32], strides = [1, 1]} : vector<32x32xf32> to vector<8x32xf32>
    %cst_73 = arith.constant dense<0.000000e+00> : vector<8x32xf32>
    %200 = tpu.matmul %198, %199, %cst_73 {dimension_numbers = #tpu.dot_dimension_numbers<[1], [0], [0], [1], [0, 0, 1, 1], [], []>} : vector<8x8xf32>, vector<8x32xf32>, vector<8x32xf32> -> vector<8x32xf32>
    %201 = arith.addf %157, %200 : vector<8x32xf32>
    %c0_74 = arith.constant 0 : index
    %c0_75 = arith.constant 0 : index
    %202 = vector.load %arg10[%c0_74, %c0_75] : memref<1x32xf32, #tpu.memory_space<vmem>>, vector<1x32xf32>
    %203 = vector.broadcast %202 : vector<1x32xf32> to vector<8x32xf32>
    %204 = arith.addf %201, %203 : vector<8x32xf32>
    %205 = arith.addf %204, %1 : vector<8x32xf32>
    %c0_76 = arith.constant 0 : index
    %c0_77 = arith.constant 0 : index
    %206 = vector.load %arg11[%c0_76, %c0_77] : memref<1x32xf32, #tpu.memory_space<vmem>>, vector<1x32xf32>
    %c0_78 = arith.constant 0 : index
    %c0_79 = arith.constant 0 : index
    %207 = vector.load %arg12[%c0_78, %c0_79] : memref<1x32xf32, #tpu.memory_space<vmem>>, vector<1x32xf32>
    %cst_80 = arith.constant dense<0.000000e+00> : vector<8xf32>
    %208 = vector.multi_reduction <add>, %205, %cst_80 [1] : vector<8x32xf32> to vector<8xf32>
    %209 = vector.shape_cast %208 : vector<8xf32> to vector<8x1xf32>
    %cst_81 = arith.constant 3.200000e+01 : f32
    %210 = vector.broadcast %cst_81 : f32 to vector<8x1xf32>
    %211 = arith.divf %209, %210 : vector<8x1xf32>
    %212 = vector.broadcast %211 : vector<8x1xf32> to vector<8x32xf32>
    %213 = arith.subf %205, %212 : vector<8x32xf32>
    %214 = arith.mulf %213, %213 : vector<8x32xf32>
    %cst_82 = arith.constant dense<0.000000e+00> : vector<8xf32>
    %215 = vector.multi_reduction <add>, %214, %cst_82 [1] : vector<8x32xf32> to vector<8xf32>
    %216 = vector.shape_cast %215 : vector<8xf32> to vector<8x1xf32>
    %cst_83 = arith.constant 3.200000e+01 : f32
    %217 = vector.broadcast %cst_83 : f32 to vector<8x1xf32>
    %218 = arith.divf %216, %217 : vector<8x1xf32>
    %cst_84 = arith.constant 9.99999996E-13 : f32
    %219 = vector.broadcast %cst_84 : f32 to vector<8x1xf32>
    %220 = arith.addf %218, %219 : vector<8x1xf32>
    %221 = math.rsqrt %220 : vector<8x1xf32>
    %222 = vector.broadcast %221 : vector<8x1xf32> to vector<8x32xf32>
    %223 = arith.mulf %213, %222 : vector<8x32xf32>
    %224 = vector.broadcast %206 : vector<1x32xf32> to vector<8x32xf32>
    %225 = arith.mulf %223, %224 : vector<8x32xf32>
    %226 = vector.broadcast %207 : vector<1x32xf32> to vector<8x32xf32>
    %227 = arith.addf %225, %226 : vector<8x32xf32>
    %c0_85 = arith.constant 0 : index
    %c0_86 = arith.constant 0 : index
    %228 = vector.load %arg14[%c0_85, %c0_86] : memref<1x48xf32, #tpu.memory_space<vmem>>, vector<1x48xf32>
    %229 = vector.broadcast %228 : vector<1x48xf32> to vector<16x48xf32>
    %230 = arith.addf %182, %229 : vector<16x48xf32>
    %231 = arith.addf %230, %3 : vector<16x48xf32>
    %c0_87 = arith.constant 0 : index
    %c0_88 = arith.constant 0 : index
    %232 = vector.load %arg15[%c0_87, %c0_88] : memref<1x48xf32, #tpu.memory_space<vmem>>, vector<1x48xf32>
    %c0_89 = arith.constant 0 : index
    %c0_90 = arith.constant 0 : index
    %233 = vector.load %arg16[%c0_89, %c0_90] : memref<1x48xf32, #tpu.memory_space<vmem>>, vector<1x48xf32>
    %cst_91 = arith.constant dense<0.000000e+00> : vector<16xf32>
    %234 = vector.multi_reduction <add>, %231, %cst_91 [1] : vector<16x48xf32> to vector<16xf32>
    %235 = vector.shape_cast %234 : vector<16xf32> to vector<16x1xf32>
    %cst_92 = arith.constant 4.800000e+01 : f32
    %236 = vector.broadcast %cst_92 : f32 to vector<16x1xf32>
    %237 = arith.divf %235, %236 : vector<16x1xf32>
    %238 = vector.broadcast %237 : vector<16x1xf32> to vector<16x48xf32>
    %239 = arith.subf %231, %238 : vector<16x48xf32>
    %240 = arith.mulf %239, %239 : vector<16x48xf32>
    %cst_93 = arith.constant dense<0.000000e+00> : vector<16xf32>
    %241 = vector.multi_reduction <add>, %240, %cst_93 [1] : vector<16x48xf32> to vector<16xf32>
    %242 = vector.shape_cast %241 : vector<16xf32> to vector<16x1xf32>
    %cst_94 = arith.constant 4.800000e+01 : f32
    %243 = vector.broadcast %cst_94 : f32 to vector<16x1xf32>
    %244 = arith.divf %242, %243 : vector<16x1xf32>
    %cst_95 = arith.constant 9.99999996E-13 : f32
    %245 = vector.broadcast %cst_95 : f32 to vector<16x1xf32>
    %246 = arith.addf %244, %245 : vector<16x1xf32>
    %247 = math.rsqrt %246 : vector<16x1xf32>
    %248 = vector.broadcast %247 : vector<16x1xf32> to vector<16x48xf32>
    %249 = arith.mulf %239, %248 : vector<16x48xf32>
    %250 = vector.broadcast %232 : vector<1x48xf32> to vector<16x48xf32>
    %251 = arith.mulf %249, %250 : vector<16x48xf32>
    %252 = vector.broadcast %233 : vector<1x48xf32> to vector<16x48xf32>
    %253 = arith.addf %251, %252 : vector<16x48xf32>
    %c0_96 = arith.constant 0 : index
    %c0_97 = arith.constant 0 : index
    %254 = vector.load %arg17[%c0_96, %c0_97] : memref<32x64xf32, #tpu.memory_space<vmem>>, vector<32x64xf32>
    %cst_98 = arith.constant dense<0.000000e+00> : vector<8x64xf32>
    %255 = tpu.matmul %227, %254, %cst_98 {dimension_numbers = #tpu.dot_dimension_numbers<[1], [0], [0], [1], [0, 0, 1, 1], [], []>} : vector<8x32xf32>, vector<32x64xf32>, vector<8x64xf32> -> vector<8x64xf32>
    %c0_99 = arith.constant 0 : index
    %c0_100 = arith.constant 0 : index
    %256 = vector.load %arg18[%c0_99, %c0_100] : memref<1x64xf32, #tpu.memory_space<vmem>>, vector<1x64xf32>
    %257 = vector.broadcast %256 : vector<1x64xf32> to vector<8x64xf32>
    %258 = arith.addf %255, %257 : vector<8x64xf32>
    %cst_101 = arith.constant 5.000000e-01 : f32
    %259 = vector.broadcast %cst_101 : f32 to vector<8x64xf32>
    %260 = arith.mulf %259, %258 : vector<8x64xf32>
    %261 = arith.mulf %258, %258 : vector<8x64xf32>
    %262 = arith.mulf %261, %258 : vector<8x64xf32>
    %cst_102 = arith.constant 4.471500e-02 : f32
    %263 = vector.broadcast %cst_102 : f32 to vector<8x64xf32>
    %264 = arith.mulf %263, %262 : vector<8x64xf32>
    %265 = arith.addf %258, %264 : vector<8x64xf32>
    %cst_103 = arith.constant 0.797884583 : f32
    %266 = vector.broadcast %cst_103 : f32 to vector<8x64xf32>
    %267 = arith.mulf %266, %265 : vector<8x64xf32>
    %268 = math.tanh %267 : vector<8x64xf32>
    %cst_104 = arith.constant 1.000000e+00 : f32
    %269 = vector.broadcast %cst_104 : f32 to vector<8x64xf32>
    %270 = arith.addf %269, %268 : vector<8x64xf32>
    %271 = arith.mulf %260, %270 : vector<8x64xf32>
    %c0_105 = arith.constant 0 : index
    %c0_106 = arith.constant 0 : index
    %272 = vector.load %arg19[%c0_105, %c0_106] : memref<64x32xf32, #tpu.memory_space<vmem>>, vector<64x32xf32>
    %cst_107 = arith.constant dense<0.000000e+00> : vector<8x32xf32>
    %273 = tpu.matmul %271, %272, %cst_107 {dimension_numbers = #tpu.dot_dimension_numbers<[1], [0], [0], [1], [0, 0, 1, 1], [], []>} : vector<8x64xf32>, vector<64x32xf32>, vector<8x32xf32> -> vector<8x32xf32>
    %c0_108 = arith.constant 0 : index
    %c0_109 = arith.constant 0 : index
    %274 = vector.load %arg20[%c0_108, %c0_109] : memref<1x32xf32, #tpu.memory_space<vmem>>, vector<1x32xf32>
    %275 = vector.broadcast %274 : vector<1x32xf32> to vector<8x32xf32>
    %276 = arith.addf %273, %275 : vector<8x32xf32>
    %277 = arith.addf %276, %227 : vector<8x32xf32>
    %c0_110 = arith.constant 0 : index
    %c0_111 = arith.constant 0 : index
    %278 = vector.load %arg21[%c0_110, %c0_111] : memref<1x32xf32, #tpu.memory_space<vmem>>, vector<1x32xf32>
    %c0_112 = arith.constant 0 : index
    %c0_113 = arith.constant 0 : index
    %279 = vector.load %arg22[%c0_112, %c0_113] : memref<1x32xf32, #tpu.memory_space<vmem>>, vector<1x32xf32>
    %cst_114 = arith.constant dense<0.000000e+00> : vector<8xf32>
    %280 = vector.multi_reduction <add>, %277, %cst_114 [1] : vector<8x32xf32> to vector<8xf32>
    %281 = vector.shape_cast %280 : vector<8xf32> to vector<8x1xf32>
    %cst_115 = arith.constant 3.200000e+01 : f32
    %282 = vector.broadcast %cst_115 : f32 to vector<8x1xf32>
    %283 = arith.divf %281, %282 : vector<8x1xf32>
    %284 = vector.broadcast %283 : vector<8x1xf32> to vector<8x32xf32>
    %285 = arith.subf %277, %284 : vector<8x32xf32>
    %286 = arith.mulf %285, %285 : vector<8x32xf32>
    %cst_116 = arith.constant dense<0.000000e+00> : vector<8xf32>
    %287 = vector.multi_reduction <add>, %286, %cst_116 [1] : vector<8x32xf32> to vector<8xf32>
    %288 = vector.shape_cast %287 : vector<8xf32> to vector<8x1xf32>
    %cst_117 = arith.constant 3.200000e+01 : f32
    %289 = vector.broadcast %cst_117 : f32 to vector<8x1xf32>
    %290 = arith.divf %288, %289 : vector<8x1xf32>
    %cst_118 = arith.constant 9.99999996E-13 : f32
    %291 = vector.broadcast %cst_118 : f32 to vector<8x1xf32>
    %292 = arith.addf %290, %291 : vector<8x1xf32>
    %293 = math.rsqrt %292 : vector<8x1xf32>
    %294 = vector.broadcast %293 : vector<8x1xf32> to vector<8x32xf32>
    %295 = arith.mulf %285, %294 : vector<8x32xf32>
    %296 = vector.broadcast %278 : vector<1x32xf32> to vector<8x32xf32>
    %297 = arith.mulf %295, %296 : vector<8x32xf32>
    %298 = vector.broadcast %279 : vector<1x32xf32> to vector<8x32xf32>
    %299 = arith.addf %297, %298 : vector<8x32xf32>
    %c0_119 = arith.constant 0 : index
    %c0_120 = arith.constant 0 : index
    %300 = vector.load %arg23[%c0_119, %c0_120] : memref<48x96xf32, #tpu.memory_space<vmem>>, vector<48x96xf32>
    %cst_121 = arith.constant dense<0.000000e+00> : vector<16x96xf32>
    %301 = tpu.matmul %253, %300, %cst_121 {dimension_numbers = #tpu.dot_dimension_numbers<[1], [0], [0], [1], [0, 0, 1, 1], [], []>} : vector<16x48xf32>, vector<48x96xf32>, vector<16x96xf32> -> vector<16x96xf32>
    %c0_122 = arith.constant 0 : index
    %c0_123 = arith.constant 0 : index
    %302 = vector.load %arg24[%c0_122, %c0_123] : memref<1x96xf32, #tpu.memory_space<vmem>>, vector<1x96xf32>
    %303 = vector.broadcast %302 : vector<1x96xf32> to vector<16x96xf32>
    %304 = arith.addf %301, %303 : vector<16x96xf32>
    %cst_124 = arith.constant 5.000000e-01 : f32
    %305 = vector.broadcast %cst_124 : f32 to vector<16x96xf32>
    %306 = arith.mulf %305, %304 : vector<16x96xf32>
    %307 = arith.mulf %304, %304 : vector<16x96xf32>
    %308 = arith.mulf %307, %304 : vector<16x96xf32>
    %cst_125 = arith.constant 4.471500e-02 : f32
    %309 = vector.broadcast %cst_125 : f32 to vector<16x96xf32>
    %310 = arith.mulf %309, %308 : vector<16x96xf32>
    %311 = arith.addf %304, %310 : vector<16x96xf32>
    %cst_126 = arith.constant 0.797884583 : f32
    %312 = vector.broadcast %cst_126 : f32 to vector<16x96xf32>
    %313 = arith.mulf %312, %311 : vector<16x96xf32>
    %314 = math.tanh %313 : vector<16x96xf32>
    %cst_127 = arith.constant 1.000000e+00 : f32
    %315 = vector.broadcast %cst_127 : f32 to vector<16x96xf32>
    %316 = arith.addf %315, %314 : vector<16x96xf32>
    %317 = arith.mulf %306, %316 : vector<16x96xf32>
    %c0_128 = arith.constant 0 : index
    %c0_129 = arith.constant 0 : index
    %318 = vector.load %arg25[%c0_128, %c0_129] : memref<96x48xf32, #tpu.memory_space<vmem>>, vector<96x48xf32>
    %cst_130 = arith.constant dense<0.000000e+00> : vector<16x48xf32>
    %319 = tpu.matmul %317, %318, %cst_130 {dimension_numbers = #tpu.dot_dimension_numbers<[1], [0], [0], [1], [0, 0, 1, 1], [], []>} : vector<16x96xf32>, vector<96x48xf32>, vector<16x48xf32> -> vector<16x48xf32>
    %c0_131 = arith.constant 0 : index
    %c0_132 = arith.constant 0 : index
    %320 = vector.load %arg26[%c0_131, %c0_132] : memref<1x48xf32, #tpu.memory_space<vmem>>, vector<1x48xf32>
    %321 = vector.broadcast %320 : vector<1x48xf32> to vector<16x48xf32>
    %322 = arith.addf %319, %321 : vector<16x48xf32>
    %323 = arith.addf %322, %253 : vector<16x48xf32>
    %c0_133 = arith.constant 0 : index
    %c0_134 = arith.constant 0 : index
    %324 = vector.load %arg27[%c0_133, %c0_134] : memref<1x48xf32, #tpu.memory_space<vmem>>, vector<1x48xf32>
    %c0_135 = arith.constant 0 : index
    %c0_136 = arith.constant 0 : index
    %325 = vector.load %arg28[%c0_135, %c0_136] : memref<1x48xf32, #tpu.memory_space<vmem>>, vector<1x48xf32>
    %cst_137 = arith.constant dense<0.000000e+00> : vector<16xf32>
    %326 = vector.multi_reduction <add>, %323, %cst_137 [1] : vector<16x48xf32> to vector<16xf32>
    %327 = vector.shape_cast %326 : vector<16xf32> to vector<16x1xf32>
    %cst_138 = arith.constant 4.800000e+01 : f32
    %328 = vector.broadcast %cst_138 : f32 to vector<16x1xf32>
    %329 = arith.divf %327, %328 : vector<16x1xf32>
    %330 = vector.broadcast %329 : vector<16x1xf32> to vector<16x48xf32>
    %331 = arith.subf %323, %330 : vector<16x48xf32>
    %332 = arith.mulf %331, %331 : vector<16x48xf32>
    %cst_139 = arith.constant dense<0.000000e+00> : vector<16xf32>
    %333 = vector.multi_reduction <add>, %332, %cst_139 [1] : vector<16x48xf32> to vector<16xf32>
    %334 = vector.shape_cast %333 : vector<16xf32> to vector<16x1xf32>
    %cst_140 = arith.constant 4.800000e+01 : f32
    %335 = vector.broadcast %cst_140 : f32 to vector<16x1xf32>
    %336 = arith.divf %334, %335 : vector<16x1xf32>
    %cst_141 = arith.constant 9.99999996E-13 : f32
    %337 = vector.broadcast %cst_141 : f32 to vector<16x1xf32>
    %338 = arith.addf %336, %337 : vector<16x1xf32>
    %339 = math.rsqrt %338 : vector<16x1xf32>
    %340 = vector.broadcast %339 : vector<16x1xf32> to vector<16x48xf32>
    %341 = arith.mulf %331, %340 : vector<16x48xf32>
    %342 = vector.broadcast %324 : vector<1x48xf32> to vector<16x48xf32>
    %343 = arith.mulf %341, %342 : vector<16x48xf32>
    %344 = vector.broadcast %325 : vector<1x48xf32> to vector<16x48xf32>
    %345 = arith.addf %343, %344 : vector<16x48xf32>
    %c0_142 = arith.constant 0 : index
    %c0_143 = arith.constant 0 : index
    %c0_144 = arith.constant 0 : index
    %346 = vector.load %arg29[%c0_142, %c0_143, %c0_144] : memref<1x8x32xf32, #tpu.memory_space<vmem>>, vector<1x8x32xf32>
    %347 = vector.shape_cast %346 : vector<1x8x32xf32> to vector<8x32xf32>
    %348 = vector.shape_cast %299 : vector<8x32xf32> to vector<1x8x32xf32>
    tpu.vector_store %arg29[%c0_142, %c0_143, %c0_144], %348 {strides = array<i32>} : memref<1x8x32xf32, #tpu.memory_space<vmem>>, vector<1x8x32xf32>,
    %c0_145 = arith.constant 0 : index
    %c0_146 = arith.constant 0 : index
    %c0_147 = arith.constant 0 : index
    %349 = vector.load %arg30[%c0_145, %c0_146, %c0_147] : memref<1x16x48xf32, #tpu.memory_space<vmem>>, vector<1x16x48xf32>
    %350 = vector.shape_cast %349 : vector<1x16x48xf32> to vector<16x48xf32>
    %351 = vector.shape_cast %345 : vector<16x48xf32> to vector<1x16x48xf32>
    tpu.vector_store %arg30[%c0_145, %c0_146, %c0_147], %351 {strides = array<i32>} : memref<1x16x48xf32, #tpu.memory_space<vmem>>, vector<1x16x48xf32>,
    return
  }
  func.func @transform_0(%arg0: i32) -> (i32, i32, i32) {
    %c0_i32 = arith.constant 0 : i32
    %c0_i32_0 = arith.constant 0 : i32
    %c0_i32_1 = arith.constant 0 : i32
    return %arg0, %c0_i32, %c0_i32_0 : i32, i32, i32
  }
  func.func @transform_1(%arg0: i32) -> (i32, i32, i32) {
    %c0_i32 = arith.constant 0 : i32
    %c0_i32_0 = arith.constant 0 : i32
    %c0_i32_1 = arith.constant 0 : i32
    return %arg0, %c0_i32, %c0_i32_0 : i32, i32, i32
  }
  func.func @transform_2(%arg0: i32) -> (i32, i32, i32) {
    %c0_i32 = arith.constant 0 : i32
    %c0_i32_0 = arith.constant 0 : i32
    %c0_i32_1 = arith.constant 0 : i32
    return %arg0, %c0_i32, %c0_i32_0 : i32, i32, i32
  }
  func.func @transform_3(%arg0: i32) -> (i32, i32, i32) {
    %c0_i32 = arith.constant 0 : i32
    %c0_i32_0 = arith.constant 0 : i32
    %c0_i32_1 = arith.constant 0 : i32
    return %arg0, %c0_i32, %c0_i32_0 : i32, i32, i32
  }
  func.func @transform_4(%arg0: i32) -> (i32, i32) {
    %c0_i32 = arith.constant 0 : i32
    %c0_i32_0 = arith.constant 0 : i32
    %c0_i32_1 = arith.constant 0 : i32
    return %c0_i32, %c0_i32_0 : i32, i32
  }
  func.func @transform_5(%arg0: i32) -> (i32, i32) {
    %c0_i32 = arith.constant 0 : i32
    %c0_i32_0 = arith.constant 0 : i32
    %c0_i32_1 = arith.constant 0 : i32
    return %c0_i32, %c0_i32_0 : i32, i32
  }
  func.func @transform_6(%arg0: i32) -> (i32, i32) {
    %c0_i32 = arith.constant 0 : i32
    %c0_i32_0 = arith.constant 0 : i32
    %c0_i32_1 = arith.constant 0 : i32
    return %c0_i32, %c0_i32_0 : i32, i32
  }
  func.func @transform_7(%arg0: i32) -> (i32, i32) {
    %c0_i32 = arith.constant 0 : i32
    %c0_i32_0 = arith.constant 0 : i32
    %c0_i32_1 = arith.constant 0 : i32
    return %c0_i32, %c0_i32_0 : i32, i32
  }
  func.func @transform_8(%arg0: i32) -> (i32, i32) {
    %c0_i32 = arith.constant 0 : i32
    %c0_i32_0 = arith.constant 0 : i32
    %c0_i32_1 = arith.constant 0 : i32
    return %c0_i32, %c0_i32_0 : i32, i32
  }
  func.func @transform_9(%arg0: i32) -> (i32, i32) {
    %c0_i32 = arith.constant 0 : i32
    %c0_i32_0 = arith.constant 0 : i32
    %c0_i32_1 = arith.constant 0 : i32
    return %c0_i32, %c0_i32_0 : i32, i32
  }
  func.func @transform_10(%arg0: i32) -> (i32, i32) {
    %c0_i32 = arith.constant 0 : i32
    %c0_i32_0 = arith.constant 0 : i32
    %c0_i32_1 = arith.constant 0 : i32
    return %c0_i32, %c0_i32_0 : i32, i32
  }
  func.func @transform_11(%arg0: i32) -> (i32, i32) {
    %c0_i32 = arith.constant 0 : i32
    %c0_i32_0 = arith.constant 0 : i32
    %c0_i32_1 = arith.constant 0 : i32
    return %c0_i32, %c0_i32_0 : i32, i32
  }
  func.func @transform_12(%arg0: i32) -> (i32, i32) {
    %c0_i32 = arith.constant 0 : i32
    %c0_i32_0 = arith.constant 0 : i32
    %c0_i32_1 = arith.constant 0 : i32
    return %c0_i32, %c0_i32_0 : i32, i32
  }
  func.func @transform_13(%arg0: i32) -> (i32, i32) {
    %c0_i32 = arith.constant 0 : i32
    %c0_i32_0 = arith.constant 0 : i32
    %c0_i32_1 = arith.constant 0 : i32
    return %c0_i32, %c0_i32_0 : i32, i32
  }
  func.func @transform_14(%arg0: i32) -> (i32, i32) {
    %c0_i32 = arith.constant 0 : i32
    %c0_i32_0 = arith.constant 0 : i32
    %c0_i32_1 = arith.constant 0 : i32
    return %c0_i32, %c0_i32_0 : i32, i32
  }
  func.func @transform_15(%arg0: i32) -> (i32, i32) {
    %c0_i32 = arith.constant 0 : i32
    %c0_i32_0 = arith.constant 0 : i32
    %c0_i32_1 = arith.constant 0 : i32
    return %c0_i32, %c0_i32_0 : i32, i32
  }
  func.func @transform_16(%arg0: i32) -> (i32, i32) {
    %c0_i32 = arith.constant 0 : i32
    %c0_i32_0 = arith.constant 0 : i32
    %c0_i32_1 = arith.constant 0 : i32
    return %c0_i32, %c0_i32_0 : i32, i32
  }
  func.func @transform_17(%arg0: i32) -> (i32, i32) {
    %c0_i32 = arith.constant 0 : i32
    %c0_i32_0 = arith.constant 0 : i32
    %c0_i32_1 = arith.constant 0 : i32
    return %c0_i32, %c0_i32_0 : i32, i32
  }
  func.func @transform_18(%arg0: i32) -> (i32, i32) {
    %c0_i32 = arith.constant 0 : i32
    %c0_i32_0 = arith.constant 0 : i32
    %c0_i32_1 = arith.constant 0 : i32
    return %c0_i32, %c0_i32_0 : i32, i32
  }
  func.func @transform_19(%arg0: i32) -> (i32, i32) {
    %c0_i32 = arith.constant 0 : i32
    %c0_i32_0 = arith.constant 0 : i32
    %c0_i32_1 = arith.constant 0 : i32
    return %c0_i32, %c0_i32_0 : i32, i32
  }
  func.func @transform_20(%arg0: i32) -> (i32, i32) {
    %c0_i32 = arith.constant 0 : i32
    %c0_i32_0 = arith.constant 0 : i32
    %c0_i32_1 = arith.constant 0 : i32
    return %c0_i32, %c0_i32_0 : i32, i32
  }
  func.func @transform_21(%arg0: i32) -> (i32, i32) {
    %c0_i32 = arith.constant 0 : i32
    %c0_i32_0 = arith.constant 0 : i32
    %c0_i32_1 = arith.constant 0 : i32
    return %c0_i32, %c0_i32_0 : i32, i32
  }
  func.func @transform_22(%arg0: i32) -> (i32, i32) {
    %c0_i32 = arith.constant 0 : i32
    %c0_i32_0 = arith.constant 0 : i32
    %c0_i32_1 = arith.constant 0 : i32
    return %c0_i32, %c0_i32_0 : i32, i32
  }
  func.func @transform_23(%arg0: i32) -> (i32, i32) {
    %c0_i32 = arith.constant 0 : i32
    %c0_i32_0 = arith.constant 0 : i32
    %c0_i32_1 = arith.constant 0 : i32
    return %c0_i32, %c0_i32_0 : i32, i32
  }
  func.func @transform_24(%arg0: i32) -> (i32, i32) {
    %c0_i32 = arith.constant 0 : i32
    %c0_i32_0 = arith.constant 0 : i32
    %c0_i32_1 = arith.constant 0 : i32
    return %c0_i32, %c0_i32_0 : i32, i32
  }
  func.func @transform_25(%arg0: i32) -> (i32, i32) {
    %c0_i32 = arith.constant 0 : i32
    %c0_i32_0 = arith.constant 0 : i32
    %c0_i32_1 = arith.constant 0 : i32
    return %c0_i32, %c0_i32_0 : i32, i32
  }
  func.func @transform_26(%arg0: i32) -> (i32, i32) {
    %c0_i32 = arith.constant 0 : i32
    %c0_i32_0 = arith.constant 0 : i32
    %c0_i32_1 = arith.constant 0 : i32
    return %c0_i32, %c0_i32_0 : i32, i32
  }
  func.func @transform_27(%arg0: i32) -> (i32, i32) {
    %c0_i32 = arith.constant 0 : i32
    %c0_i32_0 = arith.constant 0 : i32
    %c0_i32_1 = arith.constant 0 : i32
    return %c0_i32, %c0_i32_0 : i32, i32
  }
  func.func @transform_28(%arg0: i32) -> (i32, i32, i32) {
    %c0_i32 = arith.constant 0 : i32
    %c0_i32_0 = arith.constant 0 : i32
    %c0_i32_1 = arith.constant 0 : i32
    return %arg0, %c0_i32, %c0_i32_0 : i32, i32, i32
  }
  func.func @transform_29(%arg0: i32) -> (i32, i32, i32) {
    %c0_i32 = arith.constant 0 : i32
    %c0_i32_0 = arith.constant 0 : i32
    %c0_i32_1 = arith.constant 0 : i32
    return %arg0, %c0_i32, %c0_i32_0 : i32, i32, i32
  }
}

</mosaic_0001>

<llo_original>
// kernel: bert_connection_layer.1
$region0: #{bert_connection_layer.1}
  #allocation0 [shape = 'u32[]', space=smem, size = 0x4, offset = 0x4, fixed_abs, tag = 'smem constant byte address 0x4 - core index']
  #allocation1 [shape = 'u32[144,128]{1,0:T(1,128)}', space=vmem, size = 0x12000, scoped, tag = 'internal scratch']
  %s0 = inlined_call_operand.smem [shape: u32[30], index: -1, kind: input, shape index: {}]
  %s1 = sld [smem:[%s0]]
  %s2 = scalar_lea.smem %s0, 1
  %s3 = sld [smem:[%s2]]
  %s4 = scalar_lea.smem %s0, 2
  %s5 = sld [smem:[%s4]]
  %s6 = scalar_lea.smem %s0, 3
  %s7 = sld [smem:[%s6]]
  %s8 = scalar_lea.smem %s0, 4
  %s9 = sld [smem:[%s8]]
  %s10 = scalar_lea.smem %s0, 5
  %s11 = sld [smem:[%s10]]
  %s12 = scalar_lea.smem %s0, 6
  %s13 = sld [smem:[%s12]]
  %s14 = scalar_lea.smem %s0, 7
  %s15 = sld [smem:[%s14]]
  %s16 = scalar_lea.smem %s0, 8
  %s17 = sld [smem:[%s16]]
  %s18 = scalar_lea.smem %s0, 9
  %s19 = sld [smem:[%s18]]
  %s20 = scalar_lea.smem %s0, 10
  %s21 = sld [smem:[%s20]]
  %s22 = scalar_lea.smem %s0, 11
  %s23 = sld [smem:[%s22]]
  %s24 = scalar_lea.smem %s0, 12
  %s25 = sld [smem:[%s24]]
  %s26 = scalar_lea.smem %s0, 13
  %s27 = sld [smem:[%s26]]
  %s28 = scalar_lea.smem %s0, 14
  %s29 = sld [smem:[%s28]]
  %s30 = scalar_lea.smem %s0, 15
  %s31 = sld [smem:[%s30]]
  %s32 = scalar_lea.smem %s0, 16
  %s33 = sld [smem:[%s32]]
  %s34 = scalar_lea.smem %s0, 17
  %s35 = sld [smem:[%s34]]
  %s36 = scalar_lea.smem %s0, 18
  %s37 = sld [smem:[%s36]]
  %s38 = scalar_lea.smem %s0, 19
  %s39 = sld [smem:[%s38]]
  %s40 = scalar_lea.smem %s0, 20
  %s41 = sld [smem:[%s40]]
  %s42 = scalar_lea.smem %s0, 21
  %s43 = sld [smem:[%s42]]
  %s44 = scalar_lea.smem %s0, 22
  %s45 = sld [smem:[%s44]]
  %s46 = scalar_lea.smem %s0, 23
  %s47 = sld [smem:[%s46]]
  %s48 = scalar_lea.smem %s0, 24
  %s49 = sld [smem:[%s48]]
  %s50 = scalar_lea.smem %s0, 25
  %s51 = sld [smem:[%s50]]
  %s52 = scalar_lea.smem %s0, 26
  %s53 = sld [smem:[%s52]]
  %s54 = scalar_lea.smem %s0, 27
  %s55 = sld [smem:[%s54]]
  %s56 = scalar_lea.smem %s0, 28
  %s57 = sld [smem:[%s56]]
  %s58 = scalar_lea.smem %s0, 29
  %s59 = sld [smem:[%s58]]
  %60 = xla_tuple %s57, %s59
  %s61 = sld [smem:[#allocation0]]
  $region153: #{bert_connection_layer.1} parent=0
    _
  %s63 = ssub.s32 1, %s61
  %s64 = scalar_select 0, %s63, %s61
  $region1: #{bert_connection_layer.1} parent=0
    #allocation2 [shape = 'u8[8192]{0}', space=vmem, size = 0x2000, scoped, tag = 'output window, operand 0']
    #allocation3 [shape = 's32[2]{0}', space=sflag, size = 0x8, scoped, tag = 'scoped memory for bert_connection_layer.1']
    #allocation4 [shape = 'u8[16384]{0}', space=vmem, size = 0x4000, scoped, tag = 'output window, operand 1']
    #allocation5 [shape = 's32[2]{0}', space=sflag, size = 0x8, scoped, tag = 'scoped memory for bert_connection_layer.1']
    %65 = vsyncpa [#allocation3], 0
    %s66 = scalar_lea.sflag [#allocation3], 1
    %67 = vsyncpa %s66, 0
    %68 = vsyncpa [#allocation5], 0
    %s69 = scalar_lea.sflag [#allocation5], 1
    %70 = vsyncpa %s69, 0
    loop: start=0, step=1, limit=4
    $region2: #{bert_connection_layer.1} parent=1 // loop_pre_header
      _
    $region3: #{bert_connection_layer.1} parent=1 // loop_header
      %s72 = sphi 0, %s76
      %p73 = scmp.ge.s32.totalorder %s72, 4
      %s82 = sphi 0, %s84
      %s85 = sphi 0, %s82
      %s86 = sphi 0, %s85
      %s102 = sphi 0, %s86
      %s108 = sphi 0, %s110
      %s111 = sphi 0, %s108
      %s112 = sphi 0, %s111
      %s128 = sphi 0, %s112
      %s134 = sphi 0, %s136
      %s137 = sphi 0, %s134
      %s138 = sphi 0, %s137
      %s154 = sphi 0, %s138
      %s160 = sphi 0, %s162
      %s163 = sphi 0, %s160
      %s164 = sphi 0, %s163
      %s180 = sphi 0, %s164
      %s184 = sphi 0, %s184
      %s186 = sphi 0, %s184
      %s187 = sphi 0, %s186
      %s201 = sphi 0, %s187
      %s205 = sphi 0, %s205
      %s207 = sphi 0, %s205
      %s208 = sphi 0, %s207
      %s222 = sphi 0, %s208
      %s226 = sphi 0, %s226
      %s228 = sphi 0, %s226
      %s229 = sphi 0, %s228
      %s243 = sphi 0, %s229
      %s247 = sphi 0, %s247
      %s249 = sphi 0, %s247
      %s250 = sphi 0, %s249
      %s264 = sphi 0, %s250
      %s268 = sphi 0, %s268
      %s270 = sphi 0, %s268
      %s271 = sphi 0, %s270
      %s285 = sphi 0, %s271
      %s289 = sphi 0, %s289
      %s291 = sphi 0, %s289
      %s292 = sphi 0, %s291
      %s306 = sphi 0, %s292
      %s310 = sphi 0, %s310
      %s312 = sphi 0, %s310
      %s313 = sphi 0, %s312
      %s327 = sphi 0, %s313
      %s331 = sphi 0, %s331
      %s333 = sphi 0, %s331
      %s334 = sphi 0, %s333
      %s348 = sphi 0, %s334
      %s352 = sphi 0, %s352
      %s354 = sphi 0, %s352
      %s355 = sphi 0, %s354
      %s369 = sphi 0, %s355
      %s373 = sphi 0, %s373
      %s375 = sphi 0, %s373
      %s376 = sphi 0, %s375
      %s390 = sphi 0, %s376
      %s394 = sphi 0, %s394
      %s396 = sphi 0, %s394
      %s397 = sphi 0, %s396
      %s411 = sphi 0, %s397
      %s415 = sphi 0, %s415
      %s417 = sphi 0, %s415
      %s418 = sphi 0, %s417
      %s432 = sphi 0, %s418
      %s436 = sphi 0, %s436
      %s438 = sphi 0, %s436
      %s439 = sphi 0, %s438
      %s453 = sphi 0, %s439
      %s457 = sphi 0, %s457
      %s459 = sphi 0, %s457
      %s460 = sphi 0, %s459
      %s474 = sphi 0, %s460
      %s478 = sphi 0, %s478
      %s480 = sphi 0, %s478
      %s481 = sphi 0, %s480
      %s495 = sphi 0, %s481
      %s499 = sphi 0, %s499
      %s501 = sphi 0, %s499
      %s502 = sphi 0, %s501
      %s516 = sphi 0, %s502
      %s520 = sphi 0, %s520
      %s522 = sphi 0, %s520
      %s523 = sphi 0, %s522
      %s537 = sphi 0, %s523
      %s541 = sphi 0, %s541
      %s543 = sphi 0, %s541
      %s544 = sphi 0, %s543
      %s558 = sphi 0, %s544
      %s562 = sphi 0, %s562
      %s564 = sphi 0, %s562
      %s565 = sphi 0, %s564
      %s579 = sphi 0, %s565
      %s583 = sphi 0, %s583
      %s585 = sphi 0, %s583
      %s586 = sphi 0, %s585
      %s600 = sphi 0, %s586
      %s604 = sphi 0, %s604
      %s606 = sphi 0, %s604
      %s607 = sphi 0, %s606
      %s621 = sphi 0, %s607
      %s625 = sphi 0, %s625
      %s627 = sphi 0, %s625
      %s628 = sphi 0, %s627
      %s642 = sphi 0, %s628
      %s646 = sphi 0, %s646
      %s648 = sphi 0, %s646
      %s649 = sphi 0, %s648
      %s663 = sphi 0, %s649
      %s667 = sphi 0, %s667
      %s669 = sphi 0, %s667
      %s670 = sphi 0, %s669
      %s684 = sphi 0, %s670
      %s690 = sphi 0, %s692
      %s693 = sphi 0, %s690
      %s694 = sphi 0, %s693
      %s710 = sphi 0, %s694
      %s716 = sphi 0, %s718
      %s719 = sphi 0, %s716
      %s720 = sphi 0, %s719
      %s736 = sphi 0, %s720
    $region4: #{bert_connection_layer.1} parent=1 // loop_header_branch
      %75 = sbr.rel (%p73) target = $region8
    $region5: #{bert_connection_layer.1} parent=1 // loop_body
      %s77 = ssub.s32 %s72, 1
      %s78 = ssub.s32 %s72, 2
      %s79 = sadd.s32 %s72, 1
      %s80 = ssub.s32 %s72, %s79
      %p81 = scmp.eq.s32.totalorder %s80, 0
      %s83 = sadd.s32 %s82, 1
      %s84 = scalar_select %p81, %s82, %s83
      %p87 = pneg %p81
      %p88 = scmp.eq.s32.totalorder %s72, 1
      %p89 = por %p87, %p88
      %p90 = scmp.ne.s32.totalorder %s82, %s85
      %p91 = scmp.eq.s32.totalorder %s72, 0
      %p92 = por %p90, %p91
      %p93 = scmp.ne.s32.totalorder %s82, %s85
      %p94 = scmp.eq.s32.totalorder %s77, 1
      %p95 = por %p93, %p94
      %p96 = scmp.ne.s32.totalorder %s85, %s86
      %p97 = scmp.eq.s32.totalorder %s77, 0
      %p98 = por %p96, %p97
      %p99 = scmp.ne.s32.totalorder %s85, %s86
      %p100 = scmp.eq.s32.totalorder %s78, 1
      %p101 = por %p99, %p100
      %p103 = scmp.ne.s32.totalorder %s86, %s102
      %p104 = scmp.eq.s32.totalorder %s78, 0
      %p105 = por %p103, %p104
      %s106 = ssub.s32 %s72, %s79
      %p107 = scmp.eq.s32.totalorder %s106, 0
      %s109 = sadd.s32 %s108, 1
      %s110 = scalar_select %p107, %s108, %s109
      %p113 = pneg %p107
      %p114 = scmp.eq.s32.totalorder %s72, 1
      %p115 = por %p113, %p114
      %p116 = scmp.ne.s32.totalorder %s108, %s111
      %p117 = scmp.eq.s32.totalorder %s72, 0
      %p118 = por %p116, %p117
      %p119 = scmp.ne.s32.totalorder %s108, %s111
      %p120 = scmp.eq.s32.totalorder %s77, 1
      %p121 = por %p119, %p120
      %p122 = scmp.ne.s32.totalorder %s111, %s112
      %p123 = scmp.eq.s32.totalorder %s77, 0
      %p124 = por %p122, %p123
      %p125 = scmp.ne.s32.totalorder %s111, %s112
      %p126 = scmp.eq.s32.totalorder %s78, 1
      %p127 = por %p125, %p126
      %p129 = scmp.ne.s32.totalorder %s112, %s128
      %p130 = scmp.eq.s32.totalorder %s78, 0
      %p131 = por %p129, %p130
      %s132 = ssub.s32 %s72, %s79
      %p133 = scmp.eq.s32.totalorder %s132, 0
      %s135 = sadd.s32 %s134, 1
      %s136 = scalar_select %p133, %s134, %s135
      %p139 = pneg %p133
      %p140 = scmp.eq.s32.totalorder %s72, 1
      %p141 = por %p139, %p140
      %p142 = scmp.ne.s32.totalorder %s134, %s137
      %p143 = scmp.eq.s32.totalorder %s72, 0
      %p144 = por %p142, %p143
      %p145 = scmp.ne.s32.totalorder %s134, %s137
      %p146 = scmp.eq.s32.totalorder %s77, 1
      %p147 = por %p145, %p146
      %p148 = scmp.ne.s32.totalorder %s137, %s138
      %p149 = scmp.eq.s32.totalorder %s77, 0
      %p150 = por %p148, %p149
      %p151 = scmp.ne.s32.totalorder %s137, %s138
      %p152 = scmp.eq.s32.totalorder %s78, 1
      %p153 = por %p151, %p152
      %p155 = scmp.ne.s32.totalorder %s138, %s154
      %p156 = scmp.eq.s32.totalorder %s78, 0
      %p157 = por %p155, %p156
      %s158 = ssub.s32 %s72, %s79
      %p159 = scmp.eq.s32.totalorder %s158, 0
      %s161 = sadd.s32 %s160, 1
      %s162 = scalar_select %p159, %s160, %s161
      %p165 = pneg %p159
      %p166 = scmp.eq.s32.totalorder %s72, 1
      %p167 = por %p165, %p166
      %p168 = scmp.ne.s32.totalorder %s160, %s163
      %p169 = scmp.eq.s32.totalorder %s72, 0
      %p170 = por %p168, %p169
      %p171 = scmp.ne.s32.totalorder %s160, %s163
      %p172 = scmp.eq.s32.totalorder %s77, 1
      %p173 = por %p171, %p172
      %p174 = scmp.ne.s32.totalorder %s163, %s164
      %p175 = scmp.eq.s32.totalorder %s77, 0
      %p176 = por %p174, %p175
      %p177 = scmp.ne.s32.totalorder %s163, %s164
      %p178 = scmp.eq.s32.totalorder %s78, 1
      %p179 = por %p177, %p178
      %p181 = scmp.ne.s32.totalorder %s164, %s180
      %p182 = scmp.eq.s32.totalorder %s78, 0
      %p183 = por %p181, %p182
      %s185 = sadd.s32 %s184, 1
      %p188 = scmp.eq.s32.totalorder %s72, 1
      %p189 = scmp.ne.s32.totalorder %s184, %s186
      %p190 = scmp.eq.s32.totalorder %s72, 0
      %p191 = por %p189, %p190
      %p192 = scmp.ne.s32.totalorder %s184, %s186
      %p193 = scmp.eq.s32.totalorder %s77, 1
      %p194 = por %p192, %p193
      %p195 = scmp.ne.s32.totalorder %s186, %s187
      %p196 = scmp.eq.s32.totalorder %s77, 0
      %p197 = por %p195, %p196
      %p198 = scmp.ne.s32.totalorder %s186, %s187
      %p199 = scmp.eq.s32.totalorder %s78, 1
      %p200 = por %p198, %p199
      %p202 = scmp.ne.s32.totalorder %s187, %s201
      %p203 = scmp.eq.s32.totalorder %s78, 0
      %p204 = por %p202, %p203
      %s206 = sadd.s32 %s205, 1
      %p209 = scmp.eq.s32.totalorder %s72, 1
      %p210 = scmp.ne.s32.totalorder %s205, %s207
      %p211 = scmp.eq.s32.totalorder %s72, 0
      %p212 = por %p210, %p211
      %p213 = scmp.ne.s32.totalorder %s205, %s207
      %p214 = scmp.eq.s32.totalorder %s77, 1
      %p215 = por %p213, %p214
      %p216 = scmp.ne.s32.totalorder %s207, %s208
      %p217 = scmp.eq.s32.totalorder %s77, 0
      %p218 = por %p216, %p217
      %p219 = scmp.ne.s32.totalorder %s207, %s208
      %p220 = scmp.eq.s32.totalorder %s78, 1
      %p221 = por %p219, %p220
      %p223 = scmp.ne.s32.totalorder %s208, %s222
      %p224 = scmp.eq.s32.totalorder %s78, 0
      %p225 = por %p223, %p224
      %s227 = sadd.s32 %s226, 1
      %p230 = scmp.eq.s32.totalorder %s72, 1
      %p231 = scmp.ne.s32.totalorder %s226, %s228
      %p232 = scmp.eq.s32.totalorder %s72, 0
      %p233 = por %p231, %p232
      %p234 = scmp.ne.s32.totalorder %s226, %s228
      %p235 = scmp.eq.s32.totalorder %s77, 1
      %p236 = por %p234, %p235
      %p237 = scmp.ne.s32.totalorder %s228, %s229
      %p238 = scmp.eq.s32.totalorder %s77, 0
      %p239 = por %p237, %p238
      %p240 = scmp.ne.s32.totalorder %s228, %s229
      %p241 = scmp.eq.s32.totalorder %s78, 1
      %p242 = por %p240, %p241
      %p244 = scmp.ne.s32.totalorder %s229, %s243
      %p245 = scmp.eq.s32.totalorder %s78, 0
      %p246 = por %p244, %p245
      %s248 = sadd.s32 %s247, 1
      %p251 = scmp.eq.s32.totalorder %s72, 1
      %p252 = scmp.ne.s32.totalorder %s247, %s249
      %p253 = scmp.eq.s32.totalorder %s72, 0
      %p254 = por %p252, %p253
      %p255 = scmp.ne.s32.totalorder %s247, %s249
      %p256 = scmp.eq.s32.totalorder %s77, 1
      %p257 = por %p255, %p256
      %p258 = scmp.ne.s32.totalorder %s249, %s250
      %p259 = scmp.eq.s32.totalorder %s77, 0
      %p260 = por %p258, %p259
      %p261 = scmp.ne.s32.totalorder %s249, %s250
      %p262 = scmp.eq.s32.totalorder %s78, 1
      %p263 = por %p261, %p262
      %p265 = scmp.ne.s32.totalorder %s250, %s264
      %p266 = scmp.eq.s32.totalorder %s78, 0
      %p267 = por %p265, %p266
      %s269 = sadd.s32 %s268, 1
      %p272 = scmp.eq.s32.totalorder %s72, 1
      %p273 = scmp.ne.s32.totalorder %s268, %s270
      %p274 = scmp.eq.s32.totalorder %s72, 0
      %p275 = por %p273, %p274
      %p276 = scmp.ne.s32.totalorder %s268, %s270
      %p277 = scmp.eq.s32.totalorder %s77, 1
      %p278 = por %p276, %p277
      %p279 = scmp.ne.s32.totalorder %s270, %s271
      %p280 = scmp.eq.s32.totalorder %s77, 0
      %p281 = por %p279, %p280
      %p282 = scmp.ne.s32.totalorder %s270, %s271
      %p283 = scmp.eq.s32.totalorder %s78, 1
      %p284 = por %p282, %p283
      %p286 = scmp.ne.s32.totalorder %s271, %s285
      %p287 = scmp.eq.s32.totalorder %s78, 0
      %p288 = por %p286, %p287
      %s290 = sadd.s32 %s289, 1
      %p293 = scmp.eq.s32.totalorder %s72, 1
      %p294 = scmp.ne.s32.totalorder %s289, %s291
      %p295 = scmp.eq.s32.totalorder %s72, 0
      %p296 = por %p294, %p295
      %p297 = scmp.ne.s32.totalorder %s289, %s291
      %p298 = scmp.eq.s32.totalorder %s77, 1
      %p299 = por %p297, %p298
      %p300 = scmp.ne.s32.totalorder %s291, %s292
      %p301 = scmp.eq.s32.totalorder %s77, 0
      %p302 = por %p300, %p301
      %p303 = scmp.ne.s32.totalorder %s291, %s292
      %p304 = scmp.eq.s32.totalorder %s78, 1
      %p305 = por %p303, %p304
      %p307 = scmp.ne.s32.totalorder %s292, %s306
      %p308 = scmp.eq.s32.totalorder %s78, 0
      %p309 = por %p307, %p308
      %s311 = sadd.s32 %s310, 1
      %p314 = scmp.eq.s32.totalorder %s72, 1
      %p315 = scmp.ne.s32.totalorder %s310, %s312
      %p316 = scmp.eq.s32.totalorder %s72, 0
      %p317 = por %p315, %p316
      %p318 = scmp.ne.s32.totalorder %s310, %s312
      %p319 = scmp.eq.s32.totalorder %s77, 1
      %p320 = por %p318, %p319
      %p321 = scmp.ne.s32.totalorder %s312, %s313
      %p322 = scmp.eq.s32.totalorder %s77, 0
      %p323 = por %p321, %p322
      %p324 = scmp.ne.s32.totalorder %s312, %s313
      %p325 = scmp.eq.s32.totalorder %s78, 1
      %p326 = por %p324, %p325
      %p328 = scmp.ne.s32.totalorder %s313, %s327
      %p329 = scmp.eq.s32.totalorder %s78, 0
      %p330 = por %p328, %p329
      %s332 = sadd.s32 %s331, 1
      %p335 = scmp.eq.s32.totalorder %s72, 1
      %p336 = scmp.ne.s32.totalorder %s331, %s333
      %p337 = scmp.eq.s32.totalorder %s72, 0
      %p338 = por %p336, %p337
      %p339 = scmp.ne.s32.totalorder %s331, %s333
      %p340 = scmp.eq.s32.totalorder %s77, 1
      %p341 = por %p339, %p340
      %p342 = scmp.ne.s32.totalorder %s333, %s334
      %p343 = scmp.eq.s32.totalorder %s77, 0
      %p344 = por %p342, %p343
      %p345 = scmp.ne.s32.totalorder %s333, %s334
      %p346 = scmp.eq.s32.totalorder %s78, 1
      %p347 = por %p345, %p346
      %p349 = scmp.ne.s32.totalorder %s334, %s348
      %p350 = scmp.eq.s32.totalorder %s78, 0
      %p351 = por %p349, %p350
      %s353 = sadd.s32 %s352, 1
      %p356 = scmp.eq.s32.totalorder %s72, 1
      %p357 = scmp.ne.s32.totalorder %s352, %s354
      %p358 = scmp.eq.s32.totalorder %s72, 0
      %p359 = por %p357, %p358
      %p360 = scmp.ne.s32.totalorder %s352, %s354
      %p361 = scmp.eq.s32.totalorder %s77, 1
      %p362 = por %p360, %p361
      %p363 = scmp.ne.s32.totalorder %s354, %s355
      %p364 = scmp.eq.s32.totalorder %s77, 0
      %p365 = por %p363, %p364
      %p366 = scmp.ne.s32.totalorder %s354, %s355
      %p367 = scmp.eq.s32.totalorder %s78, 1
      %p368 = por %p366, %p367
      %p370 = scmp.ne.s32.totalorder %s355, %s369
      %p371 = scmp.eq.s32.totalorder %s78, 0
      %p372 = por %p370, %p371
      %s374 = sadd.s32 %s373, 1
      %p377 = scmp.eq.s32.totalorder %s72, 1
      %p378 = scmp.ne.s32.totalorder %s373, %s375
      %p379 = scmp.eq.s32.totalorder %s72, 0
      %p380 = por %p378, %p379
      %p381 = scmp.ne.s32.totalorder %s373, %s375
      %p382 = scmp.eq.s32.totalorder %s77, 1
      %p383 = por %p381, %p382
      %p384 = scmp.ne.s32.totalorder %s375, %s376
      %p385 = scmp.eq.s32.totalorder %s77, 0
      %p386 = por %p384, %p385
      %p387 = scmp.ne.s32.totalorder %s375, %s376
      %p388 = scmp.eq.s32.totalorder %s78, 1
      %p389 = por %p387, %p388
      %p391 = scmp.ne.s32.totalorder %s376, %s390
      %p392 = scmp.eq.s32.totalorder %s78, 0
      %p393 = por %p391, %p392
      %s395 = sadd.s32 %s394, 1
      %p398 = scmp.eq.s32.totalorder %s72, 1
      %p399 = scmp.ne.s32.totalorder %s394, %s396
      %p400 = scmp.eq.s32.totalorder %s72, 0
      %p401 = por %p399, %p400
      %p402 = scmp.ne.s32.totalorder %s394, %s396
      %p403 = scmp.eq.s32.totalorder %s77, 1
      %p404 = por %p402, %p403
      %p405 = scmp.ne.s32.totalorder %s396, %s397
      %p406 = scmp.eq.s32.totalorder %s77, 0
      %p407 = por %p405, %p406
      %p408 = scmp.ne.s32.totalorder %s396, %s397
      %p409 = scmp.eq.s32.totalorder %s78, 1
      %p410 = por %p408, %p409
      %p412 = scmp.ne.s32.totalorder %s397, %s411
      %p413 = scmp.eq.s32.totalorder %s78, 0
      %p414 = por %p412, %p413
      %s416 = sadd.s32 %s415, 1
      %p419 = scmp.eq.s32.totalorder %s72, 1
      %p420 = scmp.ne.s32.totalorder %s415, %s417
      %p421 = scmp.eq.s32.totalorder %s72, 0
      %p422 = por %p420, %p421
      %p423 = scmp.ne.s32.totalorder %s415, %s417
      %p424 = scmp.eq.s32.totalorder %s77, 1
      %p425 = por %p423, %p424
      %p426 = scmp.ne.s32.totalorder %s417, %s418
      %p427 = scmp.eq.s32.totalorder %s77, 0
      %p428 = por %p426, %p427
      %p429 = scmp.ne.s32.totalorder %s417, %s418
      %p430 = scmp.eq.s32.totalorder %s78, 1
      %p431 = por %p429, %p430
      %p433 = scmp.ne.s32.totalorder %s418, %s432
      %p434 = scmp.eq.s32.totalorder %s78, 0
      %p435 = por %p433, %p434
      %s437 = sadd.s32 %s436, 1
      %p440 = scmp.eq.s32.totalorder %s72, 1
      %p441 = scmp.ne.s32.totalorder %s436, %s438
      %p442 = scmp.eq.s32.totalorder %s72, 0
      %p443 = por %p441, %p442
      %p444 = scmp.ne.s32.totalorder %s436, %s438
      %p445 = scmp.eq.s32.totalorder %s77, 1
      %p446 = por %p444, %p445
      %p447 = scmp.ne.s32.totalorder %s438, %s439
      %p448 = scmp.eq.s32.totalorder %s77, 0
      %p449 = por %p447, %p448
      %p450 = scmp.ne.s32.totalorder %s438, %s439
      %p451 = scmp.eq.s32.totalorder %s78, 1
      %p452 = por %p450, %p451
      %p454 = scmp.ne.s32.totalorder %s439, %s453
      %p455 = scmp.eq.s32.totalorder %s78, 0
      %p456 = por %p454, %p455
      %s458 = sadd.s32 %s457, 1
      %p461 = scmp.eq.s32.totalorder %s72, 1
      %p462 = scmp.ne.s32.totalorder %s457, %s459
      %p463 = scmp.eq.s32.totalorder %s72, 0
      %p464 = por %p462, %p463
      %p465 = scmp.ne.s32.totalorder %s457, %s459
      %p466 = scmp.eq.s32.totalorder %s77, 1
      %p467 = por %p465, %p466
      %p468 = scmp.ne.s32.totalorder %s459, %s460
      %p469 = scmp.eq.s32.totalorder %s77, 0
      %p470 = por %p468, %p469
      %p471 = scmp.ne.s32.totalorder %s459, %s460
      %p472 = scmp.eq.s32.totalorder %s78, 1
      %p473 = por %p471, %p472
      %p475 = scmp.ne.s32.totalorder %s460, %s474
      %p476 = scmp.eq.s32.totalorder %s78, 0
      %p477 = por %p475, %p476
      %s479 = sadd.s32 %s478, 1
      %p482 = scmp.eq.s32.totalorder %s72, 1
      %p483 = scmp.ne.s32.totalorder %s478, %s480
      %p484 = scmp.eq.s32.totalorder %s72, 0
      %p485 = por %p483, %p484
      %p486 = scmp.ne.s32.totalorder %s478, %s480
      %p487 = scmp.eq.s32.totalorder %s77, 1
      %p488 = por %p486, %p487
      %p489 = scmp.ne.s32.totalorder %s480, %s481
      %p490 = scmp.eq.s32.totalorder %s77, 0
      %p491 = por %p489, %p490
      %p492 = scmp.ne.s32.totalorder %s480, %s481
      %p493 = scmp.eq.s32.totalorder %s78, 1
      %p494 = por %p492, %p493
      %p496 = scmp.ne.s32.totalorder %s481, %s495
      %p497 = scmp.eq.s32.totalorder %s78, 0
      %p498 = por %p496, %p497
      %s500 = sadd.s32 %s499, 1
      %p503 = scmp.eq.s32.totalorder %s72, 1
      %p504 = scmp.ne.s32.totalorder %s499, %s501
      %p505 = scmp.eq.s32.totalorder %s72, 0
      %p506 = por %p504, %p505
      %p507 = scmp.ne.s32.totalorder %s499, %s501
      %p508 = scmp.eq.s32.totalorder %s77, 1
      %p509 = por %p507, %p508
      %p510 = scmp.ne.s32.totalorder %s501, %s502
      %p511 = scmp.eq.s32.totalorder %s77, 0
      %p512 = por %p510, %p511
      %p513 = scmp.ne.s32.totalorder %s501, %s502
      %p514 = scmp.eq.s32.totalorder %s78, 1
      %p515 = por %p513, %p514
      %p517 = scmp.ne.s32.totalorder %s502, %s516
      %p518 = scmp.eq.s32.totalorder %s78, 0
      %p519 = por %p517, %p518
      %s521 = sadd.s32 %s520, 1
      %p524 = scmp.eq.s32.totalorder %s72, 1
      %p525 = scmp.ne.s32.totalorder %s520, %s522
      %p526 = scmp.eq.s32.totalorder %s72, 0
      %p527 = por %p525, %p526
      %p528 = scmp.ne.s32.totalorder %s520, %s522
      %p529 = scmp.eq.s32.totalorder %s77, 1
      %p530 = por %p528, %p529
      %p531 = scmp.ne.s32.totalorder %s522, %s523
      %p532 = scmp.eq.s32.totalorder %s77, 0
      %p533 = por %p531, %p532
      %p534 = scmp.ne.s32.totalorder %s522, %s523
      %p535 = scmp.eq.s32.totalorder %s78, 1
      %p536 = por %p534, %p535
      %p538 = scmp.ne.s32.totalorder %s523, %s537
      %p539 = scmp.eq.s32.totalorder %s78, 0
      %p540 = por %p538, %p539
      %s542 = sadd.s32 %s541, 1
      %p545 = scmp.eq.s32.totalorder %s72, 1
      %p546 = scmp.ne.s32.totalorder %s541, %s543
      %p547 = scmp.eq.s32.totalorder %s72, 0
      %p548 = por %p546, %p547
      %p549 = scmp.ne.s32.totalorder %s541, %s543
      %p550 = scmp.eq.s32.totalorder %s77, 1
      %p551 = por %p549, %p550
      %p552 = scmp.ne.s32.totalorder %s543, %s544
      %p553 = scmp.eq.s32.totalorder %s77, 0
      %p554 = por %p552, %p553
      %p555 = scmp.ne.s32.totalorder %s543, %s544
      %p556 = scmp.eq.s32.totalorder %s78, 1
      %p557 = por %p555, %p556
      %p559 = scmp.ne.s32.totalorder %s544, %s558
      %p560 = scmp.eq.s32.totalorder %s78, 0
      %p561 = por %p559, %p560
      %s563 = sadd.s32 %s562, 1
      %p566 = scmp.eq.s32.totalorder %s72, 1
      %p567 = scmp.ne.s32.totalorder %s562, %s564
      %p568 = scmp.eq.s32.totalorder %s72, 0
      %p569 = por %p567, %p568
      %p570 = scmp.ne.s32.totalorder %s562, %s564
      %p571 = scmp.eq.s32.totalorder %s77, 1
      %p572 = por %p570, %p571
      %p573 = scmp.ne.s32.totalorder %s564, %s565
      %p574 = scmp.eq.s32.totalorder %s77, 0
      %p575 = por %p573, %p574
      %p576 = scmp.ne.s32.totalorder %s564, %s565
      %p577 = scmp.eq.s32.totalorder %s78, 1
      %p578 = por %p576, %p577
      %p580 = scmp.ne.s32.totalorder %s565, %s579
      %p581 = scmp.eq.s32.totalorder %s78, 0
      %p582 = por %p580, %p581
      %s584 = sadd.s32 %s583, 1
      %p587 = scmp.eq.s32.totalorder %s72, 1
      %p588 = scmp.ne.s32.totalorder %s583, %s585
      %p589 = scmp.eq.s32.totalorder %s72, 0
      %p590 = por %p588, %p589
      %p591 = scmp.ne.s32.totalorder %s583, %s585
      %p592 = scmp.eq.s32.totalorder %s77, 1
      %p593 = por %p591, %p592
      %p594 = scmp.ne.s32.totalorder %s585, %s586
      %p595 = scmp.eq.s32.totalorder %s77, 0
      %p596 = por %p594, %p595
      %p597 = scmp.ne.s32.totalorder %s585, %s586
      %p598 = scmp.eq.s32.totalorder %s78, 1
      %p599 = por %p597, %p598
      %p601 = scmp.ne.s32.totalorder %s586, %s600
      %p602 = scmp.eq.s32.totalorder %s78, 0
      %p603 = por %p601, %p602
      %s605 = sadd.s32 %s604, 1
      %p608 = scmp.eq.s32.totalorder %s72, 1
      %p609 = scmp.ne.s32.totalorder %s604, %s606
      %p610 = scmp.eq.s32.totalorder %s72, 0
      %p611 = por %p609, %p610
      %p612 = scmp.ne.s32.totalorder %s604, %s606
      %p613 = scmp.eq.s32.totalorder %s77, 1
      %p614 = por %p612, %p613
      %p615 = scmp.ne.s32.totalorder %s606, %s607
      %p616 = scmp.eq.s32.totalorder %s77, 0
      %p617 = por %p615, %p616
      %p618 = scmp.ne.s32.totalorder %s606, %s607
      %p619 = scmp.eq.s32.totalorder %s78, 1
      %p620 = por %p618, %p619
      %p622 = scmp.ne.s32.totalorder %s607, %s621
      %p623 = scmp.eq.s32.totalorder %s78, 0
      %p624 = por %p622, %p623
      %s626 = sadd.s32 %s625, 1
      %p629 = scmp.eq.s32.totalorder %s72, 1
      %p630 = scmp.ne.s32.totalorder %s625, %s627
      %p631 = scmp.eq.s32.totalorder %s72, 0
      %p632 = por %p630, %p631
      %p633 = scmp.ne.s32.totalorder %s625, %s627
      %p634 = scmp.eq.s32.totalorder %s77, 1
      %p635 = por %p633, %p634
      %p636 = scmp.ne.s32.totalorder %s627, %s628
      %p637 = scmp.eq.s32.totalorder %s77, 0
      %p638 = por %p636, %p637
      %p639 = scmp.ne.s32.totalorder %s627, %s628
      %p640 = scmp.eq.s32.totalorder %s78, 1
      %p641 = por %p639, %p640
      %p643 = scmp.ne.s32.totalorder %s628, %s642
      %p644 = scmp.eq.s32.totalorder %s78, 0
      %p645 = por %p643, %p644
      %s647 = sadd.s32 %s646, 1
      %p650 = scmp.eq.s32.totalorder %s72, 1
      %p651 = scmp.ne.s32.totalorder %s646, %s648
      %p652 = scmp.eq.s32.totalorder %s72, 0
      %p653 = por %p651, %p652
      %p654 = scmp.ne.s32.totalorder %s646, %s648
      %p655 = scmp.eq.s32.totalorder %s77, 1
      %p656 = por %p654, %p655
      %p657 = scmp.ne.s32.totalorder %s648, %s649
      %p658 = scmp.eq.s32.totalorder %s77, 0
      %p659 = por %p657, %p658
      %p660 = scmp.ne.s32.totalorder %s648, %s649
      %p661 = scmp.eq.s32.totalorder %s78, 1
      %p662 = por %p660, %p661
      %p664 = scmp.ne.s32.totalorder %s649, %s663
      %p665 = scmp.eq.s32.totalorder %s78, 0
      %p666 = por %p664, %p665
      %s668 = sadd.s32 %s667, 1
      %p671 = scmp.eq.s32.totalorder %s72, 1
      %p672 = scmp.ne.s32.totalorder %s667, %s669
      %p673 = scmp.eq.s32.totalorder %s72, 0
      %p674 = por %p672, %p673
      %p675 = scmp.ne.s32.totalorder %s667, %s669
      %p676 = scmp.eq.s32.totalorder %s77, 1
      %p677 = por %p675, %p676
      %p678 = scmp.ne.s32.totalorder %s669, %s670
      %p679 = scmp.eq.s32.totalorder %s77, 0
      %p680 = por %p678, %p679
      %p681 = scmp.ne.s32.totalorder %s669, %s670
      %p682 = scmp.eq.s32.totalorder %s78, 1
      %p683 = por %p681, %p682
      %p685 = scmp.ne.s32.totalorder %s670, %s684
      %p686 = scmp.eq.s32.totalorder %s78, 0
      %p687 = por %p685, %p686
      %s688 = ssub.s32 %s72, %s79
      %p689 = scmp.eq.s32.totalorder %s688, 0
      %s691 = sadd.s32 %s690, 1
      %s692 = scalar_select %p689, %s690, %s691
      %p695 = pneg %p689
      %p696 = scmp.eq.s32.totalorder %s72, 1
      %p697 = por %p695, %p696
      %p698 = scmp.ne.s32.totalorder %s690, %s693
      %p699 = scmp.eq.s32.totalorder %s72, 0
      %p700 = por %p698, %p699
      %p701 = scmp.ne.s32.totalorder %s690, %s693
      %p702 = scmp.eq.s32.totalorder %s77, 1
      %p703 = por %p701, %p702
      %p704 = scmp.ne.s32.totalorder %s693, %s694
      %p705 = scmp.eq.s32.totalorder %s77, 0
      %p706 = por %p704, %p705
      %p707 = scmp.ne.s32.totalorder %s693, %s694
      %p708 = scmp.eq.s32.totalorder %s78, 1
      %p709 = por %p707, %p708
      %p711 = scmp.ne.s32.totalorder %s694, %s710
      %p712 = scmp.eq.s32.totalorder %s78, 0
      %p713 = por %p711, %p712
      %s714 = ssub.s32 %s72, %s79
      %p715 = scmp.eq.s32.totalorder %s714, 0
      %s717 = sadd.s32 %s716, 1
      %s718 = scalar_select %p715, %s716, %s717
      %p721 = pneg %p715
      %p722 = scmp.eq.s32.totalorder %s72, 1
      %p723 = por %p721, %p722
      %p724 = scmp.ne.s32.totalorder %s716, %s719
      %p725 = scmp.eq.s32.totalorder %s72, 0
      %p726 = por %p724, %p725
      %p727 = scmp.ne.s32.totalorder %s716, %s719
      %p728 = scmp.eq.s32.totalorder %s77, 1
      %p729 = por %p727, %p728
      %p730 = scmp.ne.s32.totalorder %s719, %s720
      %p731 = scmp.eq.s32.totalorder %s77, 0
      %p732 = por %p730, %p731
      %p733 = scmp.ne.s32.totalorder %s719, %s720
      %p734 = scmp.eq.s32.totalorder %s78, 1
      %p735 = por %p733, %p734
      %p737 = scmp.ne.s32.totalorder %s720, %s736
      %p738 = scmp.eq.s32.totalorder %s78, 0
      %p739 = por %p737, %p738
      %p740 = scmp.le.s32.totalorder 1, %s72
      %p741 = scmp.lt.s32.totalorder %s72, 3
      %p742 = pnand %p740, %p741
      %p743 = pneg %p742
      // Predicated region
      $region9: #{bert_connection_layer.1} parent=5 // pred_check
        _
      $region10: #{bert_connection_layer.1} parent=5 // pred_check_branch
        %745 = sbr.rel (%p742) target = $region12
      $region11: #{bert_connection_layer.1} parent=5 // pred_region
        %s746 = ssub.s32 %s72, 1
        // Predicated region
        $region13: #{bert_connection_layer.1} parent=11 // pred_check
          %p747 = pneg %p197
        $region14: #{bert_connection_layer.1} parent=11 // pred_check_branch
          %749 = sbr.rel (%p747) target = $region16
        $region15: #{bert_connection_layer.1} parent=11 // pred_region
          _
        $region16: #{bert_connection_layer.1} parent=11 // pred_fallthru
          _
        // Predicated region
        $region17: #{bert_connection_layer.1} parent=11 // pred_check
          %p750 = pneg %p218
        $region18: #{bert_connection_layer.1} parent=11 // pred_check_branch
          %752 = sbr.rel (%p750) target = $region20
        $region19: #{bert_connection_layer.1} parent=11 // pred_region
          _
        $region20: #{bert_connection_layer.1} parent=11 // pred_fallthru
          _
        // Predicated region
        $region21: #{bert_connection_layer.1} parent=11 // pred_check
          %p753 = pneg %p239
        $region22: #{bert_connection_layer.1} parent=11 // pred_check_branch
          %755 = sbr.rel (%p753) target = $region24
        $region23: #{bert_connection_layer.1} parent=11 // pred_region
          _
        $region24: #{bert_connection_layer.1} parent=11 // pred_fallthru
          _
        // Predicated region
        $region25: #{bert_connection_layer.1} parent=11 // pred_check
          %p756 = pneg %p260
        $region26: #{bert_connection_layer.1} parent=11 // pred_check_branch
          %758 = sbr.rel (%p756) target = $region28
        $region27: #{bert_connection_layer.1} parent=11 // pred_region
          _
        $region28: #{bert_connection_layer.1} parent=11 // pred_fallthru
          _
        // Predicated region
        $region29: #{bert_connection_layer.1} parent=11 // pred_check
          %p759 = pneg %p281
        $region30: #{bert_connection_layer.1} parent=11 // pred_check_branch
          %761 = sbr.rel (%p759) target = $region32
        $region31: #{bert_connection_layer.1} parent=11 // pred_region
          _
        $region32: #{bert_connection_layer.1} parent=11 // pred_fallthru
          _
        // Predicated region
        $region33: #{bert_connection_layer.1} parent=11 // pred_check
          %p762 = pneg %p302
        $region34: #{bert_connection_layer.1} parent=11 // pred_check_branch
          %764 = sbr.rel (%p762) target = $region36
        $region35: #{bert_connection_layer.1} parent=11 // pred_region
          _
        $region36: #{bert_connection_layer.1} parent=11 // pred_fallthru
          _
        // Predicated region
        $region37: #{bert_connection_layer.1} parent=11 // pred_check
          %p765 = pneg %p323
        $region38: #{bert_connection_layer.1} parent=11 // pred_check_branch
          %767 = sbr.rel (%p765) target = $region40
        $region39: #{bert_connection_layer.1} parent=11 // pred_region
          _
        $region40: #{bert_connection_layer.1} parent=11 // pred_fallthru
          _
        // Predicated region
        $region41: #{bert_connection_layer.1} parent=11 // pred_check
          %p768 = pneg %p344
        $region42: #{bert_connection_layer.1} parent=11 // pred_check_branch
          %770 = sbr.rel (%p768) target = $region44
        $region43: #{bert_connection_layer.1} parent=11 // pred_region
          _
        $region44: #{bert_connection_layer.1} parent=11 // pred_fallthru
          _
        // Predicated region
        $region45: #{bert_connection_layer.1} parent=11 // pred_check
          %p771 = pneg %p365
        $region46: #{bert_connection_layer.1} parent=11 // pred_check_branch
          %773 = sbr.rel (%p771) target = $region48
        $region47: #{bert_connection_layer.1} parent=11 // pred_region
          _
        $region48: #{bert_connection_layer.1} parent=11 // pred_fallthru
          _
        // Predicated region
        $region49: #{bert_connection_layer.1} parent=11 // pred_check
          %p774 = pneg %p386
        $region50: #{bert_connection_layer.1} parent=11 // pred_check_branch
          %776 = sbr.rel (%p774) target = $region52
        $region51: #{bert_connection_layer.1} parent=11 // pred_region
          _
        $region52: #{bert_connection_layer.1} parent=11 // pred_fallthru
          _
        // Predicated region
        $region53: #{bert_connection_layer.1} parent=11 // pred_check
          %p777 = pneg %p407
        $region54: #{bert_connection_layer.1} parent=11 // pred_check_branch
          %779 = sbr.rel (%p777) target = $region56
        $region55: #{bert_connection_layer.1} parent=11 // pred_region
          _
        $region56: #{bert_connection_layer.1} parent=11 // pred_fallthru
          _
        // Predicated region
        $region57: #{bert_connection_layer.1} parent=11 // pred_check
          %p780 = pneg %p428
        $region58: #{bert_connection_layer.1} parent=11 // pred_check_branch
          %782 = sbr.rel (%p780) target = $region60
        $region59: #{bert_connection_layer.1} parent=11 // pred_region
          _
        $region60: #{bert_connection_layer.1} parent=11 // pred_fallthru
          _
        // Predicated region
        $region61: #{bert_connection_layer.1} parent=11 // pred_check
          %p783 = pneg %p449
        $region62: #{bert_connection_layer.1} parent=11 // pred_check_branch
          %785 = sbr.rel (%p783) target = $region64
        $region63: #{bert_connection_layer.1} parent=11 // pred_region
          _
        $region64: #{bert_connection_layer.1} parent=11 // pred_fallthru
          _
        // Predicated region
        $region65: #{bert_connection_layer.1} parent=11 // pred_check
          %p786 = pneg %p470
        $region66: #{bert_connection_layer.1} parent=11 // pred_check_branch
          %788 = sbr.rel (%p786) target = $region68
        $region67: #{bert_connection_layer.1} parent=11 // pred_region
          _
        $region68: #{bert_connection_layer.1} parent=11 // pred_fallthru
          _
        // Predicated region
        $region69: #{bert_connection_layer.1} parent=11 // pred_check
          %p789 = pneg %p491
        $region70: #{bert_connection_layer.1} parent=11 // pred_check_branch
          %791 = sbr.rel (%p789) target = $region72
        $region71: #{bert_connection_layer.1} parent=11 // pred_region
          _
        $region72: #{bert_connection_layer.1} parent=11 // pred_fallthru
          _
        // Predicated region
        $region73: #{bert_connection_layer.1} parent=11 // pred_check
          %p792 = pneg %p512
        $region74: #{bert_connection_layer.1} parent=11 // pred_check_branch
          %794 = sbr.rel (%p792) target = $region76
        $region75: #{bert_connection_layer.1} parent=11 // pred_region
          _
        $region76: #{bert_connection_layer.1} parent=11 // pred_fallthru
          _
        // Predicated region
        $region77: #{bert_connection_layer.1} parent=11 // pred_check
          %p795 = pneg %p533
        $region78: #{bert_connection_layer.1} parent=11 // pred_check_branch
          %797 = sbr.rel (%p795) target = $region80
        $region79: #{bert_connection_layer.1} parent=11 // pred_region
          _
        $region80: #{bert_connection_layer.1} parent=11 // pred_fallthru
          _
        // Predicated region
        $region81: #{bert_connection_layer.1} parent=11 // pred_check
          %p798 = pneg %p554
        $region82: #{bert_connection_layer.1} parent=11 // pred_check_branch
          %800 = sbr.rel (%p798) target = $region84
        $region83: #{bert_connection_layer.1} parent=11 // pred_region
          _
        $region84: #{bert_connection_layer.1} parent=11 // pred_fallthru
          _
        // Predicated region
        $region85: #{bert_connection_layer.1} parent=11 // pred_check
          %p801 = pneg %p575
        $region86: #{bert_connection_layer.1} parent=11 // pred_check_branch
          %803 = sbr.rel (%p801) target = $region88
        $region87: #{bert_connection_layer.1} parent=11 // pred_region
          _
        $region88: #{bert_connection_layer.1} parent=11 // pred_fallthru
          _
        // Predicated region
        $region89: #{bert_connection_layer.1} parent=11 // pred_check
          %p804 = pneg %p596
        $region90: #{bert_connection_layer.1} parent=11 // pred_check_branch
          %806 = sbr.rel (%p804) target = $region92
        $region91: #{bert_connection_layer.1} parent=11 // pred_region
          _
        $region92: #{bert_connection_layer.1} parent=11 // pred_fallthru
          _
        // Predicated region
        $region93: #{bert_connection_layer.1} parent=11 // pred_check
          %p807 = pneg %p617
        $region94: #{bert_connection_layer.1} parent=11 // pred_check_branch
          %809 = sbr.rel (%p807) target = $region96
        $region95: #{bert_connection_layer.1} parent=11 // pred_region
          _
        $region96: #{bert_connection_layer.1} parent=11 // pred_fallthru
          _
        // Predicated region
        $region97: #{bert_connection_layer.1} parent=11 // pred_check
          %p810 = pneg %p638
        $region98: #{bert_connection_layer.1} parent=11 // pred_check_branch
          %812 = sbr.rel (%p810) target = $region100
        $region99: #{bert_connection_layer.1} parent=11 // pred_region
          _
        $region100: #{bert_connection_layer.1} parent=11 // pred_fallthru
          _
        // Predicated region
        $region101: #{bert_connection_layer.1} parent=11 // pred_check
          %p813 = pneg %p659
        $region102: #{bert_connection_layer.1} parent=11 // pred_check_branch
          %815 = sbr.rel (%p813) target = $region104
        $region103: #{bert_connection_layer.1} parent=11 // pred_region
          _
        $region104: #{bert_connection_layer.1} parent=11 // pred_fallthru
          _
        // Predicated region
        $region105: #{bert_connection_layer.1} parent=11 // pred_check
          %p816 = pneg %p680
        $region106: #{bert_connection_layer.1} parent=11 // pred_check_branch
          %818 = sbr.rel (%p816) target = $region108
        $region107: #{bert_connection_layer.1} parent=11 // pred_region
          _
        $region108: #{bert_connection_layer.1} parent=11 // pred_fallthru
          _
      $region12: #{bert_connection_layer.1} parent=5 // pred_fallthru
        _
      %p819 = scmp.lt.s32.totalorder %s72, 2
      // Predicated region
      $region109: #{bert_connection_layer.1} parent=5 // pred_check
        %p820 = pneg %p819
      $region110: #{bert_connection_layer.1} parent=5 // pred_check_branch
        %822 = sbr.rel (%p820) target = $region112
      $region111: #{bert_connection_layer.1} parent=5 // pred_region
        // Predicated region
        $region113: #{bert_connection_layer.1} parent=111 // pred_check
          %p823 = pneg %p92
        $region114: #{bert_connection_layer.1} parent=111 // pred_check_branch
          %825 = sbr.rel (%p823) target = $region116
        $region115: #{bert_connection_layer.1} parent=111 // pred_region
          %p826 = scmp.lt.s32.totalorder %s72, 1
          %s827 = scalar_select %p826, %s72, 1
          %s828 = smul.addr %s827, 8
          %s829 = scalar_lea.vmem %s1, %s828
        $region116: #{bert_connection_layer.1} parent=111 // pred_fallthru
          _
        // Predicated region
        $region117: #{bert_connection_layer.1} parent=111 // pred_check
          %p830 = pneg %p118
        $region118: #{bert_connection_layer.1} parent=111 // pred_check_branch
          %832 = sbr.rel (%p830) target = $region120
        $region119: #{bert_connection_layer.1} parent=111 // pred_region
          %p833 = scmp.lt.s32.totalorder %s72, 1
          %s834 = scalar_select %p833, %s72, 1
          %s835 = scalar_lea.vmem %s3, %s834
        $region120: #{bert_connection_layer.1} parent=111 // pred_fallthru
          _
        // Predicated region
        $region121: #{bert_connection_layer.1} parent=111 // pred_check
          %p836 = pneg %p144
        $region122: #{bert_connection_layer.1} parent=111 // pred_check_branch
          %838 = sbr.rel (%p836) target = $region124
        $region123: #{bert_connection_layer.1} parent=111 // pred_region
          %p839 = scmp.lt.s32.totalorder %s72, 1
          %s840 = scalar_select %p839, %s72, 1
          %s841 = smul.addr %s840, 2
          %s842 = smul.addr %s841, 8
          %s843 = scalar_lea.vmem %s5, %s842
        $region124: #{bert_connection_layer.1} parent=111 // pred_fallthru
          _
        // Predicated region
        $region125: #{bert_connection_layer.1} parent=111 // pred_check
          %p844 = pneg %p170
        $region126: #{bert_connection_layer.1} parent=111 // pred_check_branch
          %846 = sbr.rel (%p844) target = $region128
        $region127: #{bert_connection_layer.1} parent=111 // pred_region
          %p847 = scmp.lt.s32.totalorder %s72, 1
          %s848 = scalar_select %p847, %s72, 1
          %s849 = scalar_lea.vmem %s7, %s848
        $region128: #{bert_connection_layer.1} parent=111 // pred_fallthru
          _
      $region112: #{bert_connection_layer.1} parent=5 // pred_fallthru
        _
      %p850 = scmp.le.s32.totalorder 1, %s72
      %p851 = scmp.lt.s32.totalorder %s72, 3
      %p852 = pnand %p850, %p851
      %p853 = pneg %p852
      // Predicated region
      $region129: #{bert_connection_layer.1} parent=5 // pred_check
        _
      $region130: #{bert_connection_layer.1} parent=5 // pred_check_branch
        %855 = sbr.rel (%p852) target = $region132
      $region131: #{bert_connection_layer.1} parent=5 // pred_region
        %s856 = ssub.s32 %s72, 1
        %p857 = scmp.lt.s32.totalorder %s77, 1
        %s858 = scalar_select %p857, %s77, 1
        %s859 = smul.addr %s858, 8
        %s860 = scalar_lea.vmem %s1, %s859
        %p861 = pneg %p98
        %p862 = pneg %p95
        %p863 = scmp.lt.s32.totalorder %s77, 1
        %s864 = scalar_select %p863, %s77, 1
        %s865 = scalar_lea.vmem %s3, %s864
        %p866 = pneg %p124
        %p867 = pneg %p121
        %p868 = scmp.lt.s32.totalorder %s77, 1
        %s869 = scalar_select %p868, %s77, 1
        %s870 = smul.addr %s869, 2
        %s871 = smul.addr %s870, 8
        %s872 = scalar_lea.vmem %s5, %s871
        %p873 = pneg %p150
        %p874 = pneg %p147
        %p875 = scmp.lt.s32.totalorder %s77, 1
        %s876 = scalar_select %p875, %s77, 1
        %s877 = scalar_lea.vmem %s7, %s876
        %p878 = pneg %p176
        %p879 = pneg %p173
        %p880 = pneg %p197
        %p881 = pneg %p194
        %p882 = pneg %p218
        %p883 = pneg %p215
        %p884 = pneg %p239
        %p885 = pneg %p236
        %p886 = pneg %p260
        %p887 = pneg %p257
        %p888 = pneg %p281
        %p889 = pneg %p278
        %p890 = pneg %p302
        %p891 = pneg %p299
        %p892 = pneg %p323
        %p893 = pneg %p320
        %p894 = pneg %p344
        %p895 = pneg %p341
        %p896 = pneg %p365
        %p897 = pneg %p362
        %p898 = pneg %p386
        %p899 = pneg %p383
        %p900 = pneg %p407
        %p901 = pneg %p404
        %p902 = pneg %p428
        %p903 = pneg %p425
        %p904 = pneg %p449
        %p905 = pneg %p446
        %p906 = pneg %p470
        %p907 = pneg %p467
        %p908 = pneg %p491
        %p909 = pneg %p488
        %p910 = pneg %p512
        %p911 = pneg %p509
        %p912 = pneg %p533
        %p913 = pneg %p530
        %p914 = pneg %p554
        %p915 = pneg %p551
        %p916 = pneg %p575
        %p917 = pneg %p572
        %p918 = pneg %p596
        %p919 = pneg %p593
        %p920 = pneg %p617
        %p921 = pneg %p614
        %p922 = pneg %p638
        %p923 = pneg %p635
        %p924 = pneg %p659
        %p925 = pneg %p656
        %p926 = pneg %p680
        %p927 = pneg %p677
        %p928 = pneg %p706
        %p929 = pneg %p703
        %s930 = sand.u32 %s693, 1
        %s931 = scalar_lea.sflag [#allocation3], %s930
        %s932 = sand.u32 %s693, 1
        %s933 = smul.addr %s932, 8
        %s934 = scalar_lea.vmem [#allocation2], %s933
        %p935 = pneg %p732
        %p936 = pneg %p729
        %s937 = sand.u32 %s719, 1
        %s938 = scalar_lea.sflag [#allocation5], %s937
        %s939 = sand.u32 %s719, 1
        %s940 = smul.addr %s939, 16
        %s941 = scalar_lea.vmem [#allocation4], %s940
        %p942 = scmp.lt.s32.totalorder %s77, 1
        %s943 = scalar_select %p942, %s77, 1
        %s944 = smul.addr %s943, 8
        %s945 = scalar_lea.vmem %s1, %s944
        %p946 = scmp.lt.s32.totalorder %s77, 1
        %s947 = scalar_select %p946, %s77, 1
        %s948 = scalar_lea.vmem %s3, %s947
        %p949 = scmp.lt.s32.totalorder %s77, 1
        %s950 = scalar_select %p949, %s77, 1
        %s951 = smul.addr %s950, 2
        %s952 = smul.addr %s951, 8
        %s953 = scalar_lea.vmem %s5, %s952
        %p954 = scmp.lt.s32.totalorder %s77, 1
        %s955 = scalar_select %p954, %s77, 1
        %s956 = scalar_lea.vmem %s7, %s955
        %v957 = vld [vmem:[%s945] sm:$0xff]
        %v958 = vld [vmem:[%s953] sm:$0xff]
        %v959 = vld [vmem:[%s953 + $0x8] sm:$0xff]
        %v960 = vld [vmem:[%s9] sm:$0xff]
        %v961 = vld [vmem:[%s9 + $0x8] sm:$0xff]
        %v962 = vld [vmem:[%s9 + $0x10] sm:$0xff]
        %v963 = vld [vmem:[%s9 + $0x18] sm:$0xff]
        %v964 = vld [vmem:[%s11] sm:$0x1]
        %v966 = vlaneseq
        %v967 = vshrl.u32 %v966, 7
        %v968 = vsub.s32 0, %v967
        %v969 = vrot.slane %v964, %v968
        %vm971 = vcmask 261120
        %v973 = vsel %vm971, %v957, 0
        %975 = vmatprep.subr.mxu0 0.0
        %976 = vmatpush1.msra.mxu0 %v960
        %977 = vmatprep.subr.mxu0 0.0
        %978 = vmatpush1.msra.mxu0 %v961
        %979 = vmatprep.subr.mxu0 0.0
        %980 = vmatpush1.msra.mxu0 %v962
        %981 = vmatprep.subr.mxu0 0.0
        %982 = vmatpush1.msra.mxu0 %v963
        %983 = vmatprep.subr.mxu0 0.0
        %984 = vmatpush1.msra.mxu0 0.0
        %985 = vmatprep.subr.mxu0 0.0
        %986 = vmatpush1.msra.mxu0 0.0
        %987 = vmatprep.subr.mxu0 0.0
        %988 = vmatpush1.msra.mxu0 0.0
        %989 = vmatprep.subr.mxu0 0.0
        %990 = vmatpush1.msra.mxu0 0.0
        %991 = vmatprep.subr.mxu0 0.0
        %992 = vmatpush1.msra.mxu0 0.0
        %993 = vmatprep.subr.mxu0 0.0
        %994 = vmatpush1.msra.mxu0 0.0
        %995 = vmatprep.subr.mxu0 0.0
        %996 = vmatpush1.msra.mxu0 0.0
        %997 = vmatprep.subr.mxu0 0.0
        %998 = vmatpush1.msra.mxu0 0.0
        %999 = vmatprep.subr.mxu0 0.0
        %1000 = vmatpush1.msra.mxu0 0.0
        %1001 = vmatprep.subr.mxu0 0.0
        %1002 = vmatpush1.msra.mxu0 0.0
        %1003 = vmatprep.subr.mxu0 0.0
        %1004 = vmatpush1.msra.mxu0 0.0
        %1005 = vmatprep.subr.mxu0 0.0
        %1006 = vmatpush1.msra.mxu0 0.0
        %1007 = vmatprep.subr.mxu0 0.0
        %1008 = vmatpush1.msra.mxu0 0.0
        %1009 = vmatprep.subr.mxu0 0.0
        %1010 = vmatpush1.msra.mxu0 0.0
        %1011 = vmatprep.subr.mxu0 0.0
        %1012 = vmatpush1.msra.mxu0 0.0
        %1013 = vmatprep.subr.mxu0 0.0
        %1014 = vmatpush1.msra.mxu0 0.0
        %1015 = vmatprep.subr.mxu0 0.0
        %1016 = vmatpush1.msra.mxu0 0.0
        %1017 = vmatprep.subr.mxu0 0.0
        %1018 = vmatpush1.msra.mxu0 0.0
        %1019 = vmatprep.subr.mxu0 0.0
        %1020 = vmatpush1.msra.mxu0 0.0
        %1021 = vmatprep.subr.mxu0 0.0
        %1022 = vmatpush1.msra.mxu0 0.0
        %1023 = vmatprep.subr.mxu0 0.0
        %1024 = vmatpush1.msra.mxu0 0.0
        %1025 = vmatprep.subr.mxu0 0.0
        %1026 = vmatpush1.msra.mxu0 0.0
        %1027 = vmatprep.subr.mxu0 0.0
        %1028 = vmatpush1.msra.mxu0 0.0
        %1029 = vmatprep.subr.mxu0 0.0
        %1030 = vmatpush1.msra.mxu0 0.0
        %1031 = vmatprep.subr.mxu0 0.0
        %1032 = vmatpush1.msra.mxu0 0.0
        %1033 = vmatprep.subr.mxu0 0.0
        %1034 = vmatpush1.msra.mxu0 0.0
        %1035 = vmatprep.subr.mxu0 0.0
        %1036 = vmatpush1.msra.mxu0 0.0
        %1037 = vmatprep.subr.mxu0 0.0
        %1038 = vmatpush1.msra.mxu0 0.0
        %1039 = vmatprep.mubr.f32.mxu0 0.0
        %1040 = vmatmul.mubr.f32.gmra.mrb[0].mxu0 %v973
        %v1041 = vpop.f32.mrb[0].mxu0
        %v1042 = vadd.f32 %v969, %v1041
        %v1043 = vpop.f32.mrb[0].mxu0
        %1044 = vdwg.mxu0
        %v1045 = vld [vmem:[%s13] sm:$0xff]
        %v1046 = vld [vmem:[%s13 + $0x8] sm:$0xff]
        %v1047 = vld [vmem:[%s13 + $0x10] sm:$0xff]
        %v1048 = vld [vmem:[%s13 + $0x18] sm:$0xff]
        %v1049 = vld [vmem:[%s13 + $0x20] sm:$0xff]
        %v1050 = vld [vmem:[%s13 + $0x28] sm:$0xff]
        %v1051 = vld [vmem:[%s15] sm:$0x1]
        %v1053 = vlaneseq
        %v1054 = vshrl.u32 %v1053, 7
        %v1055 = vsub.s32 0, %v1054
        %v1056 = vrot.slane %v1051, %v1055
        %vm1058 = vcmask 392192
        %v1060 = vsel %vm1058, %v958, 0
        %v1063 = vsel %vm1058, %v959, 0
        %1065 = vmatprep.subr.mxu0 0.0
        %1066 = vmatpush1.msra.mxu0 %v1045
        %1067 = vmatprep.subr.mxu0 0.0
        %1068 = vmatpush1.msra.mxu0 %v1046
        %1069 = vmatprep.subr.mxu0 0.0
        %1070 = vmatpush1.msra.mxu0 %v1047
        %1071 = vmatprep.subr.mxu0 0.0
        %1072 = vmatpush1.msra.mxu0 %v1048
        %1073 = vmatprep.subr.mxu0 0.0
        %1074 = vmatpush1.msra.mxu0 %v1049
        %1075 = vmatprep.subr.mxu0 0.0
        %1076 = vmatpush1.msra.mxu0 %v1050
        %1077 = vmatprep.subr.mxu0 0.0
        %1078 = vmatpush1.msra.mxu0 0.0
        %1079 = vmatprep.subr.mxu0 0.0
        %1080 = vmatpush1.msra.mxu0 0.0
        %1081 = vmatprep.subr.mxu0 0.0
        %1082 = vmatpush1.msra.mxu0 0.0
        %1083 = vmatprep.subr.mxu0 0.0
        %1084 = vmatpush1.msra.mxu0 0.0
        %1085 = vmatprep.subr.mxu0 0.0
        %1086 = vmatpush1.msra.mxu0 0.0
        %1087 = vmatprep.subr.mxu0 0.0
        %1088 = vmatpush1.msra.mxu0 0.0
        %1089 = vmatprep.subr.mxu0 0.0
        %1090 = vmatpush1.msra.mxu0 0.0
        %1091 = vmatprep.subr.mxu0 0.0
        %1092 = vmatpush1.msra.mxu0 0.0
        %1093 = vmatprep.subr.mxu0 0.0
        %1094 = vmatpush1.msra.mxu0 0.0
        %1095 = vmatprep.subr.mxu0 0.0
        %1096 = vmatpush1.msra.mxu0 0.0
        %1097 = vmatprep.subr.mxu0 0.0
        %1098 = vmatpush1.msra.mxu0 0.0
        %1099 = vmatprep.subr.mxu0 0.0
        %1100 = vmatpush1.msra.mxu0 0.0
        %1101 = vmatprep.subr.mxu0 0.0
        %1102 = vmatpush1.msra.mxu0 0.0
        %1103 = vmatprep.subr.mxu0 0.0
        %1104 = vmatpush1.msra.mxu0 0.0
        %1105 = vmatprep.subr.mxu0 0.0
        %1106 = vmatpush1.msra.mxu0 0.0
        %1107 = vmatprep.subr.mxu0 0.0
        %1108 = vmatpush1.msra.mxu0 0.0
        %1109 = vmatprep.subr.mxu0 0.0
        %1110 = vmatpush1.msra.mxu0 0.0
        %1111 = vmatprep.subr.mxu0 0.0
        %1112 = vmatpush1.msra.mxu0 0.0
        %1113 = vmatprep.subr.mxu0 0.0
        %1114 = vmatpush1.msra.mxu0 0.0
        %1115 = vmatprep.subr.mxu0 0.0
        %1116 = vmatpush1.msra.mxu0 0.0
        %1117 = vmatprep.subr.mxu0 0.0
        %1118 = vmatpush1.msra.mxu0 0.0
        %1119 = vmatprep.subr.mxu0 0.0
        %1120 = vmatpush1.msra.mxu0 0.0
        %1121 = vmatprep.subr.mxu0 0.0
        %1122 = vmatpush1.msra.mxu0 0.0
        %1123 = vmatprep.subr.mxu0 0.0
        %1124 = vmatpush1.msra.mxu0 0.0
        %1125 = vmatprep.subr.mxu0 0.0
        %1126 = vmatpush1.msra.mxu0 0.0
        %1127 = vmatprep.subr.mxu0 0.0
        %1128 = vmatpush1.msra.mxu0 0.0
        %1129 = vmatprep.mubr.f32.mxu0 0.0
        %1130 = vmatmul.mubr.f32.gmra.mrb[0].mxu0 %v1060
        %v1131 = vpop.f32.mrb[0].mxu0
        %v1132 = vadd.f32 %v1056, %v1131
        %v1133 = vpop.f32.mrb[0].mxu0
        %1134 = vmatprep.mubr.f32.mxu0 0.0
        %1135 = vmatmul.mubr.f32.gmra.mrb[0].mxu0 %v1063
        %v1136 = vpop.f32.mrb[0].mxu0
        %v1137 = vadd.f32 %v1056, %v1136
        %v1138 = vpop.f32.mrb[0].mxu0
        %1139 = vdwg.mxu0
        %v1140 = vld [vmem:[%s948] sm:$0x1]
        %v1142 = vlaneseq
        %v1143 = vshrl.u32 %v1142, 7
        %v1144 = vsub.s32 0, %v1143
        %v1145 = vrot.slane %v1140, %v1144
        %v1147 = vld [vmem:[%s956] sm:$0x1]
        %v1149 = vlaneseq
        %v1150 = vshrl.u32 %v1149, 7
        %v1151 = vsub.s32 0, %v1150
        %v1152 = vrot.slane %v1147, %v1151
        %v1154 = vld [vmem:[%s17] sm:$0xff]
        %v1155 = vld [vmem:[%s17 + $0x8] sm:$0xff]
        %v1156 = vld [vmem:[%s17 + $0x10] sm:$0xff]
        %v1157 = vld [vmem:[%s17 + $0x18] sm:$0xff]
        %v1158 = vld [vmem:[%s25] sm:$0xff]
        %v1159 = vld [vmem:[%s25 + $0x8] sm:$0xff]
        %v1160 = vld [vmem:[%s25 + $0x10] sm:$0xff]
        %v1161 = vld [vmem:[%s25 + $0x18] sm:$0xff]
        %1163 = vrot.lane.b32.xlu0 %v1042, 96
        %v1164 = vpop.permute.xlu0 %1163
        %vm1165 = vcmask 64512
        %v1167 = vsel %vm1165, %v1132, 0
        %v1170 = vsel %vm1165, %v1137, 0
        %v1172 = vsel %vm1165, %v1164, 0
        %1174 = vmatprep.subr.mxu0 0.0
        %1175 = vmatpush1.xpose.msra.mxu0 %v1172
        %1176 = vmatprep.subr.mxu0 0.0
        %1177 = vmatpush1.xpose.msra.mxu0 0.0
        %1178 = vmatprep.subr.mxu0 0.0
        %1179 = vmatpush1.xpose.msra.mxu0 0.0
        %1180 = vmatprep.subr.mxu0 0.0
        %1181 = vmatpush1.xpose.msra.mxu0 0.0
        %1182 = vmatprep.subr.mxu0 0.0
        %1183 = vmatpush1.xpose.msra.mxu0 0.0
        %1184 = vmatprep.subr.mxu0 0.0
        %1185 = vmatpush1.xpose.msra.mxu0 0.0
        %1186 = vmatprep.subr.mxu0 0.0
        %1187 = vmatpush1.xpose.msra.mxu0 0.0
        %1188 = vmatprep.subr.mxu0 0.0
        %1189 = vmatpush1.xpose.msra.mxu0 0.0
        %1190 = vmatprep.subr.mxu0 0.0
        %1191 = vmatpush1.xpose.msra.mxu0 0.0
        %1192 = vmatprep.subr.mxu0 0.0
        %1193 = vmatpush1.xpose.msra.mxu0 0.0
        %1194 = vmatprep.subr.mxu0 0.0
        %1195 = vmatpush1.xpose.msra.mxu0 0.0
        %1196 = vmatprep.subr.mxu0 0.0
        %1197 = vmatpush1.xpose.msra.mxu0 0.0
        %1198 = vmatprep.subr.mxu0 0.0
        %1199 = vmatpush1.xpose.msra.mxu0 0.0
        %1200 = vmatprep.subr.mxu0 0.0
        %1201 = vmatpush1.xpose.msra.mxu0 0.0
        %1202 = vmatprep.subr.mxu0 0.0
        %1203 = vmatpush1.xpose.msra.mxu0 0.0
        %1204 = vmatprep.subr.mxu0 0.0
        %1205 = vmatpush1.xpose.msra.mxu0 0.0
        %1206 = vmatprep.subr.mxu0 0.0
        %1207 = vmatpush1.xpose.msra.mxu0 0.0
        %1208 = vmatprep.subr.mxu0 0.0
        %1209 = vmatpush1.xpose.msra.mxu0 0.0
        %1210 = vmatprep.subr.mxu0 0.0
        %1211 = vmatpush1.xpose.msra.mxu0 0.0
        %1212 = vmatprep.subr.mxu0 0.0
        %1213 = vmatpush1.xpose.msra.mxu0 0.0
        %1214 = vmatprep.subr.mxu0 0.0
        %1215 = vmatpush1.xpose.msra.mxu0 0.0
        %1216 = vmatprep.subr.mxu0 0.0
        %1217 = vmatpush1.xpose.msra.mxu0 0.0
        %1218 = vmatprep.subr.mxu0 0.0
        %1219 = vmatpush1.xpose.msra.mxu0 0.0
        %1220 = vmatprep.subr.mxu0 0.0
        %1221 = vmatpush1.xpose.msra.mxu0 0.0
        %1222 = vmatprep.subr.mxu0 0.0
        %1223 = vmatpush1.xpose.msra.mxu0 0.0
        %1224 = vmatprep.subr.mxu0 0.0
        %1225 = vmatpush1.xpose.msra.mxu0 0.0
        %1226 = vmatprep.subr.mxu0 0.0
        %1227 = vmatpush1.xpose.msra.mxu0 0.0
        %1228 = vmatprep.subr.mxu0 0.0
        %1229 = vmatpush1.xpose.msra.mxu0 0.0
        %1230 = vmatprep.subr.mxu0 0.0
        %1231 = vmatpush1.xpose.msra.mxu0 0.0
        %1232 = vmatprep.subr.mxu0 0.0
        %1233 = vmatpush1.xpose.msra.mxu0 0.0
        %1234 = vmatprep.subr.mxu0 0.0
        %1235 = vmatpush1.xpose.msra.mxu0 0.0
        %1236 = vmatprep.subr.mxu0 0.0
        %1237 = vmatpush1.xpose.msra.mxu0 0.0
        %1238 = vmatprep.mubr.f32.mxu0 0.0
        %1239 = vmatmul.mubr.f32.gmra.mrb[0].mxu0 %v1167
        %v1240 = vpop.f32.mrb[0].mxu0
        %v1241 = vadd.f32 0.0, %v1240
        %v1242 = vpop.f32.mrb[0].mxu0
        %1243 = vmatprep.mubr.f32.mxu0 0.0
        %1244 = vmatmul.mubr.f32.gmra.mrb[0].mxu0 %v1170
        %v1245 = vpop.f32.mrb[0].mxu0
        %v1246 = vadd.f32 0.0, %v1245
        %v1247 = vpop.f32.mrb[0].mxu0
        %1248 = vdwg.mxu0
        %v1249 = vmul.f32 %v1241, 0.35355338
        %v1250 = vmul.f32 %v1246, 0.35355338
        %v1251 = vadd.f32 %v1249, %v1145
        %v1252 = vadd.f32 %v1250, %v1145
        %v1253 = vsel %vm1165, %v1251, -inf
        %1254 = vmax.xlane.f32.xlu0 %v1253
        %v1255 = vpop.xlane.xlu0 %1254
        %v1256 = vsel %vm1165, %v1252, -inf
        %1257 = vmax.xlane.f32.xlu0 %v1256
        %v1258 = vpop.xlane.xlu0 %1257
        %v1259 = vsub.f32 %v1251, %v1255
        %v1260 = vsub.f32 %v1252, %v1258
        %v1261 = vmul.f32 %v1259, 1.442695
        %v1262 = vpow.pop %v1261
        %v1263 = vmul.f32 %v1260, 1.442695
        %v1264 = vpow.pop %v1263
        %v1265 = vsel %vm1165, %v1262, 0.0
        %1266 = vadd.xlane.f32.xlu0 %v1265
        %v1267 = vpop.xlane.xlu0 %1266
        %v1268 = vsel %vm1165, %v1264, 0.0
        %1269 = vadd.xlane.f32.xlu0 %v1268
        %v1270 = vpop.xlane.xlu0 %1269
        %v1271 = vrcp.pop %v1267
        %v1272 = vrcp.pop %v1270
        %v1273 = vmul.f32 %v1262, %v1271
        %v1274 = vmul.f32 %v1264, %v1272
        %1275 = vrot.lane.b32.xlu0 %v1042, 64
        %v1276 = vpop.permute.xlu0 %1275
        %v1279 = vsel %vm1165, %v1273, 0
        %v1282 = vsel %vm1165, %v1274, 0
        %1284 = vmatprep.subr.mxu0 0.0
        %1285 = vmatpush1.msra.mxu0 %v1276
        %1286 = vmatprep.subr.mxu0 0.0
        %1287 = vmatpush1.msra.mxu0 0.0
        %1288 = vmatprep.subr.mxu0 0.0
        %1289 = vmatpush1.msra.mxu0 0.0
        %1290 = vmatprep.subr.mxu0 0.0
        %1291 = vmatpush1.msra.mxu0 0.0
        %1292 = vmatprep.subr.mxu0 0.0
        %1293 = vmatpush1.msra.mxu0 0.0
        %1294 = vmatprep.subr.mxu0 0.0
        %1295 = vmatpush1.msra.mxu0 0.0
        %1296 = vmatprep.subr.mxu0 0.0
        %1297 = vmatpush1.msra.mxu0 0.0
        %1298 = vmatprep.subr.mxu0 0.0
        %1299 = vmatpush1.msra.mxu0 0.0
        %1300 = vmatprep.subr.mxu0 0.0
        %1301 = vmatpush1.msra.mxu0 0.0
        %1302 = vmatprep.subr.mxu0 0.0
        %1303 = vmatpush1.msra.mxu0 0.0
        %1304 = vmatprep.subr.mxu0 0.0
        %1305 = vmatpush1.msra.mxu0 0.0
        %1306 = vmatprep.subr.mxu0 0.0
        %1307 = vmatpush1.msra.mxu0 0.0
        %1308 = vmatprep.subr.mxu0 0.0
        %1309 = vmatpush1.msra.mxu0 0.0
        %1310 = vmatprep.subr.mxu0 0.0
        %1311 = vmatpush1.msra.mxu0 0.0
        %1312 = vmatprep.subr.mxu0 0.0
        %1313 = vmatpush1.msra.mxu0 0.0
        %1314 = vmatprep.subr.mxu0 0.0
        %1315 = vmatpush1.msra.mxu0 0.0
        %1316 = vmatprep.subr.mxu0 0.0
        %1317 = vmatpush1.msra.mxu0 0.0
        %1318 = vmatprep.subr.mxu0 0.0
        %1319 = vmatpush1.msra.mxu0 0.0
        %1320 = vmatprep.subr.mxu0 0.0
        %1321 = vmatpush1.msra.mxu0 0.0
        %1322 = vmatprep.subr.mxu0 0.0
        %1323 = vmatpush1.msra.mxu0 0.0
        %1324 = vmatprep.subr.mxu0 0.0
        %1325 = vmatpush1.msra.mxu0 0.0
        %1326 = vmatprep.subr.mxu0 0.0
        %1327 = vmatpush1.msra.mxu0 0.0
        %1328 = vmatprep.subr.mxu0 0.0
        %1329 = vmatpush1.msra.mxu0 0.0
        %1330 = vmatprep.subr.mxu0 0.0
        %1331 = vmatpush1.msra.mxu0 0.0
        %1332 = vmatprep.subr.mxu0 0.0
        %1333 = vmatpush1.msra.mxu0 0.0
        %1334 = vmatprep.subr.mxu0 0.0
        %1335 = vmatpush1.msra.mxu0 0.0
        %1336 = vmatprep.subr.mxu0 0.0
        %1337 = vmatpush1.msra.mxu0 0.0
        %1338 = vmatprep.subr.mxu0 0.0
        %1339 = vmatpush1.msra.mxu0 0.0
        %1340 = vmatprep.subr.mxu0 0.0
        %1341 = vmatpush1.msra.mxu0 0.0
        %1342 = vmatprep.subr.mxu0 0.0
        %1343 = vmatpush1.msra.mxu0 0.0
        %1344 = vmatprep.subr.mxu0 0.0
        %1345 = vmatpush1.msra.mxu0 0.0
        %1346 = vmatprep.subr.mxu0 0.0
        %1347 = vmatpush1.msra.mxu0 0.0
        %1348 = vmatprep.mubr.f32.mxu0 0.0
        %1349 = vmatmul.mubr.f32.gmra.mrb[0].mxu0 %v1279
        %v1350 = vpop.f32.mrb[0].mxu0
        %v1351 = vadd.f32 0.0, %v1350
        %v1352 = vpop.f32.mrb[0].mxu0
        %1353 = vmatprep.mubr.f32.mxu0 0.0
        %1354 = vmatmul.mubr.f32.gmra.mrb[0].mxu0 %v1282
        %v1355 = vpop.f32.mrb[0].mxu0
        %v1356 = vadd.f32 0.0, %v1355
        %v1357 = vpop.f32.mrb[0].mxu0
        %1358 = vdwg.mxu0
        %1359 = vrot.lane.b32.xlu0 %v1132, 96
        %v1360 = vpop.permute.xlu0 %1359
        %1361 = vrot.lane.b32.xlu0 %v1137, 96
        %v1362 = vpop.permute.xlu0 %1361
        %v1363 = vsel %vm1165, %v1042, 0
        %v1365 = vsel %vm1165, %v1360, 0
        %v1367 = vsel %vm1165, %v1362, 0
        %1369 = vmatprep.subr.mxu0 0.0
        %1370 = vmatpush1.xpose.msra.mxu0 %v1365
        %1371 = vmatprep.subr.mxu0 0.0
        %1372 = vmatpush1.xpose.msra.mxu0 %v1367
        %1373 = vmatprep.subr.mxu0 0.0
        %1374 = vmatpush1.xpose.msra.mxu0 0.0
        %1375 = vmatprep.subr.mxu0 0.0
        %1376 = vmatpush1.xpose.msra.mxu0 0.0
        %1377 = vmatprep.subr.mxu0 0.0
        %1378 = vmatpush1.xpose.msra.mxu0 0.0
        %1379 = vmatprep.subr.mxu0 0.0
        %1380 = vmatpush1.xpose.msra.mxu0 0.0
        %1381 = vmatprep.subr.mxu0 0.0
        %1382 = vmatpush1.xpose.msra.mxu0 0.0
        %1383 = vmatprep.subr.mxu0 0.0
        %1384 = vmatpush1.xpose.msra.mxu0 0.0
        %1385 = vmatprep.subr.mxu0 0.0
        %1386 = vmatpush1.xpose.msra.mxu0 0.0
        %1387 = vmatprep.subr.mxu0 0.0
        %1388 = vmatpush1.xpose.msra.mxu0 0.0
        %1389 = vmatprep.subr.mxu0 0.0
        %1390 = vmatpush1.xpose.msra.mxu0 0.0
        %1391 = vmatprep.subr.mxu0 0.0
        %1392 = vmatpush1.xpose.msra.mxu0 0.0
        %1393 = vmatprep.subr.mxu0 0.0
        %1394 = vmatpush1.xpose.msra.mxu0 0.0
        %1395 = vmatprep.subr.mxu0 0.0
        %1396 = vmatpush1.xpose.msra.mxu0 0.0
        %1397 = vmatprep.subr.mxu0 0.0
        %1398 = vmatpush1.xpose.msra.mxu0 0.0
        %1399 = vmatprep.subr.mxu0 0.0
        %1400 = vmatpush1.xpose.msra.mxu0 0.0
        %1401 = vmatprep.subr.mxu0 0.0
        %1402 = vmatpush1.xpose.msra.mxu0 0.0
        %1403 = vmatprep.subr.mxu0 0.0
        %1404 = vmatpush1.xpose.msra.mxu0 0.0
        %1405 = vmatprep.subr.mxu0 0.0
        %1406 = vmatpush1.xpose.msra.mxu0 0.0
        %1407 = vmatprep.subr.mxu0 0.0
        %1408 = vmatpush1.xpose.msra.mxu0 0.0
        %1409 = vmatprep.subr.mxu0 0.0
        %1410 = vmatpush1.xpose.msra.mxu0 0.0
        %1411 = vmatprep.subr.mxu0 0.0
        %1412 = vmatpush1.xpose.msra.mxu0 0.0
        %1413 = vmatprep.subr.mxu0 0.0
        %1414 = vmatpush1.xpose.msra.mxu0 0.0
        %1415 = vmatprep.subr.mxu0 0.0
        %1416 = vmatpush1.xpose.msra.mxu0 0.0
        %1417 = vmatprep.subr.mxu0 0.0
        %1418 = vmatpush1.xpose.msra.mxu0 0.0
        %1419 = vmatprep.subr.mxu0 0.0
        %1420 = vmatpush1.xpose.msra.mxu0 0.0
        %1421 = vmatprep.subr.mxu0 0.0
        %1422 = vmatpush1.xpose.msra.mxu0 0.0
        %1423 = vmatprep.subr.mxu0 0.0
        %1424 = vmatpush1.xpose.msra.mxu0 0.0
        %1425 = vmatprep.subr.mxu0 0.0
        %1426 = vmatpush1.xpose.msra.mxu0 0.0
        %1427 = vmatprep.subr.mxu0 0.0
        %1428 = vmatpush1.xpose.msra.mxu0 0.0
        %1429 = vmatprep.subr.mxu0 0.0
        %1430 = vmatpush1.xpose.msra.mxu0 0.0
        %1431 = vmatprep.subr.mxu0 0.0
        %1432 = vmatpush1.xpose.msra.mxu0 0.0
        %1433 = vmatprep.mubr.f32.mxu0 0.0
        %1434 = vmatmul.mubr.f32.gmra.mrb[0].mxu0 %v1363
        %v1435 = vpop.f32.mrb[0].mxu0
        %v1436 = vadd.f32 0.0, %v1435
        %v1437 = vpop.f32.mrb[0].mxu0
        %1438 = vdwg.mxu0
        %v1439 = vmul.f32 %v1436, 0.35355338
        %v1440 = vadd.f32 %v1439, %v1152
        %vm1441 = vcmask 130048
        %v1442 = vsel %vm1441, %v1440, -inf
        %1443 = vmax.xlane.f32.xlu0 %v1442
        %v1444 = vpop.xlane.xlu0 %1443
        %v1445 = vsub.f32 %v1440, %v1444
        %v1446 = vmul.f32 %v1445, 1.442695
        %v1447 = vpow.pop %v1446
        %v1448 = vsel %vm1441, %v1447, 0.0
        %1449 = vadd.xlane.f32.xlu0 %v1448
        %v1450 = vpop.xlane.xlu0 %1449
        %v1451 = vrcp.pop %v1450
        %v1452 = vmul.f32 %v1447, %v1451
        %1453 = vrot.lane.b32.xlu0 %v1132, 64
        %v1454 = vpop.permute.xlu0 %1453
        %1455 = vrot.lane.b32.xlu0 %v1137, 64
        %v1456 = vpop.permute.xlu0 %1455
        %v1460 = vsel %vm1441, %v1452, 0
        %1462 = vmatprep.subr.mxu0 0.0
        %1463 = vmatpush1.msra.mxu0 %v1454
        %1464 = vmatprep.subr.mxu0 0.0
        %1465 = vmatpush1.msra.mxu0 %v1456
        %1466 = vmatprep.subr.mxu0 0.0
        %1467 = vmatpush1.msra.mxu0 0.0
        %1468 = vmatprep.subr.mxu0 0.0
        %1469 = vmatpush1.msra.mxu0 0.0
        %1470 = vmatprep.subr.mxu0 0.0
        %1471 = vmatpush1.msra.mxu0 0.0
        %1472 = vmatprep.subr.mxu0 0.0
        %1473 = vmatpush1.msra.mxu0 0.0
        %1474 = vmatprep.subr.mxu0 0.0
        %1475 = vmatpush1.msra.mxu0 0.0
        %1476 = vmatprep.subr.mxu0 0.0
        %1477 = vmatpush1.msra.mxu0 0.0
        %1478 = vmatprep.subr.mxu0 0.0
        %1479 = vmatpush1.msra.mxu0 0.0
        %1480 = vmatprep.subr.mxu0 0.0
        %1481 = vmatpush1.msra.mxu0 0.0
        %1482 = vmatprep.subr.mxu0 0.0
        %1483 = vmatpush1.msra.mxu0 0.0
        %1484 = vmatprep.subr.mxu0 0.0
        %1485 = vmatpush1.msra.mxu0 0.0
        %1486 = vmatprep.subr.mxu0 0.0
        %1487 = vmatpush1.msra.mxu0 0.0
        %1488 = vmatprep.subr.mxu0 0.0
        %1489 = vmatpush1.msra.mxu0 0.0
        %1490 = vmatprep.subr.mxu0 0.0
        %1491 = vmatpush1.msra.mxu0 0.0
        %1492 = vmatprep.subr.mxu0 0.0
        %1493 = vmatpush1.msra.mxu0 0.0
        %1494 = vmatprep.subr.mxu0 0.0
        %1495 = vmatpush1.msra.mxu0 0.0
        %1496 = vmatprep.subr.mxu0 0.0
        %1497 = vmatpush1.msra.mxu0 0.0
        %1498 = vmatprep.subr.mxu0 0.0
        %1499 = vmatpush1.msra.mxu0 0.0
        %1500 = vmatprep.subr.mxu0 0.0
        %1501 = vmatpush1.msra.mxu0 0.0
        %1502 = vmatprep.subr.mxu0 0.0
        %1503 = vmatpush1.msra.mxu0 0.0
        %1504 = vmatprep.subr.mxu0 0.0
        %1505 = vmatpush1.msra.mxu0 0.0
        %1506 = vmatprep.subr.mxu0 0.0
        %1507 = vmatpush1.msra.mxu0 0.0
        %1508 = vmatprep.subr.mxu0 0.0
        %1509 = vmatpush1.msra.mxu0 0.0
        %1510 = vmatprep.subr.mxu0 0.0
        %1511 = vmatpush1.msra.mxu0 0.0
        %1512 = vmatprep.subr.mxu0 0.0
        %1513 = vmatpush1.msra.mxu0 0.0
        %1514 = vmatprep.subr.mxu0 0.0
        %1515 = vmatpush1.msra.mxu0 0.0
        %1516 = vmatprep.subr.mxu0 0.0
        %1517 = vmatpush1.msra.mxu0 0.0
        %1518 = vmatprep.subr.mxu0 0.0
        %1519 = vmatpush1.msra.mxu0 0.0
        %1520 = vmatprep.subr.mxu0 0.0
        %1521 = vmatpush1.msra.mxu0 0.0
        %1522 = vmatprep.subr.mxu0 0.0
        %1523 = vmatpush1.msra.mxu0 0.0
        %1524 = vmatprep.subr.mxu0 0.0
        %1525 = vmatpush1.msra.mxu0 0.0
        %1526 = vmatprep.mubr.f32.mxu0 0.0
        %1527 = vmatmul.mubr.f32.gmra.mrb[0].mxu0 %v1460
        %v1528 = vpop.f32.mrb[0].mxu0
        %v1529 = vadd.f32 0.0, %v1528
        %v1530 = vpop.f32.mrb[0].mxu0
        %1531 = vdwg.mxu0
        %1532 = vrot.lane.b32.xlu0 %v1132, 120
        %v1533 = vpop.permute.xlu0 %1532
        %1534 = vrot.lane.b32.xlu0 %v1137, 120
        %v1535 = vpop.permute.xlu0 %1534
        %1536 = vrot.lane.b32.xlu0 %v1042, 88
        %v1537 = vpop.permute.xlu0 %1536
        %v1538 = vsel %vm1165, %v1533, 0
        %v1540 = vsel %vm1165, %v1535, 0
        %v1542 = vsel %vm1165, %v1537, 0
        %1544 = vmatprep.subr.mxu0 0.0
        %1545 = vmatpush1.xpose.msra.mxu0 %v1542
        %1546 = vmatprep.subr.mxu0 0.0
        %1547 = vmatpush1.xpose.msra.mxu0 0.0
        %1548 = vmatprep.subr.mxu0 0.0
        %1549 = vmatpush1.xpose.msra.mxu0 0.0
        %1550 = vmatprep.subr.mxu0 0.0
        %1551 = vmatpush1.xpose.msra.mxu0 0.0
        %1552 = vmatprep.subr.mxu0 0.0
        %1553 = vmatpush1.xpose.msra.mxu0 0.0
        %1554 = vmatprep.subr.mxu0 0.0
        %1555 = vmatpush1.xpose.msra.mxu0 0.0
        %1556 = vmatprep.subr.mxu0 0.0
        %1557 = vmatpush1.xpose.msra.mxu0 0.0
        %1558 = vmatprep.subr.mxu0 0.0
        %1559 = vmatpush1.xpose.msra.mxu0 0.0
        %1560 = vmatprep.subr.mxu0 0.0
        %1561 = vmatpush1.xpose.msra.mxu0 0.0
        %1562 = vmatprep.subr.mxu0 0.0
        %1563 = vmatpush1.xpose.msra.mxu0 0.0
        %1564 = vmatprep.subr.mxu0 0.0
        %1565 = vmatpush1.xpose.msra.mxu0 0.0
        %1566 = vmatprep.subr.mxu0 0.0
        %1567 = vmatpush1.xpose.msra.mxu0 0.0
        %1568 = vmatprep.subr.mxu0 0.0
        %1569 = vmatpush1.xpose.msra.mxu0 0.0
        %1570 = vmatprep.subr.mxu0 0.0
        %1571 = vmatpush1.xpose.msra.mxu0 0.0
        %1572 = vmatprep.subr.mxu0 0.0
        %1573 = vmatpush1.xpose.msra.mxu0 0.0
        %1574 = vmatprep.subr.mxu0 0.0
        %1575 = vmatpush1.xpose.msra.mxu0 0.0
        %1576 = vmatprep.subr.mxu0 0.0
        %1577 = vmatpush1.xpose.msra.mxu0 0.0
        %1578 = vmatprep.subr.mxu0 0.0
        %1579 = vmatpush1.xpose.msra.mxu0 0.0
        %1580 = vmatprep.subr.mxu0 0.0
        %1581 = vmatpush1.xpose.msra.mxu0 0.0
        %1582 = vmatprep.subr.mxu0 0.0
        %1583 = vmatpush1.xpose.msra.mxu0 0.0
        %1584 = vmatprep.subr.mxu0 0.0
        %1585 = vmatpush1.xpose.msra.mxu0 0.0
        %1586 = vmatprep.subr.mxu0 0.0
        %1587 = vmatpush1.xpose.msra.mxu0 0.0
        %1588 = vmatprep.subr.mxu0 0.0
        %1589 = vmatpush1.xpose.msra.mxu0 0.0
        %1590 = vmatprep.subr.mxu0 0.0
        %1591 = vmatpush1.xpose.msra.mxu0 0.0
        %1592 = vmatprep.subr.mxu0 0.0
        %1593 = vmatpush1.xpose.msra.mxu0 0.0
        %1594 = vmatprep.subr.mxu0 0.0
        %1595 = vmatpush1.xpose.msra.mxu0 0.0
        %1596 = vmatprep.subr.mxu0 0.0
        %1597 = vmatpush1.xpose.msra.mxu0 0.0
        %1598 = vmatprep.subr.mxu0 0.0
        %1599 = vmatpush1.xpose.msra.mxu0 0.0
        %1600 = vmatprep.subr.mxu0 0.0
        %1601 = vmatpush1.xpose.msra.mxu0 0.0
        %1602 = vmatprep.subr.mxu0 0.0
        %1603 = vmatpush1.xpose.msra.mxu0 0.0
        %1604 = vmatprep.subr.mxu0 0.0
        %1605 = vmatpush1.xpose.msra.mxu0 0.0
        %1606 = vmatprep.subr.mxu0 0.0
        %1607 = vmatpush1.xpose.msra.mxu0 0.0
        %1608 = vmatprep.mubr.f32.mxu0 0.0
        %1609 = vmatmul.mubr.f32.gmra.mrb[0].mxu0 %v1538
        %v1610 = vpop.f32.mrb[0].mxu0
        %v1611 = vadd.f32 0.0, %v1610
        %v1612 = vpop.f32.mrb[0].mxu0
        %1613 = vmatprep.mubr.f32.mxu0 0.0
        %1614 = vmatmul.mubr.f32.gmra.mrb[0].mxu0 %v1540
        %v1615 = vpop.f32.mrb[0].mxu0
        %v1616 = vadd.f32 0.0, %v1615
        %v1617 = vpop.f32.mrb[0].mxu0
        %1618 = vdwg.mxu0
        %v1619 = vmul.f32 %v1611, 0.35355338
        %v1620 = vmul.f32 %v1616, 0.35355338
        %v1621 = vadd.f32 %v1619, %v1145
        %v1622 = vadd.f32 %v1620, %v1145
        %v1623 = vsel %vm1165, %v1621, -inf
        %1624 = vmax.xlane.f32.xlu0 %v1623
        %v1625 = vpop.xlane.xlu0 %1624
        %v1626 = vsel %vm1165, %v1622, -inf
        %1627 = vmax.xlane.f32.xlu0 %v1626
        %v1628 = vpop.xlane.xlu0 %1627
        %v1629 = vsub.f32 %v1621, %v1625
        %v1630 = vsub.f32 %v1622, %v1628
        %v1631 = vmul.f32 %v1629, 1.442695
        %v1632 = vpow.pop %v1631
        %v1633 = vmul.f32 %v1630, 1.442695
        %v1634 = vpow.pop %v1633
        %v1635 = vsel %vm1165, %v1632, 0.0
        %1636 = vadd.xlane.f32.xlu0 %v1635
        %v1637 = vpop.xlane.xlu0 %1636
        %v1638 = vsel %vm1165, %v1634, 0.0
        %1639 = vadd.xlane.f32.xlu0 %v1638
        %v1640 = vpop.xlane.xlu0 %1639
        %v1641 = vrcp.pop %v1637
        %v1642 = vrcp.pop %v1640
        %v1643 = vmul.f32 %v1632, %v1641
        %v1644 = vmul.f32 %v1634, %v1642
        %1645 = vrot.lane.b32.xlu0 %v1042, 56
        %v1646 = vpop.permute.xlu0 %1645
        %v1649 = vsel %vm1165, %v1643, 0
        %v1652 = vsel %vm1165, %v1644, 0
        %1654 = vmatprep.subr.mxu0 0.0
        %1655 = vmatpush1.msra.mxu0 %v1646
        %1656 = vmatprep.subr.mxu0 0.0
        %1657 = vmatpush1.msra.mxu0 0.0
        %1658 = vmatprep.subr.mxu0 0.0
        %1659 = vmatpush1.msra.mxu0 0.0
        %1660 = vmatprep.subr.mxu0 0.0
        %1661 = vmatpush1.msra.mxu0 0.0
        %1662 = vmatprep.subr.mxu0 0.0
        %1663 = vmatpush1.msra.mxu0 0.0
        %1664 = vmatprep.subr.mxu0 0.0
        %1665 = vmatpush1.msra.mxu0 0.0
        %1666 = vmatprep.subr.mxu0 0.0
        %1667 = vmatpush1.msra.mxu0 0.0
        %1668 = vmatprep.subr.mxu0 0.0
        %1669 = vmatpush1.msra.mxu0 0.0
        %1670 = vmatprep.subr.mxu0 0.0
        %1671 = vmatpush1.msra.mxu0 0.0
        %1672 = vmatprep.subr.mxu0 0.0
        %1673 = vmatpush1.msra.mxu0 0.0
        %1674 = vmatprep.subr.mxu0 0.0
        %1675 = vmatpush1.msra.mxu0 0.0
        %1676 = vmatprep.subr.mxu0 0.0
        %1677 = vmatpush1.msra.mxu0 0.0
        %1678 = vmatprep.subr.mxu0 0.0
        %1679 = vmatpush1.msra.mxu0 0.0
        %1680 = vmatprep.subr.mxu0 0.0
        %1681 = vmatpush1.msra.mxu0 0.0
        %1682 = vmatprep.subr.mxu0 0.0
        %1683 = vmatpush1.msra.mxu0 0.0
        %1684 = vmatprep.subr.mxu0 0.0
        %1685 = vmatpush1.msra.mxu0 0.0
        %1686 = vmatprep.subr.mxu0 0.0
        %1687 = vmatpush1.msra.mxu0 0.0
        %1688 = vmatprep.subr.mxu0 0.0
        %1689 = vmatpush1.msra.mxu0 0.0
        %1690 = vmatprep.subr.mxu0 0.0
        %1691 = vmatpush1.msra.mxu0 0.0
        %1692 = vmatprep.subr.mxu0 0.0
        %1693 = vmatpush1.msra.mxu0 0.0
        %1694 = vmatprep.subr.mxu0 0.0
        %1695 = vmatpush1.msra.mxu0 0.0
        %1696 = vmatprep.subr.mxu0 0.0
        %1697 = vmatpush1.msra.mxu0 0.0
        %1698 = vmatprep.subr.mxu0 0.0
        %1699 = vmatpush1.msra.mxu0 0.0
        %1700 = vmatprep.subr.mxu0 0.0
        %1701 = vmatpush1.msra.mxu0 0.0
        %1702 = vmatprep.subr.mxu0 0.0
        %1703 = vmatpush1.msra.mxu0 0.0
        %1704 = vmatprep.subr.mxu0 0.0
        %1705 = vmatpush1.msra.mxu0 0.0
        %1706 = vmatprep.subr.mxu0 0.0
        %1707 = vmatpush1.msra.mxu0 0.0
        %1708 = vmatprep.subr.mxu0 0.0
        %1709 = vmatpush1.msra.mxu0 0.0
        %1710 = vmatprep.subr.mxu0 0.0
        %1711 = vmatpush1.msra.mxu0 0.0
        %1712 = vmatprep.subr.mxu0 0.0
        %1713 = vmatpush1.msra.mxu0 0.0
        %1714 = vmatprep.subr.mxu0 0.0
        %1715 = vmatpush1.msra.mxu0 0.0
        %1716 = vmatprep.subr.mxu0 0.0
        %1717 = vmatpush1.msra.mxu0 0.0
        %1718 = vmatprep.mubr.f32.mxu0 0.0
        %1719 = vmatmul.mubr.f32.gmra.mrb[0].mxu0 %v1649
        %v1720 = vpop.f32.mrb[0].mxu0
        %v1721 = vadd.f32 0.0, %v1720
        %v1722 = vpop.f32.mrb[0].mxu0
        %1723 = vmatprep.mubr.f32.mxu0 0.0
        %1724 = vmatmul.mubr.f32.gmra.mrb[0].mxu0 %v1652
        %v1725 = vpop.f32.mrb[0].mxu0
        %v1726 = vadd.f32 0.0, %v1725
        %v1727 = vpop.f32.mrb[0].mxu0
        %1728 = vdwg.mxu0
        %v1730 = vsel %vm1165, %v1721, 0
        %v1733 = vsel %vm1165, %v1726, 0
        %1735 = vmatprep.subr.mxu0 0.0
        %1736 = vmatpush1.msra.mxu0 %v1159
        %1737 = vmatprep.subr.mxu0 0.0
        %1738 = vmatpush1.msra.mxu0 0.0
        %1739 = vmatprep.subr.mxu0 0.0
        %1740 = vmatpush1.msra.mxu0 0.0
        %1741 = vmatprep.subr.mxu0 0.0
        %1742 = vmatpush1.msra.mxu0 0.0
        %1743 = vmatprep.subr.mxu0 0.0
        %1744 = vmatpush1.msra.mxu0 0.0
        %1745 = vmatprep.subr.mxu0 0.0
        %1746 = vmatpush1.msra.mxu0 0.0
        %1747 = vmatprep.subr.mxu0 0.0
        %1748 = vmatpush1.msra.mxu0 0.0
        %1749 = vmatprep.subr.mxu0 0.0
        %1750 = vmatpush1.msra.mxu0 0.0
        %1751 = vmatprep.subr.mxu0 0.0
        %1752 = vmatpush1.msra.mxu0 0.0
        %1753 = vmatprep.subr.mxu0 0.0
        %1754 = vmatpush1.msra.mxu0 0.0
        %1755 = vmatprep.subr.mxu0 0.0
        %1756 = vmatpush1.msra.mxu0 0.0
        %1757 = vmatprep.subr.mxu0 0.0
        %1758 = vmatpush1.msra.mxu0 0.0
        %1759 = vmatprep.subr.mxu0 0.0
        %1760 = vmatpush1.msra.mxu0 0.0
        %1761 = vmatprep.subr.mxu0 0.0
        %1762 = vmatpush1.msra.mxu0 0.0
        %1763 = vmatprep.subr.mxu0 0.0
        %1764 = vmatpush1.msra.mxu0 0.0
        %1765 = vmatprep.subr.mxu0 0.0
        %1766 = vmatpush1.msra.mxu0 0.0
        %1767 = vmatprep.subr.mxu0 0.0
        %1768 = vmatpush1.msra.mxu0 0.0
        %1769 = vmatprep.subr.mxu0 0.0
        %1770 = vmatpush1.msra.mxu0 0.0
        %1771 = vmatprep.subr.mxu0 0.0
        %1772 = vmatpush1.msra.mxu0 0.0
        %1773 = vmatprep.subr.mxu0 0.0
        %1774 = vmatpush1.msra.mxu0 0.0
        %1775 = vmatprep.subr.mxu0 0.0
        %1776 = vmatpush1.msra.mxu0 0.0
        %1777 = vmatprep.subr.mxu0 0.0
        %1778 = vmatpush1.msra.mxu0 0.0
        %1779 = vmatprep.subr.mxu0 0.0
        %1780 = vmatpush1.msra.mxu0 0.0
        %1781 = vmatprep.subr.mxu0 0.0
        %1782 = vmatpush1.msra.mxu0 0.0
        %1783 = vmatprep.subr.mxu0 0.0
        %1784 = vmatpush1.msra.mxu0 0.0
        %1785 = vmatprep.subr.mxu0 0.0
        %1786 = vmatpush1.msra.mxu0 0.0
        %1787 = vmatprep.subr.mxu0 0.0
        %1788 = vmatpush1.msra.mxu0 0.0
        %1789 = vmatprep.subr.mxu0 0.0
        %1790 = vmatpush1.msra.mxu0 0.0
        %1791 = vmatprep.subr.mxu0 0.0
        %1792 = vmatpush1.msra.mxu0 0.0
        %1793 = vmatprep.subr.mxu0 0.0
        %1794 = vmatpush1.msra.mxu0 0.0
        %1795 = vmatprep.subr.mxu0 0.0
        %1796 = vmatpush1.msra.mxu0 0.0
        %1797 = vmatprep.subr.mxu0 0.0
        %1798 = vmatpush1.msra.mxu0 0.0
        %1799 = vmatprep.mubr.f32.mxu0 0.0
        %1800 = vmatmul.mubr.f32.gmra.mrb[0].mxu0 %v1730
        %v1801 = vpop.f32.mrb[0].mxu0
        %v1802 = vadd.f32 0.0, %v1801
        %v1803 = vpop.f32.mrb[0].mxu0
        %1804 = vmatprep.mubr.f32.mxu0 0.0
        %1805 = vmatmul.mubr.f32.gmra.mrb[0].mxu0 %v1733
        %v1806 = vpop.f32.mrb[0].mxu0
        %v1807 = vadd.f32 0.0, %v1806
        %v1808 = vpop.f32.mrb[0].mxu0
        %1809 = vdwg.mxu0
        %v1811 = vsel %vm1165, %v1351, 0
        %v1814 = vsel %vm1165, %v1356, 0
        %1816 = vmatprep.subr.mxu0 0.0
        %1817 = vmatpush1.msra.mxu0 %v1158
        %1818 = vmatprep.subr.mxu0 0.0
        %1819 = vmatpush1.msra.mxu0 0.0
        %1820 = vmatprep.subr.mxu0 0.0
        %1821 = vmatpush1.msra.mxu0 0.0
        %1822 = vmatprep.subr.mxu0 0.0
        %1823 = vmatpush1.msra.mxu0 0.0
        %1824 = vmatprep.subr.mxu0 0.0
        %1825 = vmatpush1.msra.mxu0 0.0
        %1826 = vmatprep.subr.mxu0 0.0
        %1827 = vmatpush1.msra.mxu0 0.0
        %1828 = vmatprep.subr.mxu0 0.0
        %1829 = vmatpush1.msra.mxu0 0.0
        %1830 = vmatprep.subr.mxu0 0.0
        %1831 = vmatpush1.msra.mxu0 0.0
        %1832 = vmatprep.subr.mxu0 0.0
        %1833 = vmatpush1.msra.mxu0 0.0
        %1834 = vmatprep.subr.mxu0 0.0
        %1835 = vmatpush1.msra.mxu0 0.0
        %1836 = vmatprep.subr.mxu0 0.0
        %1837 = vmatpush1.msra.mxu0 0.0
        %1838 = vmatprep.subr.mxu0 0.0
        %1839 = vmatpush1.msra.mxu0 0.0
        %1840 = vmatprep.subr.mxu0 0.0
        %1841 = vmatpush1.msra.mxu0 0.0
        %1842 = vmatprep.subr.mxu0 0.0
        %1843 = vmatpush1.msra.mxu0 0.0
        %1844 = vmatprep.subr.mxu0 0.0
        %1845 = vmatpush1.msra.mxu0 0.0
        %1846 = vmatprep.subr.mxu0 0.0
        %1847 = vmatpush1.msra.mxu0 0.0
        %1848 = vmatprep.subr.mxu0 0.0
        %1849 = vmatpush1.msra.mxu0 0.0
        %1850 = vmatprep.subr.mxu0 0.0
        %1851 = vmatpush1.msra.mxu0 0.0
        %1852 = vmatprep.subr.mxu0 0.0
        %1853 = vmatpush1.msra.mxu0 0.0
        %1854 = vmatprep.subr.mxu0 0.0
        %1855 = vmatpush1.msra.mxu0 0.0
        %1856 = vmatprep.subr.mxu0 0.0
        %1857 = vmatpush1.msra.mxu0 0.0
        %1858 = vmatprep.subr.mxu0 0.0
        %1859 = vmatpush1.msra.mxu0 0.0
        %1860 = vmatprep.subr.mxu0 0.0
        %1861 = vmatpush1.msra.mxu0 0.0
        %1862 = vmatprep.subr.mxu0 0.0
        %1863 = vmatpush1.msra.mxu0 0.0
        %1864 = vmatprep.subr.mxu0 0.0
        %1865 = vmatpush1.msra.mxu0 0.0
        %1866 = vmatprep.subr.mxu0 0.0
        %1867 = vmatpush1.msra.mxu0 0.0
        %1868 = vmatprep.subr.mxu0 0.0
        %1869 = vmatpush1.msra.mxu0 0.0
        %1870 = vmatprep.subr.mxu0 0.0
        %1871 = vmatpush1.msra.mxu0 0.0
        %1872 = vmatprep.subr.mxu0 0.0
        %1873 = vmatpush1.msra.mxu0 0.0
        %1874 = vmatprep.subr.mxu0 0.0
        %1875 = vmatpush1.msra.mxu0 0.0
        %1876 = vmatprep.subr.mxu0 0.0
        %1877 = vmatpush1.msra.mxu0 0.0
        %1878 = vmatprep.subr.mxu0 0.0
        %1879 = vmatpush1.msra.mxu0 0.0
        %1880 = vmatprep.mubr.f32.mxu0 0.0
        %1881 = vmatmul.mubr.f32.gmra.mrb[0].mxu0 %v1811
        %v1882 = vpop.f32.mrb[0].mxu0
        %v1883 = vadd.f32 %v1802, %v1882
        %v1884 = vpop.f32.mrb[0].mxu0
        %1885 = vmatprep.mubr.f32.mxu0 0.0
        %1886 = vmatmul.mubr.f32.gmra.mrb[0].mxu0 %v1814
        %v1887 = vpop.f32.mrb[0].mxu0
        %v1888 = vadd.f32 %v1807, %v1887
        %v1889 = vpop.f32.mrb[0].mxu0
        %1890 = vdwg.mxu0
        %1891 = vrot.lane.b32.xlu0 %v1042, 120
        %v1892 = vpop.permute.xlu0 %1891
        %1893 = vrot.lane.b32.xlu0 %v1132, 88
        %v1894 = vpop.permute.xlu0 %1893
        %1895 = vrot.lane.b32.xlu0 %v1137, 88
        %v1896 = vpop.permute.xlu0 %1895
        %v1897 = vsel %vm1165, %v1892, 0
        %v1899 = vsel %vm1165, %v1894, 0
        %v1901 = vsel %vm1165, %v1896, 0
        %1903 = vmatprep.subr.mxu0 0.0
        %1904 = vmatpush1.xpose.msra.mxu0 %v1899
        %1905 = vmatprep.subr.mxu0 0.0
        %1906 = vmatpush1.xpose.msra.mxu0 %v1901
        %1907 = vmatprep.subr.mxu0 0.0
        %1908 = vmatpush1.xpose.msra.mxu0 0.0
        %1909 = vmatprep.subr.mxu0 0.0
        %1910 = vmatpush1.xpose.msra.mxu0 0.0
        %1911 = vmatprep.subr.mxu0 0.0
        %1912 = vmatpush1.xpose.msra.mxu0 0.0
        %1913 = vmatprep.subr.mxu0 0.0
        %1914 = vmatpush1.xpose.msra.mxu0 0.0
        %1915 = vmatprep.subr.mxu0 0.0
        %1916 = vmatpush1.xpose.msra.mxu0 0.0
        %1917 = vmatprep.subr.mxu0 0.0
        %1918 = vmatpush1.xpose.msra.mxu0 0.0
        %1919 = vmatprep.subr.mxu0 0.0
        %1920 = vmatpush1.xpose.msra.mxu0 0.0
        %1921 = vmatprep.subr.mxu0 0.0
        %1922 = vmatpush1.xpose.msra.mxu0 0.0
        %1923 = vmatprep.subr.mxu0 0.0
        %1924 = vmatpush1.xpose.msra.mxu0 0.0
        %1925 = vmatprep.subr.mxu0 0.0
        %1926 = vmatpush1.xpose.msra.mxu0 0.0
        %1927 = vmatprep.subr.mxu0 0.0
        %1928 = vmatpush1.xpose.msra.mxu0 0.0
        %1929 = vmatprep.subr.mxu0 0.0
        %1930 = vmatpush1.xpose.msra.mxu0 0.0
        %1931 = vmatprep.subr.mxu0 0.0
        %1932 = vmatpush1.xpose.msra.mxu0 0.0
        %1933 = vmatprep.subr.mxu0 0.0
        %1934 = vmatpush1.xpose.msra.mxu0 0.0
        %1935 = vmatprep.subr.mxu0 0.0
        %1936 = vmatpush1.xpose.msra.mxu0 0.0
        %1937 = vmatprep.subr.mxu0 0.0
        %1938 = vmatpush1.xpose.msra.mxu0 0.0
        %1939 = vmatprep.subr.mxu0 0.0
        %1940 = vmatpush1.xpose.msra.mxu0 0.0
        %1941 = vmatprep.subr.mxu0 0.0
        %1942 = vmatpush1.xpose.msra.mxu0 0.0
        %1943 = vmatprep.subr.mxu0 0.0
        %1944 = vmatpush1.xpose.msra.mxu0 0.0
        %1945 = vmatprep.subr.mxu0 0.0
        %1946 = vmatpush1.xpose.msra.mxu0 0.0
        %1947 = vmatprep.subr.mxu0 0.0
        %1948 = vmatpush1.xpose.msra.mxu0 0.0
        %1949 = vmatprep.subr.mxu0 0.0
        %1950 = vmatpush1.xpose.msra.mxu0 0.0
        %1951 = vmatprep.subr.mxu0 0.0
        %1952 = vmatpush1.xpose.msra.mxu0 0.0
        %1953 = vmatprep.subr.mxu0 0.0
        %1954 = vmatpush1.xpose.msra.mxu0 0.0
        %1955 = vmatprep.subr.mxu0 0.0
        %1956 = vmatpush1.xpose.msra.mxu0 0.0
        %1957 = vmatprep.subr.mxu0 0.0
        %1958 = vmatpush1.xpose.msra.mxu0 0.0
        %1959 = vmatprep.subr.mxu0 0.0
        %1960 = vmatpush1.xpose.msra.mxu0 0.0
        %1961 = vmatprep.subr.mxu0 0.0
        %1962 = vmatpush1.xpose.msra.mxu0 0.0
        %1963 = vmatprep.subr.mxu0 0.0
        %1964 = vmatpush1.xpose.msra.mxu0 0.0
        %1965 = vmatprep.subr.mxu0 0.0
        %1966 = vmatpush1.xpose.msra.mxu0 0.0
        %1967 = vmatprep.mubr.f32.mxu0 0.0
        %1968 = vmatmul.mubr.f32.gmra.mrb[0].mxu0 %v1897
        %v1969 = vpop.f32.mrb[0].mxu0
        %v1970 = vadd.f32 0.0, %v1969
        %v1971 = vpop.f32.mrb[0].mxu0
        %1972 = vdwg.mxu0
        %v1973 = vmul.f32 %v1970, 0.35355338
        %v1974 = vadd.f32 %v1973, %v1152
        %v1975 = vsel %vm1441, %v1974, -inf
        %1976 = vmax.xlane.f32.xlu0 %v1975
        %v1977 = vpop.xlane.xlu0 %1976
        %v1978 = vsub.f32 %v1974, %v1977
        %v1979 = vmul.f32 %v1978, 1.442695
        %v1980 = vpow.pop %v1979
        %v1981 = vsel %vm1441, %v1980, 0.0
        %1982 = vadd.xlane.f32.xlu0 %v1981
        %v1983 = vpop.xlane.xlu0 %1982
        %v1984 = vrcp.pop %v1983
        %v1985 = vmul.f32 %v1980, %v1984
        %1986 = vrot.lane.b32.xlu0 %v1132, 56
        %v1987 = vpop.permute.xlu0 %1986
        %1988 = vrot.lane.b32.xlu0 %v1137, 56
        %v1989 = vpop.permute.xlu0 %1988
        %v1993 = vsel %vm1441, %v1985, 0
        %1995 = vmatprep.subr.mxu0 0.0
        %1996 = vmatpush1.msra.mxu0 %v1987
        %1997 = vmatprep.subr.mxu0 0.0
        %1998 = vmatpush1.msra.mxu0 %v1989
        %1999 = vmatprep.subr.mxu0 0.0
        %2000 = vmatpush1.msra.mxu0 0.0
        %2001 = vmatprep.subr.mxu0 0.0
        %2002 = vmatpush1.msra.mxu0 0.0
        %2003 = vmatprep.subr.mxu0 0.0
        %2004 = vmatpush1.msra.mxu0 0.0
        %2005 = vmatprep.subr.mxu0 0.0
        %2006 = vmatpush1.msra.mxu0 0.0
        %2007 = vmatprep.subr.mxu0 0.0
        %2008 = vmatpush1.msra.mxu0 0.0
        %2009 = vmatprep.subr.mxu0 0.0
        %2010 = vmatpush1.msra.mxu0 0.0
        %2011 = vmatprep.subr.mxu0 0.0
        %2012 = vmatpush1.msra.mxu0 0.0
        %2013 = vmatprep.subr.mxu0 0.0
        %2014 = vmatpush1.msra.mxu0 0.0
        %2015 = vmatprep.subr.mxu0 0.0
        %2016 = vmatpush1.msra.mxu0 0.0
        %2017 = vmatprep.subr.mxu0 0.0
        %2018 = vmatpush1.msra.mxu0 0.0
        %2019 = vmatprep.subr.mxu0 0.0
        %2020 = vmatpush1.msra.mxu0 0.0
        %2021 = vmatprep.subr.mxu0 0.0
        %2022 = vmatpush1.msra.mxu0 0.0
        %2023 = vmatprep.subr.mxu0 0.0
        %2024 = vmatpush1.msra.mxu0 0.0
        %2025 = vmatprep.subr.mxu0 0.0
        %2026 = vmatpush1.msra.mxu0 0.0
        %2027 = vmatprep.subr.mxu0 0.0
        %2028 = vmatpush1.msra.mxu0 0.0
        %2029 = vmatprep.subr.mxu0 0.0
        %2030 = vmatpush1.msra.mxu0 0.0
        %2031 = vmatprep.subr.mxu0 0.0
        %2032 = vmatpush1.msra.mxu0 0.0
        %2033 = vmatprep.subr.mxu0 0.0
        %2034 = vmatpush1.msra.mxu0 0.0
        %2035 = vmatprep.subr.mxu0 0.0
        %2036 = vmatpush1.msra.mxu0 0.0
        %2037 = vmatprep.subr.mxu0 0.0
        %2038 = vmatpush1.msra.mxu0 0.0
        %2039 = vmatprep.subr.mxu0 0.0
        %2040 = vmatpush1.msra.mxu0 0.0
        %2041 = vmatprep.subr.mxu0 0.0
        %2042 = vmatpush1.msra.mxu0 0.0
        %2043 = vmatprep.subr.mxu0 0.0
        %2044 = vmatpush1.msra.mxu0 0.0
        %2045 = vmatprep.subr.mxu0 0.0
        %2046 = vmatpush1.msra.mxu0 0.0
        %2047 = vmatprep.subr.mxu0 0.0
        %2048 = vmatpush1.msra.mxu0 0.0
        %2049 = vmatprep.subr.mxu0 0.0
        %2050 = vmatpush1.msra.mxu0 0.0
        %2051 = vmatprep.subr.mxu0 0.0
        %2052 = vmatpush1.msra.mxu0 0.0
        %2053 = vmatprep.subr.mxu0 0.0
        %2054 = vmatpush1.msra.mxu0 0.0
        %2055 = vmatprep.subr.mxu0 0.0
        %2056 = vmatpush1.msra.mxu0 0.0
        %2057 = vmatprep.subr.mxu0 0.0
        %2058 = vmatpush1.msra.mxu0 0.0
        %2059 = vmatprep.mubr.f32.mxu0 0.0
        %2060 = vmatmul.mubr.f32.gmra.mrb[0].mxu0 %v1993
        %v2061 = vpop.f32.mrb[0].mxu0
        %v2062 = vadd.f32 0.0, %v2061
        %v2063 = vpop.f32.mrb[0].mxu0
        %2064 = vdwg.mxu0
        %v2066 = vsel %vm1165, %v2062, 0
        %2068 = vmatprep.subr.mxu0 0.0
        %2069 = vmatpush1.msra.mxu0 %v1155
        %2070 = vmatprep.subr.mxu0 0.0
        %2071 = vmatpush1.msra.mxu0 0.0
        %2072 = vmatprep.subr.mxu0 0.0
        %2073 = vmatpush1.msra.mxu0 0.0
        %2074 = vmatprep.subr.mxu0 0.0
        %2075 = vmatpush1.msra.mxu0 0.0
        %2076 = vmatprep.subr.mxu0 0.0
        %2077 = vmatpush1.msra.mxu0 0.0
        %2078 = vmatprep.subr.mxu0 0.0
        %2079 = vmatpush1.msra.mxu0 0.0
        %2080 = vmatprep.subr.mxu0 0.0
        %2081 = vmatpush1.msra.mxu0 0.0
        %2082 = vmatprep.subr.mxu0 0.0
        %2083 = vmatpush1.msra.mxu0 0.0
        %2084 = vmatprep.subr.mxu0 0.0
        %2085 = vmatpush1.msra.mxu0 0.0
        %2086 = vmatprep.subr.mxu0 0.0
        %2087 = vmatpush1.msra.mxu0 0.0
        %2088 = vmatprep.subr.mxu0 0.0
        %2089 = vmatpush1.msra.mxu0 0.0
        %2090 = vmatprep.subr.mxu0 0.0
        %2091 = vmatpush1.msra.mxu0 0.0
        %2092 = vmatprep.subr.mxu0 0.0
        %2093 = vmatpush1.msra.mxu0 0.0
        %2094 = vmatprep.subr.mxu0 0.0
        %2095 = vmatpush1.msra.mxu0 0.0
        %2096 = vmatprep.subr.mxu0 0.0
        %2097 = vmatpush1.msra.mxu0 0.0
        %2098 = vmatprep.subr.mxu0 0.0
        %2099 = vmatpush1.msra.mxu0 0.0
        %2100 = vmatprep.subr.mxu0 0.0
        %2101 = vmatpush1.msra.mxu0 0.0
        %2102 = vmatprep.subr.mxu0 0.0
        %2103 = vmatpush1.msra.mxu0 0.0
        %2104 = vmatprep.subr.mxu0 0.0
        %2105 = vmatpush1.msra.mxu0 0.0
        %2106 = vmatprep.subr.mxu0 0.0
        %2107 = vmatpush1.msra.mxu0 0.0
        %2108 = vmatprep.subr.mxu0 0.0
        %2109 = vmatpush1.msra.mxu0 0.0
        %2110 = vmatprep.subr.mxu0 0.0
        %2111 = vmatpush1.msra.mxu0 0.0
        %2112 = vmatprep.subr.mxu0 0.0
        %2113 = vmatpush1.msra.mxu0 0.0
        %2114 = vmatprep.subr.mxu0 0.0
        %2115 = vmatpush1.msra.mxu0 0.0
        %2116 = vmatprep.subr.mxu0 0.0
        %2117 = vmatpush1.msra.mxu0 0.0
        %2118 = vmatprep.subr.mxu0 0.0
        %2119 = vmatpush1.msra.mxu0 0.0
        %2120 = vmatprep.subr.mxu0 0.0
        %2121 = vmatpush1.msra.mxu0 0.0
        %2122 = vmatprep.subr.mxu0 0.0
        %2123 = vmatpush1.msra.mxu0 0.0
        %2124 = vmatprep.subr.mxu0 0.0
        %2125 = vmatpush1.msra.mxu0 0.0
        %2126 = vmatprep.subr.mxu0 0.0
        %2127 = vmatpush1.msra.mxu0 0.0
        %2128 = vmatprep.subr.mxu0 0.0
        %2129 = vmatpush1.msra.mxu0 0.0
        %2130 = vmatprep.subr.mxu0 0.0
        %2131 = vmatpush1.msra.mxu0 0.0
        %2132 = vmatprep.mubr.f32.mxu0 0.0
        %2133 = vmatmul.mubr.f32.gmra.mrb[0].mxu0 %v2066
        %v2134 = vpop.f32.mrb[0].mxu0
        %v2135 = vadd.f32 0.0, %v2134
        %v2136 = vpop.f32.mrb[0].mxu0
        %2137 = vdwg.mxu0
        %v2139 = vsel %vm1165, %v1529, 0
        %2141 = vmatprep.subr.mxu0 0.0
        %2142 = vmatpush1.msra.mxu0 %v1154
        %2143 = vmatprep.subr.mxu0 0.0
        %2144 = vmatpush1.msra.mxu0 0.0
        %2145 = vmatprep.subr.mxu0 0.0
        %2146 = vmatpush1.msra.mxu0 0.0
        %2147 = vmatprep.subr.mxu0 0.0
        %2148 = vmatpush1.msra.mxu0 0.0
        %2149 = vmatprep.subr.mxu0 0.0
        %2150 = vmatpush1.msra.mxu0 0.0
        %2151 = vmatprep.subr.mxu0 0.0
        %2152 = vmatpush1.msra.mxu0 0.0
        %2153 = vmatprep.subr.mxu0 0.0
        %2154 = vmatpush1.msra.mxu0 0.0
        %2155 = vmatprep.subr.mxu0 0.0
        %2156 = vmatpush1.msra.mxu0 0.0
        %2157 = vmatprep.subr.mxu0 0.0
        %2158 = vmatpush1.msra.mxu0 0.0
        %2159 = vmatprep.subr.mxu0 0.0
        %2160 = vmatpush1.msra.mxu0 0.0
        %2161 = vmatprep.subr.mxu0 0.0
        %2162 = vmatpush1.msra.mxu0 0.0
        %2163 = vmatprep.subr.mxu0 0.0
        %2164 = vmatpush1.msra.mxu0 0.0
        %2165 = vmatprep.subr.mxu0 0.0
        %2166 = vmatpush1.msra.mxu0 0.0
        %2167 = vmatprep.subr.mxu0 0.0
        %2168 = vmatpush1.msra.mxu0 0.0
        %2169 = vmatprep.subr.mxu0 0.0
        %2170 = vmatpush1.msra.mxu0 0.0
        %2171 = vmatprep.subr.mxu0 0.0
        %2172 = vmatpush1.msra.mxu0 0.0
        %2173 = vmatprep.subr.mxu0 0.0
        %2174 = vmatpush1.msra.mxu0 0.0
        %2175 = vmatprep.subr.mxu0 0.0
        %2176 = vmatpush1.msra.mxu0 0.0
        %2177 = vmatprep.subr.mxu0 0.0
        %2178 = vmatpush1.msra.mxu0 0.0
        %2179 = vmatprep.subr.mxu0 0.0
        %2180 = vmatpush1.msra.mxu0 0.0
        %2181 = vmatprep.subr.mxu0 0.0
        %2182 = vmatpush1.msra.mxu0 0.0
        %2183 = vmatprep.subr.mxu0 0.0
        %2184 = vmatpush1.msra.mxu0 0.0
        %2185 = vmatprep.subr.mxu0 0.0
        %2186 = vmatpush1.msra.mxu0 0.0
        %2187 = vmatprep.subr.mxu0 0.0
        %2188 = vmatpush1.msra.mxu0 0.0
        %2189 = vmatprep.subr.mxu0 0.0
        %2190 = vmatpush1.msra.mxu0 0.0
        %2191 = vmatprep.subr.mxu0 0.0
        %2192 = vmatpush1.msra.mxu0 0.0
        %2193 = vmatprep.subr.mxu0 0.0
        %2194 = vmatpush1.msra.mxu0 0.0
        %2195 = vmatprep.subr.mxu0 0.0
        %2196 = vmatpush1.msra.mxu0 0.0
        %2197 = vmatprep.subr.mxu0 0.0
        %2198 = vmatpush1.msra.mxu0 0.0
        %2199 = vmatprep.subr.mxu0 0.0
        %2200 = vmatpush1.msra.mxu0 0.0
        %2201 = vmatprep.subr.mxu0 0.0
        %2202 = vmatpush1.msra.mxu0 0.0
        %2203 = vmatprep.subr.mxu0 0.0
        %2204 = vmatpush1.msra.mxu0 0.0
        %2205 = vmatprep.mubr.f32.mxu0 0.0
        %2206 = vmatmul.mubr.f32.gmra.mrb[0].mxu0 %v2139
        %v2207 = vpop.f32.mrb[0].mxu0
        %v2208 = vadd.f32 %v2135, %v2207
        %v2209 = vpop.f32.mrb[0].mxu0
        %2210 = vdwg.mxu0
        %2211 = vrot.lane.b32.xlu0 %v1132, 112
        %v2212 = vpop.permute.xlu0 %2211
        %2213 = vrot.lane.b32.xlu0 %v1137, 112
        %v2214 = vpop.permute.xlu0 %2213
        %2215 = vrot.lane.b32.xlu0 %v1042, 80
        %v2216 = vpop.permute.xlu0 %2215
        %v2217 = vsel %vm1165, %v2212, 0
        %v2219 = vsel %vm1165, %v2214, 0
        %v2221 = vsel %vm1165, %v2216, 0
        %2223 = vmatprep.subr.mxu0 0.0
        %2224 = vmatpush1.xpose.msra.mxu0 %v2221
        %2225 = vmatprep.subr.mxu0 0.0
        %2226 = vmatpush1.xpose.msra.mxu0 0.0
        %2227 = vmatprep.subr.mxu0 0.0
        %2228 = vmatpush1.xpose.msra.mxu0 0.0
        %2229 = vmatprep.subr.mxu0 0.0
        %2230 = vmatpush1.xpose.msra.mxu0 0.0
        %2231 = vmatprep.subr.mxu0 0.0
        %2232 = vmatpush1.xpose.msra.mxu0 0.0
        %2233 = vmatprep.subr.mxu0 0.0
        %2234 = vmatpush1.xpose.msra.mxu0 0.0
        %2235 = vmatprep.subr.mxu0 0.0
        %2236 = vmatpush1.xpose.msra.mxu0 0.0
        %2237 = vmatprep.subr.mxu0 0.0
        %2238 = vmatpush1.xpose.msra.mxu0 0.0
        %2239 = vmatprep.subr.mxu0 0.0
        %2240 = vmatpush1.xpose.msra.mxu0 0.0
        %2241 = vmatprep.subr.mxu0 0.0
        %2242 = vmatpush1.xpose.msra.mxu0 0.0
        %2243 = vmatprep.subr.mxu0 0.0
        %2244 = vmatpush1.xpose.msra.mxu0 0.0
        %2245 = vmatprep.subr.mxu0 0.0
        %2246 = vmatpush1.xpose.msra.mxu0 0.0
        %2247 = vmatprep.subr.mxu0 0.0
        %2248 = vmatpush1.xpose.msra.mxu0 0.0
        %2249 = vmatprep.subr.mxu0 0.0
        %2250 = vmatpush1.xpose.msra.mxu0 0.0
        %2251 = vmatprep.subr.mxu0 0.0
        %2252 = vmatpush1.xpose.msra.mxu0 0.0
        %2253 = vmatprep.subr.mxu0 0.0
        %2254 = vmatpush1.xpose.msra.mxu0 0.0
        %2255 = vmatprep.subr.mxu0 0.0
        %2256 = vmatpush1.xpose.msra.mxu0 0.0
        %2257 = vmatprep.subr.mxu0 0.0
        %2258 = vmatpush1.xpose.msra.mxu0 0.0
        %2259 = vmatprep.subr.mxu0 0.0
        %2260 = vmatpush1.xpose.msra.mxu0 0.0
        %2261 = vmatprep.subr.mxu0 0.0
        %2262 = vmatpush1.xpose.msra.mxu0 0.0
        %2263 = vmatprep.subr.mxu0 0.0
        %2264 = vmatpush1.xpose.msra.mxu0 0.0
        %2265 = vmatprep.subr.mxu0 0.0
        %2266 = vmatpush1.xpose.msra.mxu0 0.0
        %2267 = vmatprep.subr.mxu0 0.0
        %2268 = vmatpush1.xpose.msra.mxu0 0.0
        %2269 = vmatprep.subr.mxu0 0.0
        %2270 = vmatpush1.xpose.msra.mxu0 0.0
        %2271 = vmatprep.subr.mxu0 0.0
        %2272 = vmatpush1.xpose.msra.mxu0 0.0
        %2273 = vmatprep.subr.mxu0 0.0
        %2274 = vmatpush1.xpose.msra.mxu0 0.0
        %2275 = vmatprep.subr.mxu0 0.0
        %2276 = vmatpush1.xpose.msra.mxu0 0.0
        %2277 = vmatprep.subr.mxu0 0.0
        %2278 = vmatpush1.xpose.msra.mxu0 0.0
        %2279 = vmatprep.subr.mxu0 0.0
        %2280 = vmatpush1.xpose.msra.mxu0 0.0
        %2281 = vmatprep.subr.mxu0 0.0
        %2282 = vmatpush1.xpose.msra.mxu0 0.0
        %2283 = vmatprep.subr.mxu0 0.0
        %2284 = vmatpush1.xpose.msra.mxu0 0.0
        %2285 = vmatprep.subr.mxu0 0.0
        %2286 = vmatpush1.xpose.msra.mxu0 0.0
        %2287 = vmatprep.mubr.f32.mxu0 0.0
        %2288 = vmatmul.mubr.f32.gmra.mrb[0].mxu0 %v2217
        %v2289 = vpop.f32.mrb[0].mxu0
        %v2290 = vadd.f32 0.0, %v2289
        %v2291 = vpop.f32.mrb[0].mxu0
        %2292 = vmatprep.mubr.f32.mxu0 0.0
        %2293 = vmatmul.mubr.f32.gmra.mrb[0].mxu0 %v2219
        %v2294 = vpop.f32.mrb[0].mxu0
        %v2295 = vadd.f32 0.0, %v2294
        %v2296 = vpop.f32.mrb[0].mxu0
        %2297 = vdwg.mxu0
        %v2298 = vmul.f32 %v2290, 0.35355338
        %v2299 = vmul.f32 %v2295, 0.35355338
        %v2300 = vadd.f32 %v2298, %v1145
        %v2301 = vadd.f32 %v2299, %v1145
        %v2302 = vsel %vm1165, %v2300, -inf
        %2303 = vmax.xlane.f32.xlu0 %v2302
        %v2304 = vpop.xlane.xlu0 %2303
        %v2305 = vsel %vm1165, %v2301, -inf
        %2306 = vmax.xlane.f32.xlu0 %v2305
        %v2307 = vpop.xlane.xlu0 %2306
        %v2308 = vsub.f32 %v2300, %v2304
        %v2309 = vsub.f32 %v2301, %v2307
        %v2310 = vmul.f32 %v2308, 1.442695
        %v2311 = vpow.pop %v2310
        %v2312 = vmul.f32 %v2309, 1.442695
        %v2313 = vpow.pop %v2312
        %v2314 = vsel %vm1165, %v2311, 0.0
        %2315 = vadd.xlane.f32.xlu0 %v2314
        %v2316 = vpop.xlane.xlu0 %2315
        %v2317 = vsel %vm1165, %v2313, 0.0
        %2318 = vadd.xlane.f32.xlu0 %v2317
        %v2319 = vpop.xlane.xlu0 %2318
        %v2320 = vrcp.pop %v2316
        %v2321 = vrcp.pop %v2319
        %v2322 = vmul.f32 %v2311, %v2320
        %v2323 = vmul.f32 %v2313, %v2321
        %2324 = vrot.lane.b32.xlu0 %v1042, 48
        %v2325 = vpop.permute.xlu0 %2324
        %v2328 = vsel %vm1165, %v2322, 0
        %v2331 = vsel %vm1165, %v2323, 0
        %2333 = vmatprep.subr.mxu0 0.0
        %2334 = vmatpush1.msra.mxu0 %v2325
        %2335 = vmatprep.subr.mxu0 0.0
        %2336 = vmatpush1.msra.mxu0 0.0
        %2337 = vmatprep.subr.mxu0 0.0
        %2338 = vmatpush1.msra.mxu0 0.0
        %2339 = vmatprep.subr.mxu0 0.0
        %2340 = vmatpush1.msra.mxu0 0.0
        %2341 = vmatprep.subr.mxu0 0.0
        %2342 = vmatpush1.msra.mxu0 0.0
        %2343 = vmatprep.subr.mxu0 0.0
        %2344 = vmatpush1.msra.mxu0 0.0
        %2345 = vmatprep.subr.mxu0 0.0
        %2346 = vmatpush1.msra.mxu0 0.0
        %2347 = vmatprep.subr.mxu0 0.0
        %2348 = vmatpush1.msra.mxu0 0.0
        %2349 = vmatprep.subr.mxu0 0.0
        %2350 = vmatpush1.msra.mxu0 0.0
        %2351 = vmatprep.subr.mxu0 0.0
        %2352 = vmatpush1.msra.mxu0 0.0
        %2353 = vmatprep.subr.mxu0 0.0
        %2354 = vmatpush1.msra.mxu0 0.0
        %2355 = vmatprep.subr.mxu0 0.0
        %2356 = vmatpush1.msra.mxu0 0.0
        %2357 = vmatprep.subr.mxu0 0.0
        %2358 = vmatpush1.msra.mxu0 0.0
        %2359 = vmatprep.subr.mxu0 0.0
        %2360 = vmatpush1.msra.mxu0 0.0
        %2361 = vmatprep.subr.mxu0 0.0
        %2362 = vmatpush1.msra.mxu0 0.0
        %2363 = vmatprep.subr.mxu0 0.0
        %2364 = vmatpush1.msra.mxu0 0.0
        %2365 = vmatprep.subr.mxu0 0.0
        %2366 = vmatpush1.msra.mxu0 0.0
        %2367 = vmatprep.subr.mxu0 0.0
        %2368 = vmatpush1.msra.mxu0 0.0
        %2369 = vmatprep.subr.mxu0 0.0
        %2370 = vmatpush1.msra.mxu0 0.0
        %2371 = vmatprep.subr.mxu0 0.0
        %2372 = vmatpush1.msra.mxu0 0.0
        %2373 = vmatprep.subr.mxu0 0.0
        %2374 = vmatpush1.msra.mxu0 0.0
        %2375 = vmatprep.subr.mxu0 0.0
        %2376 = vmatpush1.msra.mxu0 0.0
        %2377 = vmatprep.subr.mxu0 0.0
        %2378 = vmatpush1.msra.mxu0 0.0
        %2379 = vmatprep.subr.mxu0 0.0
        %2380 = vmatpush1.msra.mxu0 0.0
        %2381 = vmatprep.subr.mxu0 0.0
        %2382 = vmatpush1.msra.mxu0 0.0
        %2383 = vmatprep.subr.mxu0 0.0
        %2384 = vmatpush1.msra.mxu0 0.0
        %2385 = vmatprep.subr.mxu0 0.0
        %2386 = vmatpush1.msra.mxu0 0.0
        %2387 = vmatprep.subr.mxu0 0.0
        %2388 = vmatpush1.msra.mxu0 0.0
        %2389 = vmatprep.subr.mxu0 0.0
        %2390 = vmatpush1.msra.mxu0 0.0
        %2391 = vmatprep.subr.mxu0 0.0
        %2392 = vmatpush1.msra.mxu0 0.0
        %2393 = vmatprep.subr.mxu0 0.0
        %2394 = vmatpush1.msra.mxu0 0.0
        %2395 = vmatprep.subr.mxu0 0.0
        %2396 = vmatpush1.msra.mxu0 0.0
        %2397 = vmatprep.mubr.f32.mxu0 0.0
        %2398 = vmatmul.mubr.f32.gmra.mrb[0].mxu0 %v2328
        %v2399 = vpop.f32.mrb[0].mxu0
        %v2400 = vadd.f32 0.0, %v2399
        %v2401 = vpop.f32.mrb[0].mxu0
        %2402 = vmatprep.mubr.f32.mxu0 0.0
        %2403 = vmatmul.mubr.f32.gmra.mrb[0].mxu0 %v2331
        %v2404 = vpop.f32.mrb[0].mxu0
        %v2405 = vadd.f32 0.0, %v2404
        %v2406 = vpop.f32.mrb[0].mxu0
        %2407 = vdwg.mxu0
        %v2409 = vsel %vm1165, %v2400, 0
        %v2412 = vsel %vm1165, %v2405, 0
        %2414 = vmatprep.subr.mxu0 0.0
        %2415 = vmatpush1.msra.mxu0 %v1160
        %2416 = vmatprep.subr.mxu0 0.0
        %2417 = vmatpush1.msra.mxu0 0.0
        %2418 = vmatprep.subr.mxu0 0.0
        %2419 = vmatpush1.msra.mxu0 0.0
        %2420 = vmatprep.subr.mxu0 0.0
        %2421 = vmatpush1.msra.mxu0 0.0
        %2422 = vmatprep.subr.mxu0 0.0
        %2423 = vmatpush1.msra.mxu0 0.0
        %2424 = vmatprep.subr.mxu0 0.0
        %2425 = vmatpush1.msra.mxu0 0.0
        %2426 = vmatprep.subr.mxu0 0.0
        %2427 = vmatpush1.msra.mxu0 0.0
        %2428 = vmatprep.subr.mxu0 0.0
        %2429 = vmatpush1.msra.mxu0 0.0
        %2430 = vmatprep.subr.mxu0 0.0
        %2431 = vmatpush1.msra.mxu0 0.0
        %2432 = vmatprep.subr.mxu0 0.0
        %2433 = vmatpush1.msra.mxu0 0.0
        %2434 = vmatprep.subr.mxu0 0.0
        %2435 = vmatpush1.msra.mxu0 0.0
        %2436 = vmatprep.subr.mxu0 0.0
        %2437 = vmatpush1.msra.mxu0 0.0
        %2438 = vmatprep.subr.mxu0 0.0
        %2439 = vmatpush1.msra.mxu0 0.0
        %2440 = vmatprep.subr.mxu0 0.0
        %2441 = vmatpush1.msra.mxu0 0.0
        %2442 = vmatprep.subr.mxu0 0.0
        %2443 = vmatpush1.msra.mxu0 0.0
        %2444 = vmatprep.subr.mxu0 0.0
        %2445 = vmatpush1.msra.mxu0 0.0
        %2446 = vmatprep.subr.mxu0 0.0
        %2447 = vmatpush1.msra.mxu0 0.0
        %2448 = vmatprep.subr.mxu0 0.0
        %2449 = vmatpush1.msra.mxu0 0.0
        %2450 = vmatprep.subr.mxu0 0.0
        %2451 = vmatpush1.msra.mxu0 0.0
        %2452 = vmatprep.subr.mxu0 0.0
        %2453 = vmatpush1.msra.mxu0 0.0
        %2454 = vmatprep.subr.mxu0 0.0
        %2455 = vmatpush1.msra.mxu0 0.0
        %2456 = vmatprep.subr.mxu0 0.0
        %2457 = vmatpush1.msra.mxu0 0.0
        %2458 = vmatprep.subr.mxu0 0.0
        %2459 = vmatpush1.msra.mxu0 0.0
        %2460 = vmatprep.subr.mxu0 0.0
        %2461 = vmatpush1.msra.mxu0 0.0
        %2462 = vmatprep.subr.mxu0 0.0
        %2463 = vmatpush1.msra.mxu0 0.0
        %2464 = vmatprep.subr.mxu0 0.0
        %2465 = vmatpush1.msra.mxu0 0.0
        %2466 = vmatprep.subr.mxu0 0.0
        %2467 = vmatpush1.msra.mxu0 0.0
        %2468 = vmatprep.subr.mxu0 0.0
        %2469 = vmatpush1.msra.mxu0 0.0
        %2470 = vmatprep.subr.mxu0 0.0
        %2471 = vmatpush1.msra.mxu0 0.0
        %2472 = vmatprep.subr.mxu0 0.0
        %2473 = vmatpush1.msra.mxu0 0.0
        %2474 = vmatprep.subr.mxu0 0.0
        %2475 = vmatpush1.msra.mxu0 0.0
        %2476 = vmatprep.subr.mxu0 0.0
        %2477 = vmatpush1.msra.mxu0 0.0
        %2478 = vmatprep.mubr.f32.mxu0 0.0
        %2479 = vmatmul.mubr.f32.gmra.mrb[0].mxu0 %v2409
        %v2480 = vpop.f32.mrb[0].mxu0
        %v2481 = vadd.f32 0.0, %v2480
        %v2482 = vpop.f32.mrb[0].mxu0
        %2483 = vmatprep.mubr.f32.mxu0 0.0
        %2484 = vmatmul.mubr.f32.gmra.mrb[0].mxu0 %v2412
        %v2485 = vpop.f32.mrb[0].mxu0
        %v2486 = vadd.f32 0.0, %v2485
        %v2487 = vpop.f32.mrb[0].mxu0
        %2488 = vdwg.mxu0
        %v2489 = vadd.f32 %v1883, %v2481
        %v2490 = vadd.f32 %v1888, %v2486
        %2491 = vrot.lane.b32.xlu0 %v1042, 112
        %v2492 = vpop.permute.xlu0 %2491
        %2493 = vrot.lane.b32.xlu0 %v1132, 80
        %v2494 = vpop.permute.xlu0 %2493
        %2495 = vrot.lane.b32.xlu0 %v1137, 80
        %v2496 = vpop.permute.xlu0 %2495
        %v2497 = vsel %vm1165, %v2492, 0
        %v2499 = vsel %vm1165, %v2494, 0
        %v2501 = vsel %vm1165, %v2496, 0
        %2503 = vmatprep.subr.mxu0 0.0
        %2504 = vmatpush1.xpose.msra.mxu0 %v2499
        %2505 = vmatprep.subr.mxu0 0.0
        %2506 = vmatpush1.xpose.msra.mxu0 %v2501
        %2507 = vmatprep.subr.mxu0 0.0
        %2508 = vmatpush1.xpose.msra.mxu0 0.0
        %2509 = vmatprep.subr.mxu0 0.0
        %2510 = vmatpush1.xpose.msra.mxu0 0.0
        %2511 = vmatprep.subr.mxu0 0.0
        %2512 = vmatpush1.xpose.msra.mxu0 0.0
        %2513 = vmatprep.subr.mxu0 0.0
        %2514 = vmatpush1.xpose.msra.mxu0 0.0
        %2515 = vmatprep.subr.mxu0 0.0
        %2516 = vmatpush1.xpose.msra.mxu0 0.0
        %2517 = vmatprep.subr.mxu0 0.0
        %2518 = vmatpush1.xpose.msra.mxu0 0.0
        %2519 = vmatprep.subr.mxu0 0.0
        %2520 = vmatpush1.xpose.msra.mxu0 0.0
        %2521 = vmatprep.subr.mxu0 0.0
        %2522 = vmatpush1.xpose.msra.mxu0 0.0
        %2523 = vmatprep.subr.mxu0 0.0
        %2524 = vmatpush1.xpose.msra.mxu0 0.0
        %2525 = vmatprep.subr.mxu0 0.0
        %2526 = vmatpush1.xpose.msra.mxu0 0.0
        %2527 = vmatprep.subr.mxu0 0.0
        %2528 = vmatpush1.xpose.msra.mxu0 0.0
        %2529 = vmatprep.subr.mxu0 0.0
        %2530 = vmatpush1.xpose.msra.mxu0 0.0
        %2531 = vmatprep.subr.mxu0 0.0
        %2532 = vmatpush1.xpose.msra.mxu0 0.0
        %2533 = vmatprep.subr.mxu0 0.0
        %2534 = vmatpush1.xpose.msra.mxu0 0.0
        %2535 = vmatprep.subr.mxu0 0.0
        %2536 = vmatpush1.xpose.msra.mxu0 0.0
        %2537 = vmatprep.subr.mxu0 0.0
        %2538 = vmatpush1.xpose.msra.mxu0 0.0
        %2539 = vmatprep.subr.mxu0 0.0
        %2540 = vmatpush1.xpose.msra.mxu0 0.0
        %2541 = vmatprep.subr.mxu0 0.0
        %2542 = vmatpush1.xpose.msra.mxu0 0.0
        %2543 = vmatprep.subr.mxu0 0.0
        %2544 = vmatpush1.xpose.msra.mxu0 0.0
        %2545 = vmatprep.subr.mxu0 0.0
        %2546 = vmatpush1.xpose.msra.mxu0 0.0
        %2547 = vmatprep.subr.mxu0 0.0
        %2548 = vmatpush1.xpose.msra.mxu0 0.0
        %2549 = vmatprep.subr.mxu0 0.0
        %2550 = vmatpush1.xpose.msra.mxu0 0.0
        %2551 = vmatprep.subr.mxu0 0.0
        %2552 = vmatpush1.xpose.msra.mxu0 0.0
        %2553 = vmatprep.subr.mxu0 0.0
        %2554 = vmatpush1.xpose.msra.mxu0 0.0
        %2555 = vmatprep.subr.mxu0 0.0
        %2556 = vmatpush1.xpose.msra.mxu0 0.0
        %2557 = vmatprep.subr.mxu0 0.0
        %2558 = vmatpush1.xpose.msra.mxu0 0.0
        %2559 = vmatprep.subr.mxu0 0.0
        %2560 = vmatpush1.xpose.msra.mxu0 0.0
        %2561 = vmatprep.subr.mxu0 0.0
        %2562 = vmatpush1.xpose.msra.mxu0 0.0
        %2563 = vmatprep.subr.mxu0 0.0
        %2564 = vmatpush1.xpose.msra.mxu0 0.0
        %2565 = vmatprep.subr.mxu0 0.0
        %2566 = vmatpush1.xpose.msra.mxu0 0.0
        %2567 = vmatprep.mubr.f32.mxu0 0.0
        %2568 = vmatmul.mubr.f32.gmra.mrb[0].mxu0 %v2497
        %v2569 = vpop.f32.mrb[0].mxu0
        %v2570 = vadd.f32 0.0, %v2569
        %v2571 = vpop.f32.mrb[0].mxu0
        %2572 = vdwg.mxu0
        %v2573 = vmul.f32 %v2570, 0.35355338
        %v2574 = vadd.f32 %v2573, %v1152
        %v2575 = vsel %vm1441, %v2574, -inf
        %2576 = vmax.xlane.f32.xlu0 %v2575
        %v2577 = vpop.xlane.xlu0 %2576
        %v2578 = vsub.f32 %v2574, %v2577
        %v2579 = vmul.f32 %v2578, 1.442695
        %v2580 = vpow.pop %v2579
        %v2581 = vsel %vm1441, %v2580, 0.0
        %2582 = vadd.xlane.f32.xlu0 %v2581
        %v2583 = vpop.xlane.xlu0 %2582
        %v2584 = vrcp.pop %v2583
        %v2585 = vmul.f32 %v2580, %v2584
        %2586 = vrot.lane.b32.xlu0 %v1132, 48
        %v2587 = vpop.permute.xlu0 %2586
        %2588 = vrot.lane.b32.xlu0 %v1137, 48
        %v2589 = vpop.permute.xlu0 %2588
        %v2593 = vsel %vm1441, %v2585, 0
        %2595 = vmatprep.subr.mxu0 0.0
        %2596 = vmatpush1.msra.mxu0 %v2587
        %2597 = vmatprep.subr.mxu0 0.0
        %2598 = vmatpush1.msra.mxu0 %v2589
        %2599 = vmatprep.subr.mxu0 0.0
        %2600 = vmatpush1.msra.mxu0 0.0
        %2601 = vmatprep.subr.mxu0 0.0
        %2602 = vmatpush1.msra.mxu0 0.0
        %2603 = vmatprep.subr.mxu0 0.0
        %2604 = vmatpush1.msra.mxu0 0.0
        %2605 = vmatprep.subr.mxu0 0.0
        %2606 = vmatpush1.msra.mxu0 0.0
        %2607 = vmatprep.subr.mxu0 0.0
        %2608 = vmatpush1.msra.mxu0 0.0
        %2609 = vmatprep.subr.mxu0 0.0
        %2610 = vmatpush1.msra.mxu0 0.0
        %2611 = vmatprep.subr.mxu0 0.0
        %2612 = vmatpush1.msra.mxu0 0.0
        %2613 = vmatprep.subr.mxu0 0.0
        %2614 = vmatpush1.msra.mxu0 0.0
        %2615 = vmatprep.subr.mxu0 0.0
        %2616 = vmatpush1.msra.mxu0 0.0
        %2617 = vmatprep.subr.mxu0 0.0
        %2618 = vmatpush1.msra.mxu0 0.0
        %2619 = vmatprep.subr.mxu0 0.0
        %2620 = vmatpush1.msra.mxu0 0.0
        %2621 = vmatprep.subr.mxu0 0.0
        %2622 = vmatpush1.msra.mxu0 0.0
        %2623 = vmatprep.subr.mxu0 0.0
        %2624 = vmatpush1.msra.mxu0 0.0
        %2625 = vmatprep.subr.mxu0 0.0
        %2626 = vmatpush1.msra.mxu0 0.0
        %2627 = vmatprep.subr.mxu0 0.0
        %2628 = vmatpush1.msra.mxu0 0.0
        %2629 = vmatprep.subr.mxu0 0.0
        %2630 = vmatpush1.msra.mxu0 0.0
        %2631 = vmatprep.subr.mxu0 0.0
        %2632 = vmatpush1.msra.mxu0 0.0
        %2633 = vmatprep.subr.mxu0 0.0
        %2634 = vmatpush1.msra.mxu0 0.0
        %2635 = vmatprep.subr.mxu0 0.0
        %2636 = vmatpush1.msra.mxu0 0.0
        %2637 = vmatprep.subr.mxu0 0.0
        %2638 = vmatpush1.msra.mxu0 0.0
        %2639 = vmatprep.subr.mxu0 0.0
        %2640 = vmatpush1.msra.mxu0 0.0
        %2641 = vmatprep.subr.mxu0 0.0
        %2642 = vmatpush1.msra.mxu0 0.0
        %2643 = vmatprep.subr.mxu0 0.0
        %2644 = vmatpush1.msra.mxu0 0.0
        %2645 = vmatprep.subr.mxu0 0.0
        %2646 = vmatpush1.msra.mxu0 0.0
        %2647 = vmatprep.subr.mxu0 0.0
        %2648 = vmatpush1.msra.mxu0 0.0
        %2649 = vmatprep.subr.mxu0 0.0
        %2650 = vmatpush1.msra.mxu0 0.0
        %2651 = vmatprep.subr.mxu0 0.0
        %2652 = vmatpush1.msra.mxu0 0.0
        %2653 = vmatprep.subr.mxu0 0.0
        %2654 = vmatpush1.msra.mxu0 0.0
        %2655 = vmatprep.subr.mxu0 0.0
        %2656 = vmatpush1.msra.mxu0 0.0
        %2657 = vmatprep.subr.mxu0 0.0
        %2658 = vmatpush1.msra.mxu0 0.0
        %2659 = vmatprep.mubr.f32.mxu0 0.0
        %2660 = vmatmul.mubr.f32.gmra.mrb[0].mxu0 %v2593
        %v2661 = vpop.f32.mrb[0].mxu0
        %v2662 = vadd.f32 0.0, %v2661
        %v2663 = vpop.f32.mrb[0].mxu0
        %2664 = vdwg.mxu0
        %v2666 = vsel %vm1165, %v2662, 0
        %2668 = vmatprep.subr.mxu0 0.0
        %2669 = vmatpush1.msra.mxu0 %v1156
        %2670 = vmatprep.subr.mxu0 0.0
        %2671 = vmatpush1.msra.mxu0 0.0
        %2672 = vmatprep.subr.mxu0 0.0
        %2673 = vmatpush1.msra.mxu0 0.0
        %2674 = vmatprep.subr.mxu0 0.0
        %2675 = vmatpush1.msra.mxu0 0.0
        %2676 = vmatprep.subr.mxu0 0.0
        %2677 = vmatpush1.msra.mxu0 0.0
        %2678 = vmatprep.subr.mxu0 0.0
        %2679 = vmatpush1.msra.mxu0 0.0
        %2680 = vmatprep.subr.mxu0 0.0
        %2681 = vmatpush1.msra.mxu0 0.0
        %2682 = vmatprep.subr.mxu0 0.0
        %2683 = vmatpush1.msra.mxu0 0.0
        %2684 = vmatprep.subr.mxu0 0.0
        %2685 = vmatpush1.msra.mxu0 0.0
        %2686 = vmatprep.subr.mxu0 0.0
        %2687 = vmatpush1.msra.mxu0 0.0
        %2688 = vmatprep.subr.mxu0 0.0
        %2689 = vmatpush1.msra.mxu0 0.0
        %2690 = vmatprep.subr.mxu0 0.0
        %2691 = vmatpush1.msra.mxu0 0.0
        %2692 = vmatprep.subr.mxu0 0.0
        %2693 = vmatpush1.msra.mxu0 0.0
        %2694 = vmatprep.subr.mxu0 0.0
        %2695 = vmatpush1.msra.mxu0 0.0
        %2696 = vmatprep.subr.mxu0 0.0
        %2697 = vmatpush1.msra.mxu0 0.0
        %2698 = vmatprep.subr.mxu0 0.0
        %2699 = vmatpush1.msra.mxu0 0.0
        %2700 = vmatprep.subr.mxu0 0.0
        %2701 = vmatpush1.msra.mxu0 0.0
        %2702 = vmatprep.subr.mxu0 0.0
        %2703 = vmatpush1.msra.mxu0 0.0
        %2704 = vmatprep.subr.mxu0 0.0
        %2705 = vmatpush1.msra.mxu0 0.0
        %2706 = vmatprep.subr.mxu0 0.0
        %2707 = vmatpush1.msra.mxu0 0.0
        %2708 = vmatprep.subr.mxu0 0.0
        %2709 = vmatpush1.msra.mxu0 0.0
        %2710 = vmatprep.subr.mxu0 0.0
        %2711 = vmatpush1.msra.mxu0 0.0
        %2712 = vmatprep.subr.mxu0 0.0
        %2713 = vmatpush1.msra.mxu0 0.0
        %2714 = vmatprep.subr.mxu0 0.0
        %2715 = vmatpush1.msra.mxu0 0.0
        %2716 = vmatprep.subr.mxu0 0.0
        %2717 = vmatpush1.msra.mxu0 0.0
        %2718 = vmatprep.subr.mxu0 0.0
        %2719 = vmatpush1.msra.mxu0 0.0
        %2720 = vmatprep.subr.mxu0 0.0
        %2721 = vmatpush1.msra.mxu0 0.0
        %2722 = vmatprep.subr.mxu0 0.0
        %2723 = vmatpush1.msra.mxu0 0.0
        %2724 = vmatprep.subr.mxu0 0.0
        %2725 = vmatpush1.msra.mxu0 0.0
        %2726 = vmatprep.subr.mxu0 0.0
        %2727 = vmatpush1.msra.mxu0 0.0
        %2728 = vmatprep.subr.mxu0 0.0
        %2729 = vmatpush1.msra.mxu0 0.0
        %2730 = vmatprep.subr.mxu0 0.0
        %2731 = vmatpush1.msra.mxu0 0.0
        %2732 = vmatprep.mubr.f32.mxu0 0.0
        %2733 = vmatmul.mubr.f32.gmra.mrb[0].mxu0 %v2666
        %v2734 = vpop.f32.mrb[0].mxu0
        %v2735 = vadd.f32 0.0, %v2734
        %v2736 = vpop.f32.mrb[0].mxu0
        %2737 = vdwg.mxu0
        %v2738 = vadd.f32 %v2208, %v2735
        %2739 = vrot.lane.b32.xlu0 %v1132, 104
        %v2740 = vpop.permute.xlu0 %2739
        %2741 = vrot.lane.b32.xlu0 %v1137, 104
        %v2742 = vpop.permute.xlu0 %2741
        %2743 = vrot.lane.b32.xlu0 %v1042, 72
        %v2744 = vpop.permute.xlu0 %2743
        %v2745 = vsel %vm1165, %v2740, 0
        %v2747 = vsel %vm1165, %v2742, 0
        %v2749 = vsel %vm1165, %v2744, 0
        %2751 = vmatprep.subr.mxu0 0.0
        %2752 = vmatpush1.xpose.msra.mxu0 %v2749
        %2753 = vmatprep.subr.mxu0 0.0
        %2754 = vmatpush1.xpose.msra.mxu0 0.0
        %2755 = vmatprep.subr.mxu0 0.0
        %2756 = vmatpush1.xpose.msra.mxu0 0.0
        %2757 = vmatprep.subr.mxu0 0.0
        %2758 = vmatpush1.xpose.msra.mxu0 0.0
        %2759 = vmatprep.subr.mxu0 0.0
        %2760 = vmatpush1.xpose.msra.mxu0 0.0
        %2761 = vmatprep.subr.mxu0 0.0
        %2762 = vmatpush1.xpose.msra.mxu0 0.0
        %2763 = vmatprep.subr.mxu0 0.0
        %2764 = vmatpush1.xpose.msra.mxu0 0.0
        %2765 = vmatprep.subr.mxu0 0.0
        %2766 = vmatpush1.xpose.msra.mxu0 0.0
        %2767 = vmatprep.subr.mxu0 0.0
        %2768 = vmatpush1.xpose.msra.mxu0 0.0
        %2769 = vmatprep.subr.mxu0 0.0
        %2770 = vmatpush1.xpose.msra.mxu0 0.0
        %2771 = vmatprep.subr.mxu0 0.0
        %2772 = vmatpush1.xpose.msra.mxu0 0.0
        %2773 = vmatprep.subr.mxu0 0.0
        %2774 = vmatpush1.xpose.msra.mxu0 0.0
        %2775 = vmatprep.subr.mxu0 0.0
        %2776 = vmatpush1.xpose.msra.mxu0 0.0
        %2777 = vmatprep.subr.mxu0 0.0
        %2778 = vmatpush1.xpose.msra.mxu0 0.0
        %2779 = vmatprep.subr.mxu0 0.0
        %2780 = vmatpush1.xpose.msra.mxu0 0.0
        %2781 = vmatprep.subr.mxu0 0.0
        %2782 = vmatpush1.xpose.msra.mxu0 0.0
        %2783 = vmatprep.subr.mxu0 0.0
        %2784 = vmatpush1.xpose.msra.mxu0 0.0
        %2785 = vmatprep.subr.mxu0 0.0
        %2786 = vmatpush1.xpose.msra.mxu0 0.0
        %2787 = vmatprep.subr.mxu0 0.0
        %2788 = vmatpush1.xpose.msra.mxu0 0.0
        %2789 = vmatprep.subr.mxu0 0.0
        %2790 = vmatpush1.xpose.msra.mxu0 0.0
        %2791 = vmatprep.subr.mxu0 0.0
        %2792 = vmatpush1.xpose.msra.mxu0 0.0
        %2793 = vmatprep.subr.mxu0 0.0
        %2794 = vmatpush1.xpose.msra.mxu0 0.0
        %2795 = vmatprep.subr.mxu0 0.0
        %2796 = vmatpush1.xpose.msra.mxu0 0.0
        %2797 = vmatprep.subr.mxu0 0.0
        %2798 = vmatpush1.xpose.msra.mxu0 0.0
        %2799 = vmatprep.subr.mxu0 0.0
        %2800 = vmatpush1.xpose.msra.mxu0 0.0
        %2801 = vmatprep.subr.mxu0 0.0
        %2802 = vmatpush1.xpose.msra.mxu0 0.0
        %2803 = vmatprep.subr.mxu0 0.0
        %2804 = vmatpush1.xpose.msra.mxu0 0.0
        %2805 = vmatprep.subr.mxu0 0.0
        %2806 = vmatpush1.xpose.msra.mxu0 0.0
        %2807 = vmatprep.subr.mxu0 0.0
        %2808 = vmatpush1.xpose.msra.mxu0 0.0
        %2809 = vmatprep.subr.mxu0 0.0
        %2810 = vmatpush1.xpose.msra.mxu0 0.0
        %2811 = vmatprep.subr.mxu0 0.0
        %2812 = vmatpush1.xpose.msra.mxu0 0.0
        %2813 = vmatprep.subr.mxu0 0.0
        %2814 = vmatpush1.xpose.msra.mxu0 0.0
        %2815 = vmatprep.mubr.f32.mxu0 0.0
        %2816 = vmatmul.mubr.f32.gmra.mrb[0].mxu0 %v2745
        %v2817 = vpop.f32.mrb[0].mxu0
        %v2818 = vadd.f32 0.0, %v2817
        %v2819 = vpop.f32.mrb[0].mxu0
        %2820 = vmatprep.mubr.f32.mxu0 0.0
        %2821 = vmatmul.mubr.f32.gmra.mrb[0].mxu0 %v2747
        %v2822 = vpop.f32.mrb[0].mxu0
        %v2823 = vadd.f32 0.0, %v2822
        %v2824 = vpop.f32.mrb[0].mxu0
        %2825 = vdwg.mxu0
        %v2826 = vmul.f32 %v2818, 0.35355338
        %v2827 = vmul.f32 %v2823, 0.35355338
        %v2828 = vadd.f32 %v2826, %v1145
        %v2829 = vadd.f32 %v2827, %v1145
        %v2830 = vsel %vm1165, %v2828, -inf
        %2831 = vmax.xlane.f32.xlu0 %v2830
        %v2832 = vpop.xlane.xlu0 %2831
        %v2833 = vsel %vm1165, %v2829, -inf
        %2834 = vmax.xlane.f32.xlu0 %v2833
        %v2835 = vpop.xlane.xlu0 %2834
        %v2836 = vsub.f32 %v2828, %v2832
        %v2837 = vsub.f32 %v2829, %v2835
        %v2838 = vmul.f32 %v2836, 1.442695
        %v2839 = vpow.pop %v2838
        %v2840 = vmul.f32 %v2837, 1.442695
        %v2841 = vpow.pop %v2840
        %v2842 = vsel %vm1165, %v2839, 0.0
        %2843 = vadd.xlane.f32.xlu0 %v2842
        %v2844 = vpop.xlane.xlu0 %2843
        %v2845 = vsel %vm1165, %v2841, 0.0
        %2846 = vadd.xlane.f32.xlu0 %v2845
        %v2847 = vpop.xlane.xlu0 %2846
        %v2848 = vrcp.pop %v2844
        %v2849 = vrcp.pop %v2847
        %v2850 = vmul.f32 %v2839, %v2848
        %v2851 = vmul.f32 %v2841, %v2849
        %2852 = vrot.lane.b32.xlu0 %v1042, 40
        %v2853 = vpop.permute.xlu0 %2852
        %v2856 = vsel %vm1165, %v2850, 0
        %v2859 = vsel %vm1165, %v2851, 0
        %2861 = vmatprep.subr.mxu0 0.0
        %2862 = vmatpush1.msra.mxu0 %v2853
        %2863 = vmatprep.subr.mxu0 0.0
        %2864 = vmatpush1.msra.mxu0 0.0
        %2865 = vmatprep.subr.mxu0 0.0
        %2866 = vmatpush1.msra.mxu0 0.0
        %2867 = vmatprep.subr.mxu0 0.0
        %2868 = vmatpush1.msra.mxu0 0.0
        %2869 = vmatprep.subr.mxu0 0.0
        %2870 = vmatpush1.msra.mxu0 0.0
        %2871 = vmatprep.subr.mxu0 0.0
        %2872 = vmatpush1.msra.mxu0 0.0
        %2873 = vmatprep.subr.mxu0 0.0
        %2874 = vmatpush1.msra.mxu0 0.0
        %2875 = vmatprep.subr.mxu0 0.0
        %2876 = vmatpush1.msra.mxu0 0.0
        %2877 = vmatprep.subr.mxu0 0.0
        %2878 = vmatpush1.msra.mxu0 0.0
        %2879 = vmatprep.subr.mxu0 0.0
        %2880 = vmatpush1.msra.mxu0 0.0
        %2881 = vmatprep.subr.mxu0 0.0
        %2882 = vmatpush1.msra.mxu0 0.0
        %2883 = vmatprep.subr.mxu0 0.0
        %2884 = vmatpush1.msra.mxu0 0.0
        %2885 = vmatprep.subr.mxu0 0.0
        %2886 = vmatpush1.msra.mxu0 0.0
        %2887 = vmatprep.subr.mxu0 0.0
        %2888 = vmatpush1.msra.mxu0 0.0
        %2889 = vmatprep.subr.mxu0 0.0
        %2890 = vmatpush1.msra.mxu0 0.0
        %2891 = vmatprep.subr.mxu0 0.0
        %2892 = vmatpush1.msra.mxu0 0.0
        %2893 = vmatprep.subr.mxu0 0.0
        %2894 = vmatpush1.msra.mxu0 0.0
        %2895 = vmatprep.subr.mxu0 0.0
        %2896 = vmatpush1.msra.mxu0 0.0
        %2897 = vmatprep.subr.mxu0 0.0
        %2898 = vmatpush1.msra.mxu0 0.0
        %2899 = vmatprep.subr.mxu0 0.0
        %2900 = vmatpush1.msra.mxu0 0.0
        %2901 = vmatprep.subr.mxu0 0.0
        %2902 = vmatpush1.msra.mxu0 0.0
        %2903 = vmatprep.subr.mxu0 0.0
        %2904 = vmatpush1.msra.mxu0 0.0
        %2905 = vmatprep.subr.mxu0 0.0
        %2906 = vmatpush1.msra.mxu0 0.0
        %2907 = vmatprep.subr.mxu0 0.0
        %2908 = vmatpush1.msra.mxu0 0.0
        %2909 = vmatprep.subr.mxu0 0.0
        %2910 = vmatpush1.msra.mxu0 0.0
        %2911 = vmatprep.subr.mxu0 0.0
        %2912 = vmatpush1.msra.mxu0 0.0
        %2913 = vmatprep.subr.mxu0 0.0
        %2914 = vmatpush1.msra.mxu0 0.0
        %2915 = vmatprep.subr.mxu0 0.0
        %2916 = vmatpush1.msra.mxu0 0.0
        %2917 = vmatprep.subr.mxu0 0.0
        %2918 = vmatpush1.msra.mxu0 0.0
        %2919 = vmatprep.subr.mxu0 0.0
        %2920 = vmatpush1.msra.mxu0 0.0
        %2921 = vmatprep.subr.mxu0 0.0
        %2922 = vmatpush1.msra.mxu0 0.0
        %2923 = vmatprep.subr.mxu0 0.0
        %2924 = vmatpush1.msra.mxu0 0.0
        %2925 = vmatprep.mubr.f32.mxu0 0.0
        %2926 = vmatmul.mubr.f32.gmra.mrb[0].mxu0 %v2856
        %v2927 = vpop.f32.mrb[0].mxu0
        %v2928 = vadd.f32 0.0, %v2927
        %v2929 = vpop.f32.mrb[0].mxu0
        %2930 = vmatprep.mubr.f32.mxu0 0.0
        %2931 = vmatmul.mubr.f32.gmra.mrb[0].mxu0 %v2859
        %v2932 = vpop.f32.mrb[0].mxu0
        %v2933 = vadd.f32 0.0, %v2932
        %v2934 = vpop.f32.mrb[0].mxu0
        %2935 = vdwg.mxu0
        %v2937 = vsel %vm1165, %v2928, 0
        %v2940 = vsel %vm1165, %v2933, 0
        %2942 = vmatprep.subr.mxu0 0.0
        %2943 = vmatpush1.msra.mxu0 %v1161
        %2944 = vmatprep.subr.mxu0 0.0
        %2945 = vmatpush1.msra.mxu0 0.0
        %2946 = vmatprep.subr.mxu0 0.0
        %2947 = vmatpush1.msra.mxu0 0.0
        %2948 = vmatprep.subr.mxu0 0.0
        %2949 = vmatpush1.msra.mxu0 0.0
        %2950 = vmatprep.subr.mxu0 0.0
        %2951 = vmatpush1.msra.mxu0 0.0
        %2952 = vmatprep.subr.mxu0 0.0
        %2953 = vmatpush1.msra.mxu0 0.0
        %2954 = vmatprep.subr.mxu0 0.0
        %2955 = vmatpush1.msra.mxu0 0.0
        %2956 = vmatprep.subr.mxu0 0.0
        %2957 = vmatpush1.msra.mxu0 0.0
        %2958 = vmatprep.subr.mxu0 0.0
        %2959 = vmatpush1.msra.mxu0 0.0
        %2960 = vmatprep.subr.mxu0 0.0
        %2961 = vmatpush1.msra.mxu0 0.0
        %2962 = vmatprep.subr.mxu0 0.0
        %2963 = vmatpush1.msra.mxu0 0.0
        %2964 = vmatprep.subr.mxu0 0.0
        %2965 = vmatpush1.msra.mxu0 0.0
        %2966 = vmatprep.subr.mxu0 0.0
        %2967 = vmatpush1.msra.mxu0 0.0
        %2968 = vmatprep.subr.mxu0 0.0
        %2969 = vmatpush1.msra.mxu0 0.0
        %2970 = vmatprep.subr.mxu0 0.0
        %2971 = vmatpush1.msra.mxu0 0.0
        %2972 = vmatprep.subr.mxu0 0.0
        %2973 = vmatpush1.msra.mxu0 0.0
        %2974 = vmatprep.subr.mxu0 0.0
        %2975 = vmatpush1.msra.mxu0 0.0
        %2976 = vmatprep.subr.mxu0 0.0
        %2977 = vmatpush1.msra.mxu0 0.0
        %2978 = vmatprep.subr.mxu0 0.0
        %2979 = vmatpush1.msra.mxu0 0.0
        %2980 = vmatprep.subr.mxu0 0.0
        %2981 = vmatpush1.msra.mxu0 0.0
        %2982 = vmatprep.subr.mxu0 0.0
        %2983 = vmatpush1.msra.mxu0 0.0
        %2984 = vmatprep.subr.mxu0 0.0
        %2985 = vmatpush1.msra.mxu0 0.0
        %2986 = vmatprep.subr.mxu0 0.0
        %2987 = vmatpush1.msra.mxu0 0.0
        %2988 = vmatprep.subr.mxu0 0.0
        %2989 = vmatpush1.msra.mxu0 0.0
        %2990 = vmatprep.subr.mxu0 0.0
        %2991 = vmatpush1.msra.mxu0 0.0
        %2992 = vmatprep.subr.mxu0 0.0
        %2993 = vmatpush1.msra.mxu0 0.0
        %2994 = vmatprep.subr.mxu0 0.0
        %2995 = vmatpush1.msra.mxu0 0.0
        %2996 = vmatprep.subr.mxu0 0.0
        %2997 = vmatpush1.msra.mxu0 0.0
        %2998 = vmatprep.subr.mxu0 0.0
        %2999 = vmatpush1.msra.mxu0 0.0
        %3000 = vmatprep.subr.mxu0 0.0
        %3001 = vmatpush1.msra.mxu0 0.0
        %3002 = vmatprep.subr.mxu0 0.0
        %3003 = vmatpush1.msra.mxu0 0.0
        %3004 = vmatprep.subr.mxu0 0.0
        %3005 = vmatpush1.msra.mxu0 0.0
        %3006 = vmatprep.mubr.f32.mxu0 0.0
        %3007 = vmatmul.mubr.f32.gmra.mrb[0].mxu0 %v2937
        %v3008 = vpop.f32.mrb[0].mxu0
        %v3009 = vadd.f32 0.0, %v3008
        %v3010 = vpop.f32.mrb[0].mxu0
        %3011 = vmatprep.mubr.f32.mxu0 0.0
        %3012 = vmatmul.mubr.f32.gmra.mrb[0].mxu0 %v2940
        %v3013 = vpop.f32.mrb[0].mxu0
        %v3014 = vadd.f32 0.0, %v3013
        %v3015 = vpop.f32.mrb[0].mxu0
        %3016 = vdwg.mxu0
        %v3017 = vadd.f32 %v2489, %v3009
        %v3018 = vadd.f32 %v2490, %v3014
        %3019 = vrot.lane.b32.xlu0 %v1042, 104
        %v3020 = vpop.permute.xlu0 %3019
        %3021 = vrot.lane.b32.xlu0 %v1132, 72
        %v3022 = vpop.permute.xlu0 %3021
        %3023 = vrot.lane.b32.xlu0 %v1137, 72
        %v3024 = vpop.permute.xlu0 %3023
        %v3025 = vsel %vm1165, %v3020, 0
        %v3027 = vsel %vm1165, %v3022, 0
        %v3029 = vsel %vm1165, %v3024, 0
        %3031 = vmatprep.subr.mxu0 0.0
        %3032 = vmatpush1.xpose.msra.mxu0 %v3027
        %3033 = vmatprep.subr.mxu0 0.0
        %3034 = vmatpush1.xpose.msra.mxu0 %v3029
        %3035 = vmatprep.subr.mxu0 0.0
        %3036 = vmatpush1.xpose.msra.mxu0 0.0
        %3037 = vmatprep.subr.mxu0 0.0
        %3038 = vmatpush1.xpose.msra.mxu0 0.0
        %3039 = vmatprep.subr.mxu0 0.0
        %3040 = vmatpush1.xpose.msra.mxu0 0.0
        %3041 = vmatprep.subr.mxu0 0.0
        %3042 = vmatpush1.xpose.msra.mxu0 0.0
        %3043 = vmatprep.subr.mxu0 0.0
        %3044 = vmatpush1.xpose.msra.mxu0 0.0
        %3045 = vmatprep.subr.mxu0 0.0
        %3046 = vmatpush1.xpose.msra.mxu0 0.0
        %3047 = vmatprep.subr.mxu0 0.0
        %3048 = vmatpush1.xpose.msra.mxu0 0.0
        %3049 = vmatprep.subr.mxu0 0.0
        %3050 = vmatpush1.xpose.msra.mxu0 0.0
        %3051 = vmatprep.subr.mxu0 0.0
        %3052 = vmatpush1.xpose.msra.mxu0 0.0
        %3053 = vmatprep.subr.mxu0 0.0
        %3054 = vmatpush1.xpose.msra.mxu0 0.0
        %3055 = vmatprep.subr.mxu0 0.0
        %3056 = vmatpush1.xpose.msra.mxu0 0.0
        %3057 = vmatprep.subr.mxu0 0.0
        %3058 = vmatpush1.xpose.msra.mxu0 0.0
        %3059 = vmatprep.subr.mxu0 0.0
        %3060 = vmatpush1.xpose.msra.mxu0 0.0
        %3061 = vmatprep.subr.mxu0 0.0
        %3062 = vmatpush1.xpose.msra.mxu0 0.0
        %3063 = vmatprep.subr.mxu0 0.0
        %3064 = vmatpush1.xpose.msra.mxu0 0.0
        %3065 = vmatprep.subr.mxu0 0.0
        %3066 = vmatpush1.xpose.msra.mxu0 0.0
        %3067 = vmatprep.subr.mxu0 0.0
        %3068 = vmatpush1.xpose.msra.mxu0 0.0
        %3069 = vmatprep.subr.mxu0 0.0
        %3070 = vmatpush1.xpose.msra.mxu0 0.0
        %3071 = vmatprep.subr.mxu0 0.0
        %3072 = vmatpush1.xpose.msra.mxu0 0.0
        %3073 = vmatprep.subr.mxu0 0.0
        %3074 = vmatpush1.xpose.msra.mxu0 0.0
        %3075 = vmatprep.subr.mxu0 0.0
        %3076 = vmatpush1.xpose.msra.mxu0 0.0
        %3077 = vmatprep.subr.mxu0 0.0
        %3078 = vmatpush1.xpose.msra.mxu0 0.0
        %3079 = vmatprep.subr.mxu0 0.0
        %3080 = vmatpush1.xpose.msra.mxu0 0.0
        %3081 = vmatprep.subr.mxu0 0.0
        %3082 = vmatpush1.xpose.msra.mxu0 0.0
        %3083 = vmatprep.subr.mxu0 0.0
        %3084 = vmatpush1.xpose.msra.mxu0 0.0
        %3085 = vmatprep.subr.mxu0 0.0
        %3086 = vmatpush1.xpose.msra.mxu0 0.0
        %3087 = vmatprep.subr.mxu0 0.0
        %3088 = vmatpush1.xpose.msra.mxu0 0.0
        %3089 = vmatprep.subr.mxu0 0.0
        %3090 = vmatpush1.xpose.msra.mxu0 0.0
        %3091 = vmatprep.subr.mxu0 0.0
        %3092 = vmatpush1.xpose.msra.mxu0 0.0
        %3093 = vmatprep.subr.mxu0 0.0
        %3094 = vmatpush1.xpose.msra.mxu0 0.0
        %3095 = vmatprep.mubr.f32.mxu0 0.0
        %3096 = vmatmul.mubr.f32.gmra.mrb[0].mxu0 %v3025
        %v3097 = vpop.f32.mrb[0].mxu0
        %v3098 = vadd.f32 0.0, %v3097
        %v3099 = vpop.f32.mrb[0].mxu0
        %3100 = vdwg.mxu0
        %v3101 = vmul.f32 %v3098, 0.35355338
        %v3102 = vadd.f32 %v3101, %v1152
        %v3103 = vsel %vm1441, %v3102, -inf
        %3104 = vmax.xlane.f32.xlu0 %v3103
        %v3105 = vpop.xlane.xlu0 %3104
        %v3106 = vsub.f32 %v3102, %v3105
        %v3107 = vmul.f32 %v3106, 1.442695
        %v3108 = vpow.pop %v3107
        %v3109 = vsel %vm1441, %v3108, 0.0
        %3110 = vadd.xlane.f32.xlu0 %v3109
        %v3111 = vpop.xlane.xlu0 %3110
        %v3112 = vrcp.pop %v3111
        %v3113 = vmul.f32 %v3108, %v3112
        %3114 = vrot.lane.b32.xlu0 %v1132, 40
        %v3115 = vpop.permute.xlu0 %3114
        %3116 = vrot.lane.b32.xlu0 %v1137, 40
        %v3117 = vpop.permute.xlu0 %3116
        %v3121 = vsel %vm1441, %v3113, 0
        %3123 = vmatprep.subr.mxu0 0.0
        %3124 = vmatpush1.msra.mxu0 %v3115
        %3125 = vmatprep.subr.mxu0 0.0
        %3126 = vmatpush1.msra.mxu0 %v3117
        %3127 = vmatprep.subr.mxu0 0.0
        %3128 = vmatpush1.msra.mxu0 0.0
        %3129 = vmatprep.subr.mxu0 0.0
        %3130 = vmatpush1.msra.mxu0 0.0
        %3131 = vmatprep.subr.mxu0 0.0
        %3132 = vmatpush1.msra.mxu0 0.0
        %3133 = vmatprep.subr.mxu0 0.0
        %3134 = vmatpush1.msra.mxu0 0.0
        %3135 = vmatprep.subr.mxu0 0.0
        %3136 = vmatpush1.msra.mxu0 0.0
        %3137 = vmatprep.subr.mxu0 0.0
        %3138 = vmatpush1.msra.mxu0 0.0
        %3139 = vmatprep.subr.mxu0 0.0
        %3140 = vmatpush1.msra.mxu0 0.0
        %3141 = vmatprep.subr.mxu0 0.0
        %3142 = vmatpush1.msra.mxu0 0.0
        %3143 = vmatprep.subr.mxu0 0.0
        %3144 = vmatpush1.msra.mxu0 0.0
        %3145 = vmatprep.subr.mxu0 0.0
        %3146 = vmatpush1.msra.mxu0 0.0
        %3147 = vmatprep.subr.mxu0 0.0
        %3148 = vmatpush1.msra.mxu0 0.0
        %3149 = vmatprep.subr.mxu0 0.0
        %3150 = vmatpush1.msra.mxu0 0.0
        %3151 = vmatprep.subr.mxu0 0.0
        %3152 = vmatpush1.msra.mxu0 0.0
        %3153 = vmatprep.subr.mxu0 0.0
        %3154 = vmatpush1.msra.mxu0 0.0
        %3155 = vmatprep.subr.mxu0 0.0
        %3156 = vmatpush1.msra.mxu0 0.0
        %3157 = vmatprep.subr.mxu0 0.0
        %3158 = vmatpush1.msra.mxu0 0.0
        %3159 = vmatprep.subr.mxu0 0.0
        %3160 = vmatpush1.msra.mxu0 0.0
        %3161 = vmatprep.subr.mxu0 0.0
        %3162 = vmatpush1.msra.mxu0 0.0
        %3163 = vmatprep.subr.mxu0 0.0
        %3164 = vmatpush1.msra.mxu0 0.0
        %3165 = vmatprep.subr.mxu0 0.0
        %3166 = vmatpush1.msra.mxu0 0.0
        %3167 = vmatprep.subr.mxu0 0.0
        %3168 = vmatpush1.msra.mxu0 0.0
        %3169 = vmatprep.subr.mxu0 0.0
        %3170 = vmatpush1.msra.mxu0 0.0
        %3171 = vmatprep.subr.mxu0 0.0
        %3172 = vmatpush1.msra.mxu0 0.0
        %3173 = vmatprep.subr.mxu0 0.0
        %3174 = vmatpush1.msra.mxu0 0.0
        %3175 = vmatprep.subr.mxu0 0.0
        %3176 = vmatpush1.msra.mxu0 0.0
        %3177 = vmatprep.subr.mxu0 0.0
        %3178 = vmatpush1.msra.mxu0 0.0
        %3179 = vmatprep.subr.mxu0 0.0
        %3180 = vmatpush1.msra.mxu0 0.0
        %3181 = vmatprep.subr.mxu0 0.0
        %3182 = vmatpush1.msra.mxu0 0.0
        %3183 = vmatprep.subr.mxu0 0.0
        %3184 = vmatpush1.msra.mxu0 0.0
        %3185 = vmatprep.subr.mxu0 0.0
        %3186 = vmatpush1.msra.mxu0 0.0
        %3187 = vmatprep.mubr.f32.mxu0 0.0
        %3188 = vmatmul.mubr.f32.gmra.mrb[0].mxu0 %v3121
        %v3189 = vpop.f32.mrb[0].mxu0
        %v3190 = vadd.f32 0.0, %v3189
        %v3191 = vpop.f32.mrb[0].mxu0
        %3192 = vdwg.mxu0
        %v3194 = vsel %vm1165, %v3190, 0
        %3196 = vmatprep.subr.mxu0 0.0
        %3197 = vmatpush1.msra.mxu0 %v1157
        %3198 = vmatprep.subr.mxu0 0.0
        %3199 = vmatpush1.msra.mxu0 0.0
        %3200 = vmatprep.subr.mxu0 0.0
        %3201 = vmatpush1.msra.mxu0 0.0
        %3202 = vmatprep.subr.mxu0 0.0
        %3203 = vmatpush1.msra.mxu0 0.0
        %3204 = vmatprep.subr.mxu0 0.0
        %3205 = vmatpush1.msra.mxu0 0.0
        %3206 = vmatprep.subr.mxu0 0.0
        %3207 = vmatpush1.msra.mxu0 0.0
        %3208 = vmatprep.subr.mxu0 0.0
        %3209 = vmatpush1.msra.mxu0 0.0
        %3210 = vmatprep.subr.mxu0 0.0
        %3211 = vmatpush1.msra.mxu0 0.0
        %3212 = vmatprep.subr.mxu0 0.0
        %3213 = vmatpush1.msra.mxu0 0.0
        %3214 = vmatprep.subr.mxu0 0.0
        %3215 = vmatpush1.msra.mxu0 0.0
        %3216 = vmatprep.subr.mxu0 0.0
        %3217 = vmatpush1.msra.mxu0 0.0
        %3218 = vmatprep.subr.mxu0 0.0
        %3219 = vmatpush1.msra.mxu0 0.0
        %3220 = vmatprep.subr.mxu0 0.0
        %3221 = vmatpush1.msra.mxu0 0.0
        %3222 = vmatprep.subr.mxu0 0.0
        %3223 = vmatpush1.msra.mxu0 0.0
        %3224 = vmatprep.subr.mxu0 0.0
        %3225 = vmatpush1.msra.mxu0 0.0
        %3226 = vmatprep.subr.mxu0 0.0
        %3227 = vmatpush1.msra.mxu0 0.0
        %3228 = vmatprep.subr.mxu0 0.0
        %3229 = vmatpush1.msra.mxu0 0.0
        %3230 = vmatprep.subr.mxu0 0.0
        %3231 = vmatpush1.msra.mxu0 0.0
        %3232 = vmatprep.subr.mxu0 0.0
        %3233 = vmatpush1.msra.mxu0 0.0
        %3234 = vmatprep.subr.mxu0 0.0
        %3235 = vmatpush1.msra.mxu0 0.0
        %3236 = vmatprep.subr.mxu0 0.0
        %3237 = vmatpush1.msra.mxu0 0.0
        %3238 = vmatprep.subr.mxu0 0.0
        %3239 = vmatpush1.msra.mxu0 0.0
        %3240 = vmatprep.subr.mxu0 0.0
        %3241 = vmatpush1.msra.mxu0 0.0
        %3242 = vmatprep.subr.mxu0 0.0
        %3243 = vmatpush1.msra.mxu0 0.0
        %3244 = vmatprep.subr.mxu0 0.0
        %3245 = vmatpush1.msra.mxu0 0.0
        %3246 = vmatprep.subr.mxu0 0.0
        %3247 = vmatpush1.msra.mxu0 0.0
        %3248 = vmatprep.subr.mxu0 0.0
        %3249 = vmatpush1.msra.mxu0 0.0
        %3250 = vmatprep.subr.mxu0 0.0
        %3251 = vmatpush1.msra.mxu0 0.0
        %3252 = vmatprep.subr.mxu0 0.0
        %3253 = vmatpush1.msra.mxu0 0.0
        %3254 = vmatprep.subr.mxu0 0.0
        %3255 = vmatpush1.msra.mxu0 0.0
        %3256 = vmatprep.subr.mxu0 0.0
        %3257 = vmatpush1.msra.mxu0 0.0
        %3258 = vmatprep.subr.mxu0 0.0
        %3259 = vmatpush1.msra.mxu0 0.0
        %3260 = vmatprep.mubr.f32.mxu0 0.0
        %3261 = vmatmul.mubr.f32.gmra.mrb[0].mxu0 %v3194
        %v3262 = vpop.f32.mrb[0].mxu0
        %v3263 = vadd.f32 0.0, %v3262
        %v3264 = vpop.f32.mrb[0].mxu0
        %3265 = vdwg.mxu0
        %v3266 = vadd.f32 %v2738, %v3263
        %v3267 = vld [vmem:[%s19] sm:$0x1]
        %v3269 = vlaneseq
        %v3270 = vshrl.u32 %v3269, 7
        %v3271 = vsub.s32 0, %v3270
        %v3272 = vrot.slane %v3267, %v3271
        %v3274 = vadd.f32 %v3266, %v3272
        %v3275 = vadd.f32 %v3274, %v957
        %v3276 = vld [vmem:[%s21] sm:$0x1]
        %v3277 = vld [vmem:[%s23] sm:$0x1]
        %v3278 = vsel %vm971, %v3275, 0.0
        %3279 = vadd.xlane.f32.xlu0 %v3278
        %v3280 = vpop.xlane.xlu0 %3279
        %v3281 = vrcp.pop 32.0
        %v3282 = vmul.f32 %v3280, %v3281
        %v3283 = vsub.f32 %v3275, %v3282
        %v3284 = vmul.f32 %v3283, %v3283
        %v3285 = vsel %vm971, %v3284, 0.0
        %3286 = vadd.xlane.f32.xlu0 %v3285
        %v3287 = vpop.xlane.xlu0 %3286
        %v3288 = vmul.f32 %v3287, %v3281
        %v3289 = vadd.f32 %v3288, 1e-12
        %v3290 = vrsqrt.pop %v3289
        %v3291 = vmul.f32 %v3283, %v3290
        %v3293 = vlaneseq
        %v3294 = vshrl.u32 %v3293, 7
        %v3295 = vsub.s32 0, %v3294
        %v3296 = vrot.slane %v3276, %v3295
        %v3298 = vmul.f32 %v3291, %v3296
        %v3300 = vlaneseq
        %v3301 = vshrl.u32 %v3300, 7
        %v3302 = vsub.s32 0, %v3301
        %v3303 = vrot.slane %v3277, %v3302
        %v3305 = vadd.f32 %v3298, %v3303
        %v3306 = vld [vmem:[%s27] sm:$0x1]
        %v3308 = vlaneseq
        %v3309 = vshrl.u32 %v3308, 7
        %v3310 = vsub.s32 0, %v3309
        %v3311 = vrot.slane %v3306, %v3310
        %v3313 = vadd.f32 %v3017, %v3311
        %v3314 = vadd.f32 %v3018, %v3311
        %v3315 = vadd.f32 %v3313, %v958
        %v3316 = vadd.f32 %v3314, %v959
        %v3317 = vld [vmem:[%s29] sm:$0x1]
        %v3318 = vld [vmem:[%s31] sm:$0x1]
        %v3319 = vsel %vm1058, %v3315, 0.0
        %3320 = vadd.xlane.f32.xlu0 %v3319
        %v3321 = vpop.xlane.xlu0 %3320
        %v3322 = vsel %vm1058, %v3316, 0.0
        %3323 = vadd.xlane.f32.xlu0 %v3322
        %v3324 = vpop.xlane.xlu0 %3323
        %v3325 = vrcp.pop 48.0
        %v3326 = vmul.f32 %v3321, %v3325
        %v3327 = vmul.f32 %v3324, %v3325
        %v3328 = vsub.f32 %v3315, %v3326
        %v3329 = vsub.f32 %v3316, %v3327
        %v3330 = vmul.f32 %v3328, %v3328
        %v3331 = vmul.f32 %v3329, %v3329
        %v3332 = vsel %vm1058, %v3330, 0.0
        %3333 = vadd.xlane.f32.xlu0 %v3332
        %v3334 = vpop.xlane.xlu0 %3333
        %v3335 = vsel %vm1058, %v3331, 0.0
        %3336 = vadd.xlane.f32.xlu0 %v3335
        %v3337 = vpop.xlane.xlu0 %3336
        %v3338 = vmul.f32 %v3334, %v3325
        %v3339 = vmul.f32 %v3337, %v3325
        %v3340 = vadd.f32 %v3338, 1e-12
        %v3341 = vadd.f32 %v3339, 1e-12
        %v3342 = vrsqrt.pop %v3340
        %v3343 = vrsqrt.pop %v3341
        %v3344 = vmul.f32 %v3328, %v3342
        %v3345 = vmul.f32 %v3329, %v3343
        %v3347 = vlaneseq
        %v3348 = vshrl.u32 %v3347, 7
        %v3349 = vsub.s32 0, %v3348
        %v3350 = vrot.slane %v3317, %v3349
        %v3352 = vmul.f32 %v3344, %v3350
        %v3353 = vmul.f32 %v3345, %v3350
        %v3355 = vlaneseq
        %v3356 = vshrl.u32 %v3355, 7
        %v3357 = vsub.s32 0, %v3356
        %v3358 = vrot.slane %v3318, %v3357
        %v3360 = vadd.f32 %v3352, %v3358
        %v3361 = vadd.f32 %v3353, %v3358
        %v3362 = vld [vmem:[%s33] sm:$0xff]
        %v3363 = vld [vmem:[%s33 + $0x8] sm:$0xff]
        %v3364 = vld [vmem:[%s33 + $0x10] sm:$0xff]
        %v3365 = vld [vmem:[%s33 + $0x18] sm:$0xff]
        %v3366 = vld [vmem:[%s35] sm:$0x1]
        %v3368 = vlaneseq
        %v3369 = vshrl.u32 %v3368, 7
        %v3370 = vsub.s32 0, %v3369
        %v3371 = vrot.slane %v3366, %v3370
        %v3374 = vsel %vm971, %v3305, 0
        %3376 = vmatprep.subr.mxu0 0.0
        %3377 = vmatpush1.msra.mxu0 %v3362
        %3378 = vmatprep.subr.mxu0 0.0
        %3379 = vmatpush1.msra.mxu0 %v3363
        %3380 = vmatprep.subr.mxu0 0.0
        %3381 = vmatpush1.msra.mxu0 %v3364
        %3382 = vmatprep.subr.mxu0 0.0
        %3383 = vmatpush1.msra.mxu0 %v3365
        %3384 = vmatprep.subr.mxu0 0.0
        %3385 = vmatpush1.msra.mxu0 0.0
        %3386 = vmatprep.subr.mxu0 0.0
        %3387 = vmatpush1.msra.mxu0 0.0
        %3388 = vmatprep.subr.mxu0 0.0
        %3389 = vmatpush1.msra.mxu0 0.0
        %3390 = vmatprep.subr.mxu0 0.0
        %3391 = vmatpush1.msra.mxu0 0.0
        %3392 = vmatprep.subr.mxu0 0.0
        %3393 = vmatpush1.msra.mxu0 0.0
        %3394 = vmatprep.subr.mxu0 0.0
        %3395 = vmatpush1.msra.mxu0 0.0
        %3396 = vmatprep.subr.mxu0 0.0
        %3397 = vmatpush1.msra.mxu0 0.0
        %3398 = vmatprep.subr.mxu0 0.0
        %3399 = vmatpush1.msra.mxu0 0.0
        %3400 = vmatprep.subr.mxu0 0.0
        %3401 = vmatpush1.msra.mxu0 0.0
        %3402 = vmatprep.subr.mxu0 0.0
        %3403 = vmatpush1.msra.mxu0 0.0
        %3404 = vmatprep.subr.mxu0 0.0
        %3405 = vmatpush1.msra.mxu0 0.0
        %3406 = vmatprep.subr.mxu0 0.0
        %3407 = vmatpush1.msra.mxu0 0.0
        %3408 = vmatprep.subr.mxu0 0.0
        %3409 = vmatpush1.msra.mxu0 0.0
        %3410 = vmatprep.subr.mxu0 0.0
        %3411 = vmatpush1.msra.mxu0 0.0
        %3412 = vmatprep.subr.mxu0 0.0
        %3413 = vmatpush1.msra.mxu0 0.0
        %3414 = vmatprep.subr.mxu0 0.0
        %3415 = vmatpush1.msra.mxu0 0.0
        %3416 = vmatprep.subr.mxu0 0.0
        %3417 = vmatpush1.msra.mxu0 0.0
        %3418 = vmatprep.subr.mxu0 0.0
        %3419 = vmatpush1.msra.mxu0 0.0
        %3420 = vmatprep.subr.mxu0 0.0
        %3421 = vmatpush1.msra.mxu0 0.0
        %3422 = vmatprep.subr.mxu0 0.0
        %3423 = vmatpush1.msra.mxu0 0.0
        %3424 = vmatprep.subr.mxu0 0.0
        %3425 = vmatpush1.msra.mxu0 0.0
        %3426 = vmatprep.subr.mxu0 0.0
        %3427 = vmatpush1.msra.mxu0 0.0
        %3428 = vmatprep.subr.mxu0 0.0
        %3429 = vmatpush1.msra.mxu0 0.0
        %3430 = vmatprep.subr.mxu0 0.0
        %3431 = vmatpush1.msra.mxu0 0.0
        %3432 = vmatprep.subr.mxu0 0.0
        %3433 = vmatpush1.msra.mxu0 0.0
        %3434 = vmatprep.subr.mxu0 0.0
        %3435 = vmatpush1.msra.mxu0 0.0
        %3436 = vmatprep.subr.mxu0 0.0
        %3437 = vmatpush1.msra.mxu0 0.0
        %3438 = vmatprep.subr.mxu0 0.0
        %3439 = vmatpush1.msra.mxu0 0.0
        %3440 = vmatprep.mubr.f32.mxu0 0.0
        %3441 = vmatmul.mubr.f32.gmra.mrb[0].mxu0 %v3374
        %v3442 = vpop.f32.mrb[0].mxu0
        %v3443 = vadd.f32 %v3371, %v3442
        %v3444 = vpop.f32.mrb[0].mxu0
        %3445 = vdwg.mxu0
        %v3446 = vmul.f32 %v3443, 0.5
        %v3447 = vmul.f32 %v3443, %v3443
        %v3448 = vmul.f32 %v3447, %v3443
        %v3449 = vmul.f32 %v3448, 0.044715
        %v3450 = vadd.f32 %v3443, %v3449
        %v3451 = vmul.f32 %v3450, 0.7978846
        %v3452 = vtanh.pop %v3451
        %v3453 = vadd.f32 %v3452, 1.0
        %v3454 = vmul.f32 %v3446, %v3453
        %v3455 = vld [vmem:[%s37] sm:$0xff]
        %v3456 = vld [vmem:[%s37 + $0x8] sm:$0xff]
        %v3457 = vld [vmem:[%s37 + $0x10] sm:$0xff]
        %v3458 = vld [vmem:[%s37 + $0x18] sm:$0xff]
        %v3459 = vld [vmem:[%s37 + $0x20] sm:$0xff]
        %v3460 = vld [vmem:[%s37 + $0x28] sm:$0xff]
        %v3461 = vld [vmem:[%s37 + $0x30] sm:$0xff]
        %v3462 = vld [vmem:[%s37 + $0x38] sm:$0xff]
        %v3463 = vld [vmem:[%s39] sm:$0x1]
        %v3465 = vlaneseq
        %v3466 = vshrl.u32 %v3465, 7
        %v3467 = vsub.s32 0, %v3466
        %v3468 = vrot.slane %v3463, %v3467
        %vm3470 = vcmask 523264
        %v3472 = vsel %vm3470, %v3454, 0
        %3474 = vmatprep.subr.mxu0 0.0
        %3475 = vmatpush1.msra.mxu0 %v3455
        %3476 = vmatprep.subr.mxu0 0.0
        %3477 = vmatpush1.msra.mxu0 %v3456
        %3478 = vmatprep.subr.mxu0 0.0
        %3479 = vmatpush1.msra.mxu0 %v3457
        %3480 = vmatprep.subr.mxu0 0.0
        %3481 = vmatpush1.msra.mxu0 %v3458
        %3482 = vmatprep.subr.mxu0 0.0
        %3483 = vmatpush1.msra.mxu0 %v3459
        %3484 = vmatprep.subr.mxu0 0.0
        %3485 = vmatpush1.msra.mxu0 %v3460
        %3486 = vmatprep.subr.mxu0 0.0
        %3487 = vmatpush1.msra.mxu0 %v3461
        %3488 = vmatprep.subr.mxu0 0.0
        %3489 = vmatpush1.msra.mxu0 %v3462
        %3490 = vmatprep.subr.mxu0 0.0
        %3491 = vmatpush1.msra.mxu0 0.0
        %3492 = vmatprep.subr.mxu0 0.0
        %3493 = vmatpush1.msra.mxu0 0.0
        %3494 = vmatprep.subr.mxu0 0.0
        %3495 = vmatpush1.msra.mxu0 0.0
        %3496 = vmatprep.subr.mxu0 0.0
        %3497 = vmatpush1.msra.mxu0 0.0
        %3498 = vmatprep.subr.mxu0 0.0
        %3499 = vmatpush1.msra.mxu0 0.0
        %3500 = vmatprep.subr.mxu0 0.0
        %3501 = vmatpush1.msra.mxu0 0.0
        %3502 = vmatprep.subr.mxu0 0.0
        %3503 = vmatpush1.msra.mxu0 0.0
        %3504 = vmatprep.subr.mxu0 0.0
        %3505 = vmatpush1.msra.mxu0 0.0
        %3506 = vmatprep.subr.mxu0 0.0
        %3507 = vmatpush1.msra.mxu0 0.0
        %3508 = vmatprep.subr.mxu0 0.0
        %3509 = vmatpush1.msra.mxu0 0.0
        %3510 = vmatprep.subr.mxu0 0.0
        %3511 = vmatpush1.msra.mxu0 0.0
        %3512 = vmatprep.subr.mxu0 0.0
        %3513 = vmatpush1.msra.mxu0 0.0
        %3514 = vmatprep.subr.mxu0 0.0
        %3515 = vmatpush1.msra.mxu0 0.0
        %3516 = vmatprep.subr.mxu0 0.0
        %3517 = vmatpush1.msra.mxu0 0.0
        %3518 = vmatprep.subr.mxu0 0.0
        %3519 = vmatpush1.msra.mxu0 0.0
        %3520 = vmatprep.subr.mxu0 0.0
        %3521 = vmatpush1.msra.mxu0 0.0
        %3522 = vmatprep.subr.mxu0 0.0
        %3523 = vmatpush1.msra.mxu0 0.0
        %3524 = vmatprep.subr.mxu0 0.0
        %3525 = vmatpush1.msra.mxu0 0.0
        %3526 = vmatprep.subr.mxu0 0.0
        %3527 = vmatpush1.msra.mxu0 0.0
        %3528 = vmatprep.subr.mxu0 0.0
        %3529 = vmatpush1.msra.mxu0 0.0
        %3530 = vmatprep.subr.mxu0 0.0
        %3531 = vmatpush1.msra.mxu0 0.0
        %3532 = vmatprep.subr.mxu0 0.0
        %3533 = vmatpush1.msra.mxu0 0.0
        %3534 = vmatprep.subr.mxu0 0.0
        %3535 = vmatpush1.msra.mxu0 0.0
        %3536 = vmatprep.subr.mxu0 0.0
        %3537 = vmatpush1.msra.mxu0 0.0
        %3538 = vmatprep.mubr.f32.mxu0 0.0
        %3539 = vmatmul.mubr.f32.gmra.mrb[0].mxu0 %v3472
        %v3540 = vpop.f32.mrb[0].mxu0
        %v3541 = vadd.f32 %v3468, %v3540
        %v3542 = vpop.f32.mrb[0].mxu0
        %3543 = vdwg.mxu0
        %v3544 = vadd.f32 %v3541, %v3305
        %v3545 = vld [vmem:[%s41] sm:$0x1]
        %v3546 = vld [vmem:[%s43] sm:$0x1]
        %v3547 = vsel %vm971, %v3544, 0.0
        %3548 = vadd.xlane.f32.xlu0 %v3547
        %v3549 = vpop.xlane.xlu0 %3548
        %v3550 = vmul.f32 %v3549, %v3281
        %v3551 = vsub.f32 %v3544, %v3550
        %v3552 = vmul.f32 %v3551, %v3551
        %v3553 = vsel %vm971, %v3552, 0.0
        %3554 = vadd.xlane.f32.xlu0 %v3553
        %v3555 = vpop.xlane.xlu0 %3554
        %v3556 = vmul.f32 %v3555, %v3281
        %v3557 = vadd.f32 %v3556, 1e-12
        %v3558 = vrsqrt.pop %v3557
        %v3559 = vmul.f32 %v3551, %v3558
        %v3561 = vlaneseq
        %v3562 = vshrl.u32 %v3561, 7
        %v3563 = vsub.s32 0, %v3562
        %v3564 = vrot.slane %v3545, %v3563
        %v3566 = vmul.f32 %v3559, %v3564
        %v3568 = vlaneseq
        %v3569 = vshrl.u32 %v3568, 7
        %v3570 = vsub.s32 0, %v3569
        %v3571 = vrot.slane %v3546, %v3570
        %v3573 = vadd.f32 %v3566, %v3571
        %v3574 = vld [vmem:[%s45] sm:$0xff]
        %v3575 = vld [vmem:[%s45 + $0x8] sm:$0xff]
        %v3576 = vld [vmem:[%s45 + $0x10] sm:$0xff]
        %v3577 = vld [vmem:[%s45 + $0x18] sm:$0xff]
        %v3578 = vld [vmem:[%s45 + $0x20] sm:$0xff]
        %v3579 = vld [vmem:[%s45 + $0x28] sm:$0xff]
        %v3580 = vld [vmem:[%s47] sm:$0x1]
        %v3582 = vlaneseq
        %v3583 = vshrl.u32 %v3582, 7
        %v3584 = vsub.s32 0, %v3583
        %v3585 = vrot.slane %v3580, %v3584
        %v3588 = vsel %vm1058, %v3360, 0
        %v3591 = vsel %vm1058, %v3361, 0
        %3593 = vmatprep.subr.mxu0 0.0
        %3594 = vmatpush1.msra.mxu0 %v3574
        %3595 = vmatprep.subr.mxu0 0.0
        %3596 = vmatpush1.msra.mxu0 %v3575
        %3597 = vmatprep.subr.mxu0 0.0
        %3598 = vmatpush1.msra.mxu0 %v3576
        %3599 = vmatprep.subr.mxu0 0.0
        %3600 = vmatpush1.msra.mxu0 %v3577
        %3601 = vmatprep.subr.mxu0 0.0
        %3602 = vmatpush1.msra.mxu0 %v3578
        %3603 = vmatprep.subr.mxu0 0.0
        %3604 = vmatpush1.msra.mxu0 %v3579
        %3605 = vmatprep.subr.mxu0 0.0
        %3606 = vmatpush1.msra.mxu0 0.0
        %3607 = vmatprep.subr.mxu0 0.0
        %3608 = vmatpush1.msra.mxu0 0.0
        %3609 = vmatprep.subr.mxu0 0.0
        %3610 = vmatpush1.msra.mxu0 0.0
        %3611 = vmatprep.subr.mxu0 0.0
        %3612 = vmatpush1.msra.mxu0 0.0
        %3613 = vmatprep.subr.mxu0 0.0
        %3614 = vmatpush1.msra.mxu0 0.0
        %3615 = vmatprep.subr.mxu0 0.0
        %3616 = vmatpush1.msra.mxu0 0.0
        %3617 = vmatprep.subr.mxu0 0.0
        %3618 = vmatpush1.msra.mxu0 0.0
        %3619 = vmatprep.subr.mxu0 0.0
        %3620 = vmatpush1.msra.mxu0 0.0
        %3621 = vmatprep.subr.mxu0 0.0
        %3622 = vmatpush1.msra.mxu0 0.0
        %3623 = vmatprep.subr.mxu0 0.0
        %3624 = vmatpush1.msra.mxu0 0.0
        %3625 = vmatprep.subr.mxu0 0.0
        %3626 = vmatpush1.msra.mxu0 0.0
        %3627 = vmatprep.subr.mxu0 0.0
        %3628 = vmatpush1.msra.mxu0 0.0
        %3629 = vmatprep.subr.mxu0 0.0
        %3630 = vmatpush1.msra.mxu0 0.0
        %3631 = vmatprep.subr.mxu0 0.0
        %3632 = vmatpush1.msra.mxu0 0.0
        %3633 = vmatprep.subr.mxu0 0.0
        %3634 = vmatpush1.msra.mxu0 0.0
        %3635 = vmatprep.subr.mxu0 0.0
        %3636 = vmatpush1.msra.mxu0 0.0
        %3637 = vmatprep.subr.mxu0 0.0
        %3638 = vmatpush1.msra.mxu0 0.0
        %3639 = vmatprep.subr.mxu0 0.0
        %3640 = vmatpush1.msra.mxu0 0.0
        %3641 = vmatprep.subr.mxu0 0.0
        %3642 = vmatpush1.msra.mxu0 0.0
        %3643 = vmatprep.subr.mxu0 0.0
        %3644 = vmatpush1.msra.mxu0 0.0
        %3645 = vmatprep.subr.mxu0 0.0
        %3646 = vmatpush1.msra.mxu0 0.0
        %3647 = vmatprep.subr.mxu0 0.0
        %3648 = vmatpush1.msra.mxu0 0.0
        %3649 = vmatprep.subr.mxu0 0.0
        %3650 = vmatpush1.msra.mxu0 0.0
        %3651 = vmatprep.subr.mxu0 0.0
        %3652 = vmatpush1.msra.mxu0 0.0
        %3653 = vmatprep.subr.mxu0 0.0
        %3654 = vmatpush1.msra.mxu0 0.0
        %3655 = vmatprep.subr.mxu0 0.0
        %3656 = vmatpush1.msra.mxu0 0.0
        %3657 = vmatprep.mubr.f32.mxu0 0.0
        %3658 = vmatmul.mubr.f32.gmra.mrb[0].mxu0 %v3588
        %v3659 = vpop.f32.mrb[0].mxu0
        %v3660 = vadd.f32 %v3585, %v3659
        %v3661 = vpop.f32.mrb[0].mxu0
        %3662 = vmatprep.mubr.f32.mxu0 0.0
        %3663 = vmatmul.mubr.f32.gmra.mrb[0].mxu0 %v3591
        %v3664 = vpop.f32.mrb[0].mxu0
        %v3665 = vadd.f32 %v3585, %v3664
        %v3666 = vpop.f32.mrb[0].mxu0
        %3667 = vdwg.mxu0
        %v3668 = vmul.f32 %v3660, 0.5
        %v3669 = vmul.f32 %v3665, 0.5
        %v3670 = vmul.f32 %v3660, %v3660
        %v3671 = vmul.f32 %v3665, %v3665
        %v3672 = vmul.f32 %v3670, %v3660
        %v3673 = vmul.f32 %v3671, %v3665
        %v3674 = vmul.f32 %v3672, 0.044715
        %v3675 = vmul.f32 %v3673, 0.044715
        %v3676 = vadd.f32 %v3660, %v3674
        %v3677 = vadd.f32 %v3665, %v3675
        %v3678 = vmul.f32 %v3676, 0.7978846
        %v3679 = vmul.f32 %v3677, 0.7978846
        %v3680 = vtanh.pop %v3678
        %v3681 = vtanh.pop %v3679
        %v3682 = vadd.f32 %v3680, 1.0
        %v3683 = vadd.f32 %v3681, 1.0
        %v3684 = vmul.f32 %v3668, %v3682
        %v3685 = vmul.f32 %v3669, %v3683
        %v3686 = vld [vmem:[%s49] sm:$0xff]
        %v3687 = vld [vmem:[%s49 + $0x8] sm:$0xff]
        %v3688 = vld [vmem:[%s49 + $0x10] sm:$0xff]
        %v3689 = vld [vmem:[%s49 + $0x18] sm:$0xff]
        %v3690 = vld [vmem:[%s49 + $0x20] sm:$0xff]
        %v3691 = vld [vmem:[%s49 + $0x28] sm:$0xff]
        %v3692 = vld [vmem:[%s49 + $0x30] sm:$0xff]
        %v3693 = vld [vmem:[%s49 + $0x38] sm:$0xff]
        %v3694 = vld [vmem:[%s49 + $0x40] sm:$0xff]
        %v3695 = vld [vmem:[%s49 + $0x48] sm:$0xff]
        %v3696 = vld [vmem:[%s49 + $0x50] sm:$0xff]
        %v3697 = vld [vmem:[%s49 + $0x58] sm:$0xff]
        %v3698 = vld [vmem:[%s51] sm:$0x1]
        %v3700 = vlaneseq
        %v3701 = vshrl.u32 %v3700, 7
        %v3702 = vsub.s32 0, %v3701
        %v3703 = vrot.slane %v3698, %v3702
        %vm3705 = vcmask 785408
        %v3707 = vsel %vm3705, %v3684, 0
        %v3710 = vsel %vm3705, %v3685, 0
        %3712 = vmatprep.subr.mxu0 0.0
        %3713 = vmatpush1.msra.mxu0 %v3686
        %3714 = vmatprep.subr.mxu0 0.0
        %3715 = vmatpush1.msra.mxu0 %v3687
        %3716 = vmatprep.subr.mxu0 0.0
        %3717 = vmatpush1.msra.mxu0 %v3688
        %3718 = vmatprep.subr.mxu0 0.0
        %3719 = vmatpush1.msra.mxu0 %v3689
        %3720 = vmatprep.subr.mxu0 0.0
        %3721 = vmatpush1.msra.mxu0 %v3690
        %3722 = vmatprep.subr.mxu0 0.0
        %3723 = vmatpush1.msra.mxu0 %v3691
        %3724 = vmatprep.subr.mxu0 0.0
        %3725 = vmatpush1.msra.mxu0 %v3692
        %3726 = vmatprep.subr.mxu0 0.0
        %3727 = vmatpush1.msra.mxu0 %v3693
        %3728 = vmatprep.subr.mxu0 0.0
        %3729 = vmatpush1.msra.mxu0 %v3694
        %3730 = vmatprep.subr.mxu0 0.0
        %3731 = vmatpush1.msra.mxu0 %v3695
        %3732 = vmatprep.subr.mxu0 0.0
        %3733 = vmatpush1.msra.mxu0 %v3696
        %3734 = vmatprep.subr.mxu0 0.0
        %3735 = vmatpush1.msra.mxu0 %v3697
        %3736 = vmatprep.subr.mxu0 0.0
        %3737 = vmatpush1.msra.mxu0 0.0
        %3738 = vmatprep.subr.mxu0 0.0
        %3739 = vmatpush1.msra.mxu0 0.0
        %3740 = vmatprep.subr.mxu0 0.0
        %3741 = vmatpush1.msra.mxu0 0.0
        %3742 = vmatprep.subr.mxu0 0.0
        %3743 = vmatpush1.msra.mxu0 0.0
        %3744 = vmatprep.subr.mxu0 0.0
        %3745 = vmatpush1.msra.mxu0 0.0
        %3746 = vmatprep.subr.mxu0 0.0
        %3747 = vmatpush1.msra.mxu0 0.0
        %3748 = vmatprep.subr.mxu0 0.0
        %3749 = vmatpush1.msra.mxu0 0.0
        %3750 = vmatprep.subr.mxu0 0.0
        %3751 = vmatpush1.msra.mxu0 0.0
        %3752 = vmatprep.subr.mxu0 0.0
        %3753 = vmatpush1.msra.mxu0 0.0
        %3754 = vmatprep.subr.mxu0 0.0
        %3755 = vmatpush1.msra.mxu0 0.0
        %3756 = vmatprep.subr.mxu0 0.0
        %3757 = vmatpush1.msra.mxu0 0.0
        %3758 = vmatprep.subr.mxu0 0.0
        %3759 = vmatpush1.msra.mxu0 0.0
        %3760 = vmatprep.subr.mxu0 0.0
        %3761 = vmatpush1.msra.mxu0 0.0
        %3762 = vmatprep.subr.mxu0 0.0
        %3763 = vmatpush1.msra.mxu0 0.0
        %3764 = vmatprep.subr.mxu0 0.0
        %3765 = vmatpush1.msra.mxu0 0.0
        %3766 = vmatprep.subr.mxu0 0.0
        %3767 = vmatpush1.msra.mxu0 0.0
        %3768 = vmatprep.subr.mxu0 0.0
        %3769 = vmatpush1.msra.mxu0 0.0
        %3770 = vmatprep.subr.mxu0 0.0
        %3771 = vmatpush1.msra.mxu0 0.0
        %3772 = vmatprep.subr.mxu0 0.0
        %3773 = vmatpush1.msra.mxu0 0.0
        %3774 = vmatprep.subr.mxu0 0.0
        %3775 = vmatpush1.msra.mxu0 0.0
        %3776 = vmatprep.mubr.f32.mxu0 0.0
        %3777 = vmatmul.mubr.f32.gmra.mrb[0].mxu0 %v3707
        %v3778 = vpop.f32.mrb[0].mxu0
        %v3779 = vadd.f32 %v3703, %v3778
        %v3780 = vpop.f32.mrb[0].mxu0
        %3781 = vmatprep.mubr.f32.mxu0 0.0
        %3782 = vmatmul.mubr.f32.gmra.mrb[0].mxu0 %v3710
        %v3783 = vpop.f32.mrb[0].mxu0
        %v3784 = vadd.f32 %v3703, %v3783
        %v3785 = vpop.f32.mrb[0].mxu0
        %3786 = vdwg.mxu0
        %v3787 = vadd.f32 %v3779, %v3360
        %v3788 = vadd.f32 %v3784, %v3361
        %v3789 = vld [vmem:[%s53] sm:$0x1]
        %v3790 = vld [vmem:[%s55] sm:$0x1]
        %v3791 = vsel %vm1058, %v3787, 0.0
        %3792 = vadd.xlane.f32.xlu0 %v3791
        %v3793 = vpop.xlane.xlu0 %3792
        %v3794 = vsel %vm1058, %v3788, 0.0
        %3795 = vadd.xlane.f32.xlu0 %v3794
        %v3796 = vpop.xlane.xlu0 %3795
        %v3797 = vmul.f32 %v3793, %v3325
        %v3798 = vmul.f32 %v3796, %v3325
        %v3799 = vsub.f32 %v3787, %v3797
        %v3800 = vsub.f32 %v3788, %v3798
        %v3801 = vmul.f32 %v3799, %v3799
        %v3802 = vmul.f32 %v3800, %v3800
        %v3803 = vsel %vm1058, %v3801, 0.0
        %3804 = vadd.xlane.f32.xlu0 %v3803
        %v3805 = vpop.xlane.xlu0 %3804
        %v3806 = vsel %vm1058, %v3802, 0.0
        %3807 = vadd.xlane.f32.xlu0 %v3806
        %v3808 = vpop.xlane.xlu0 %3807
        %v3809 = vmul.f32 %v3805, %v3325
        %v3810 = vmul.f32 %v3808, %v3325
        %v3811 = vadd.f32 %v3809, 1e-12
        %v3812 = vadd.f32 %v3810, 1e-12
        %v3813 = vrsqrt.pop %v3811
        %v3814 = vrsqrt.pop %v3812
        %v3815 = vmul.f32 %v3799, %v3813
        %v3816 = vmul.f32 %v3800, %v3814
        %v3818 = vlaneseq
        %v3819 = vshrl.u32 %v3818, 7
        %v3820 = vsub.s32 0, %v3819
        %v3821 = vrot.slane %v3789, %v3820
        %v3823 = vmul.f32 %v3815, %v3821
        %v3824 = vmul.f32 %v3816, %v3821
        %v3826 = vlaneseq
        %v3827 = vshrl.u32 %v3826, 7
        %v3828 = vsub.s32 0, %v3827
        %v3829 = vrot.slane %v3790, %v3828
        %v3831 = vadd.f32 %v3823, %v3829
        %v3832 = vadd.f32 %v3824, %v3829
        %3833 = vst.msk [vmem:[%s934] sm:$0xff] %vm971, %v3573
        %3834 = vst.msk [vmem:[%s941] sm:$0xff] %vm1058, %v3831
        %3835 = vst.msk [vmem:[%s941 + $0x8] sm:$0xff] %vm1058, %v3832
        %s3836 = sand.u32 %s693, 1
        %s3837 = scalar_lea.sflag [#allocation3], %s3836
        %s3838 = sand.u32 %s693, 1
        %s3839 = smul.addr %s3838, 8
        %s3840 = scalar_lea.vmem [#allocation2], %s3839
        %s3841 = sand.u32 %s719, 1
        %s3842 = scalar_lea.sflag [#allocation5], %s3841
        %s3843 = sand.u32 %s719, 1
        %s3844 = smul.addr %s3843, 16
        %s3845 = scalar_lea.vmem [#allocation4], %s3844
        // Predicated region
        $region133: #{bert_connection_layer.1} parent=131 // pred_check
          %p3846 = pneg %p703
        $region134: #{bert_connection_layer.1} parent=131 // pred_check_branch
          %3848 = sbr.rel (%p3846) target = $region136
        $region135: #{bert_connection_layer.1} parent=131 // pred_region
          %s3850 = ssub.s32 128, 128
          %3851 = vsyncadd %s3837, %s3850
          %s3852 = smul.addr %s77, 128
          %s3853 = scalar_lea.hbm %s57, %s3852
          %s3855 = sshll.u32 %s3840, 4
          %s3856 = int_to_ptr.vmem [resolvable:$true] %s3855
          %3858 = dma.vmem_to_hbm [thread:$0]  %s3856, 128, %s3853, %s3837
        $region136: #{bert_connection_layer.1} parent=131 // pred_fallthru
          _
        // Predicated region
        $region137: #{bert_connection_layer.1} parent=131 // pred_check
          %p3859 = pneg %p729
        $region138: #{bert_connection_layer.1} parent=131 // pred_check_branch
          %3861 = sbr.rel (%p3859) target = $region140
        $region139: #{bert_connection_layer.1} parent=131 // pred_region
          %s3863 = ssub.s32 256, 256
          %3864 = vsyncadd %s3842, %s3863
          %s3865 = smul.addr %s77, 2
          %s3866 = smul.addr %s3865, 128
          %s3867 = scalar_lea.hbm %s59, %s3866
          %s3868 = sshll.u32 %s3845, 4
          %s3869 = int_to_ptr.vmem [resolvable:$true] %s3868
          %3874 = dma.vmem_to_hbm [thread:$0]  %s3869, 256, %s3867, %s3842, 128, 128, 8
        $region140: #{bert_connection_layer.1} parent=131 // pred_fallthru
          _
      $region132: #{bert_connection_layer.1} parent=5 // pred_fallthru
        _
      %p3875 = scmp.le.s32.totalorder 2, %s72
      // Predicated region
      $region141: #{bert_connection_layer.1} parent=5 // pred_check
        %p3876 = pneg %p3875
      $region142: #{bert_connection_layer.1} parent=5 // pred_check_branch
        %3878 = sbr.rel (%p3876) target = $region144
      $region143: #{bert_connection_layer.1} parent=5 // pred_region
        %s3879 = ssub.s32 %s72, 2
        // Predicated region
        $region145: #{bert_connection_layer.1} parent=143 // pred_check
          %p3880 = pneg %p709
        $region146: #{bert_connection_layer.1} parent=143 // pred_check_branch
          %3882 = sbr.rel (%p3880) target = $region148
        $region147: #{bert_connection_layer.1} parent=143 // pred_region
          %s3883 = sand.u32 %s694, 1
          %s3884 = scalar_lea.sflag [#allocation3], %s3883
          %s3885 = sand.u32 %s694, 1
          %s3886 = smul.addr %s3885, 8
          %s3887 = scalar_lea.vmem [#allocation2], %s3886
          %3888 = dma.done %s3884, 128
        $region148: #{bert_connection_layer.1} parent=143 // pred_fallthru
          _
        // Predicated region
        $region149: #{bert_connection_layer.1} parent=143 // pred_check
          %p3889 = pneg %p735
        $region150: #{bert_connection_layer.1} parent=143 // pred_check_branch
          %3891 = sbr.rel (%p3889) target = $region152
        $region151: #{bert_connection_layer.1} parent=143 // pred_region
          %s3892 = sand.u32 %s720, 1
          %s3893 = scalar_lea.sflag [#allocation5], %s3892
          %s3894 = sand.u32 %s720, 1
          %s3895 = smul.addr %s3894, 16
          %s3896 = scalar_lea.vmem [#allocation4], %s3895
          %3897 = dma.done %s3893, 256
        $region152: #{bert_connection_layer.1} parent=143 // pred_fallthru
          _
      $region144: #{bert_connection_layer.1} parent=5 // pred_fallthru
        _
    $region6: #{bert_connection_layer.1} parent=1 // loop_footer
      %s76 = sadd.s32 1, %s72
    $region7: #{bert_connection_layer.1} parent=1 // loop_footer_branch
      %71 = sbr.rel target = $region3
    $region8: #{bert_connection_layer.1} parent=1 // loop_exit
      _
    %3898 = vsyncpa [#allocation3], 1
    %s3899 = scalar_lea.sflag [#allocation3], 1
    %3900 = vsyncpa %s3899, 1
    %3901 = vsyncpa [#allocation5], 1
    %s3902 = scalar_lea.sflag [#allocation5], 1
    %3903 = vsyncpa %s3902, 1

</llo_original>
